<compile_context>
chip_gen: v7x
topology: tpu7x:2x2x1
jax: 0.10.0
libtpu: 0.0.40
codegen_flags: <defaults>
</compile_context>

<pallas_src>
import jax
import jax.numpy as jnp
from jax import lax
from jax.experimental import pallas as pl
from jax.experimental.pallas import tpu as pltpu

NHIDDEN = 128          # SPADE mlp hidden channels (fixed by the module)
EPS = 1e-5             # nn.InstanceNorm2d default eps
LEAKY_SLOPE = 0.2      # F.leaky_relu(dx, 0.2)


def _round_up(v, m):
    return ((v + m - 1) // m) * m


def _make_kernel(C, CP, LP, H, W):
    """Fused SPADEResnetBlock kernel for static dims (per-row zero-guard flat layout)."""
    NH = NHIDDEN
    NH2 = 2 * NH                 # SPADE_0 | SPADE_1 activations stacked on sublanes
    GP4 = 4 * CP                 # gamma0 | beta0 | gamma1 | beta1, each padded to CP
    Wp = W + 2                   # row stride: [guard, W pixels, guard]
    Lp = (H + 2) * Wp            # full padded buffer (top pad row + H rows + bottom pad row)
    base = Wp + 1                # flat offset of pixel (0, 0)
    Lc = H * Wp - 2              # compute span: pixel (0,0) .. pixel (H-1,W-1)
    Ls = H * Wp                  # full image-rows span (incl. outermost guards)
    inv_hw = 1.0 / float(H * W)
    shifts = [(k // 3 - 1, k % 3 - 1) for k in range(9)]
    offs = [base + dy * Wp + dx for (dy, dx) in shifts]

    def kernel(seg_ref, x_ref, gmask_ref, refl_ref,
               wsh_ref, bsh_ref, wgb_ref, bgb_ref, wl_ref,
               out_ref, actv_scr, dx_scr):
        x = x_ref[0]                         # (CP, Lc) f32, zero guards / zero pad channels
        gmask = gmask_ref[...]               # (1, Lc) f32: 1 at pixels, 0 at inter-row guards
        lguard = refl_ref[0:1, :] != 0       # (1, Ls) left-guard positions
        rguard = refl_ref[1:2, :] != 0       # (1, Ls) right-guard positions

        # Zero only the never-written outer halo of the activation scratch (pad rows +
        # outermost guards).  Done every step (it is only 2*(Wp+1) lanes) rather than under
        # @pl.when(pid==0): scratch is per-TensorCore and the "parallel" batch axis may be
        # split across megacore TCs, so a pid==0 guard would leave one core uninitialized.
        zhalo = jnp.zeros((NH2, base), jnp.bfloat16)
        actv_scr[:, 0:base] = zhalo
        actv_scr[:, base + Lc:Lp] = zhalo

        # ---- fused mlp_shared for BOTH SPADEs: K-stacked taps -> one MXU matmul (M=256) ---
        segK = jnp.concatenate(
            [seg_ref[0, :, o:o + Lc] for o in offs], axis=0)          # (9*LP, Lc) bf16
        acc = jnp.dot(wsh_ref[...], segK,
                      preferred_element_type=jnp.float32)             # (256, Lc) f32
        actv = jnp.maximum(acc + bsh_ref[...], 0.0) * gmask           # ReLU + zero the guards
        actv_scr[:, base:base + Lc] = actv.astype(jnp.bfloat16)

        # ---- fused gamma/beta conv for BOTH SPADEs: block-diagonal weights, K = 256 -------
        gb = None
        for k in range(9):
            slab = actv_scr[:, offs[k]:offs[k] + Lc]                  # (256, Lc) bf16
            part = jnp.dot(wgb_ref[k], slab,
                           preferred_element_type=jnp.float32)        # (4*CP, Lc) f32
            gb = part if gb is None else gb + part
        gb = gb + bgb_ref[...]
        gamma0 = gb[0 * CP:1 * CP, :]        # sublane-aligned slices (each block = CP rows)
        beta0 = gb[1 * CP:2 * CP, :]
        gamma1 = gb[2 * CP:3 * CP, :]
        beta1 = gb[3 * CP:4 * CP, :]

        def inorm(t):                        # exact per-channel instance norm (guards are 0)
            mean = jnp.sum(t, axis=1, keepdims=True) * inv_hw
            ex2 = jnp.sum(t * t, axis=1, keepdims=True) * inv_hw
            var = ex2 - mean * mean
            return (t - mean) * lax.rsqrt(var + EPS)

        def leaky(t):
            return jnp.where(t > 0, t, LEAKY_SLOPE * t)

        dx = leaky(inorm(x) * (1.0 + gamma0) + beta0) * gmask         # zero guards for stats
        dx = leaky(inorm(dx) * (1.0 + gamma1) + beta1)                # (CP, Lc) f32

        # ---- conv_last: ReflectionPad2d(1) + 3x3 conv via pre-written halo + K-stack ------
        dx_scr[:, base:base + Lc] = dx.astype(jnp.bfloat16)
        row0 = base - 1
        v = dx_scr[:, row0:row0 + Ls]                                 # all rows incl. guards
        vfwd = dx_scr[:, row0 + 2:row0 + 2 + Ls]                      # value at p+2
        vbwd = dx_scr[:, row0 - 2:row0 - 2 + Ls]                      # value at p-2
        v = jnp.where(lguard, vfwd, v)                                # left guards <- col 1
        v = jnp.where(rguard, vbwd, v)                                # right guards <- col W-2
        dx_scr[:, row0:row0 + Ls] = v
        dx_scr[:, 0:Wp] = dx_scr[:, 2 * Wp:3 * Wp]                    # top pad row <- row 1
        dx_scr[:, (H + 1) * Wp:(H + 2) * Wp] = dx_scr[:, (H - 1) * Wp:H * Wp]  # bottom <- H-2

        dxK = jnp.concatenate(
            [dx_scr[:, o:o + Lc] for o in offs], axis=0)              # (9*CP, Lc) bf16
        res = jnp.dot(wl_ref[...], dxK,
                      preferred_element_type=jnp.float32)             # (CP, Lc) f32

        out_ref[0] = x + res                 # identity shortcut (fin == fout)

    return kernel, Wp, Lp, base, Lc, Ls


def spade_resnet_block_pallas(x, seg, params):
    """SPADEResnetBlock forward (fin == fout) on TPU. x: (N,C,H,W); seg: (N,label_nc,Hs,Ws)."""
    x = x.astype(jnp.float32)
    seg = seg.astype(jnp.float32)
    N, C, H, W = x.shape
    label_nc = seg.shape[1]

    LP = _round_up(label_nc, 8)       # padded seg channels (per-tap K)
    CP = _round_up(C, 8)              # padded feature channels
    NH = NHIDDEN
    NH2 = 2 * NH
    GP4 = 4 * CP
    KSH = 9 * LP                      # stacked K of the fused mlp_shared conv
    KL = 9 * CP                       # stacked K of conv_last

    kernel, Wp, Lp, base, Lc, Ls = _make_kernel(C, CP, LP, H, W)

    # F.interpolate(seg, size=(H, W), mode='nearest') (identity when sizes already match)
    Hs, Ws = seg.shape[2], seg.shape[3]
    if (Hs, Ws) != (H, W):
        hi = (jnp.arange(H) * Hs) // H
        wi = (jnp.arange(W) * Ws) // W
        seg = seg[:, :, hi][:, :, :, wi]

    # --- per-row zero-guard layouts (layout plumbing in XLA, no in-kernel masking needed) --
    seg_p = jnp.pad(seg, ((0, 0), (0, LP - label_nc), (1, 1), (1, 1)))
    seg_p = seg_p.reshape(N, LP, Lp).astype(jnp.bfloat16)             # (N, LP, Lp)

    x_p = jnp.pad(x, ((0, 0), (0, CP - C), (0, 0), (1, 1)))           # (N, CP, H, Wp)
    x_p = x_p.reshape(N, CP, Ls)[:, :, 1:1 + Lc]                      # f32, compute-span layout

    col_c = (jnp.arange(Lc, dtype=jnp.int32) + base) % Wp
    gmask = ((col_c >= 1) & (col_c <= W)).astype(jnp.float32).reshape(1, Lc)
    col_s = (jnp.arange(Ls, dtype=jnp.int32) + (base - 1)) % Wp
    refl = jnp.stack([col_s == 0, col_s == Wp - 1]).astype(jnp.int32)  # (2, Ls)

    # --- weights ---------------------------------------------------------------------------
    def taps(w):                      # (O, I, 3, 3) -> (9, O, I), tap k = kh*3 + kw
        return jnp.transpose(w.astype(jnp.float32), (2, 3, 0, 1)).reshape(
            9, w.shape[0], w.shape[1])

    def kstack(w, kp):                # (O, I, 3, 3) -> (O, 9*kp), per-tap K padded to kp
        O = w.shape[0]
        t = taps(w)
        t = jnp.pad(t, ((0, 0), (0, 0), (0, kp - t.shape[2])))
        return jnp.transpose(t, (1, 0, 2)).reshape(O, 9 * kp)

    p0, p1 = params["spade0"], params["spade1"]

    # fused mlp_shared: rows 0:128 -> SPADE_0, rows 128:256 -> SPADE_1
    wsh = jnp.concatenate([kstack(p0["w_shared"], LP),
                           kstack(p1["w_shared"], LP)], axis=0).astype(jnp.bfloat16)
    bsh = jnp.concatenate([p0["b_shared"], p1["b_shared"]]).astype(
        jnp.float32).reshape(NH2, 1)

    def pad_rows(t):                  # (9, C, NH) -> (9, CP, NH)
        return jnp.pad(t, ((0, 0), (0, CP - t.shape[1]), (0, 0)))

    # fused gamma/beta: block-diagonal (9, 4*CP, 256); gamma/beta padded independently to CP.
    left = jnp.concatenate([pad_rows(taps(p0["w_gamma"])),
                            pad_rows(taps(p0["w_beta"]))], axis=1)     # (9, 2CP, 128)
    right = jnp.concatenate([pad_rows(taps(p1["w_gamma"])),
                             pad_rows(taps(p1["w_beta"]))], axis=1)    # (9, 2CP, 128)
    zblk = jnp.zeros_like(left)
    wgb = jnp.concatenate([jnp.concatenate([left, zblk], axis=2),
                           jnp.concatenate([zblk, right], axis=2)],
                          axis=1).astype(jnp.bfloat16)                 # (9, 4CP, 256)

    def pad_vec(b):
        return jnp.pad(b.astype(jnp.float32), (0, CP - b.shape[0]))

    bgb = jnp.concatenate([pad_vec(p0["b_gamma"]), pad_vec(p0["b_beta"]),
                           pad_vec(p1["b_gamma"]), pad_vec(p1["b_beta"])]).reshape(GP4, 1)

    wl = jnp.pad(kstack(params["w_last"], CP),
                 ((0, CP - C), (0, 0))).astype(jnp.bfloat16)           # (CP, 9*CP)

    # --- VMEM budget (scratch + double-buffered blocks + weights + large temporaries) ------
    est = (NH2 * Lp * 2 + CP * Lp * 2
           + 2 * (LP * Lp * 2) + 4 * (CP * Lc * 4)
           + Lc * 4 + 2 * Ls * 4
           + (NH2 * KSH + 9 * GP4 * NH2 + CP * KL) * 2 + (NH2 + GP4) * 4
           + NH2 * Lc * 4 + KSH * Lc * 2 + GP4 * Lc * 4
           + KL * Lc * 2 + 8 * CP * Lc * 4 + 3 * CP * Ls * 2)
    vmem_limit = int(min(64 << 20, max(32 << 20, 2 * est + (4 << 20))))

    const2 = lambda n: (0, 0)
    const3 = lambda n: (0, 0, 0)

    out_flat = pl.pallas_call(
        kernel,
        out_shape=jax.ShapeDtypeStruct((N, CP, Lc), jnp.float32),
        grid_spec=pltpu.PrefetchScalarGridSpec(
            num_scalar_prefetch=0,
            grid=(N,),
            in_specs=[
                pl.BlockSpec((1, LP, Lp), lambda n: (n, 0, 0)),   # seg (zero-guard layout)
                pl.BlockSpec((1, CP, Lc), lambda n: (n, 0, 0)),   # x (compute-span layout)
                pl.BlockSpec((1, Lc), const2),                    # pixel mask
                pl.BlockSpec((2, Ls), const2),                    # left/right guard masks
                pl.BlockSpec((NH2, KSH), const2),                 # fused mlp_shared W
                pl.BlockSpec((NH2, 1), const2),                   # fused mlp_shared b
                pl.BlockSpec((9, GP4, NH2), const3),              # fused gamma/beta W
                pl.BlockSpec((GP4, 1), const2),                   # fused gamma/beta b
                pl.BlockSpec((CP, KL), const2),                   # conv_last W (K-stacked)
            ],
            out_specs=pl.BlockSpec((1, CP, Lc), lambda n: (n, 0, 0)),
            scratch_shapes=[
                pltpu.VMEM((NH2, Lp), jnp.bfloat16),   # actv0|actv1 (zero-guard layout)
                pltpu.VMEM((CP, Lp), jnp.bfloat16),    # reflect-padded conv_last input
            ],
        ),
        compiler_params=pltpu.CompilerParams(
            dimension_semantics=("parallel",),
            vmem_limit_bytes=vmem_limit),
    )(seg_p, x_p, gmask, refl, wsh, bsh, wgb, bgb, wl)

    # drop the guard columns / padded channels (pure layout plumbing, no transpose pass)
    out_full = jnp.pad(out_flat, ((0, 0), (0, 0), (1, 1)))             # (N, CP, H*Wp)
    return out_full.reshape(N, CP, H, Wp)[:, :C, :, 1:1 + W]


# ------------------------- pure-JAX reference (PyTorch semantics) -------------------------

def _conv3x3(x, w, b=None, padding=((1, 1), (1, 1))):
    y = lax.conv_general_dilated(
        x, w.astype(jnp.float32), (1, 1), padding,
        dimension_numbers=("NCHW", "OIHW", "NCHW"),
        precision=lax.Precision.HIGHEST)
    if b is not None:
        y = y + b.astype(jnp.float32)[None, :, None, None]
    return y


def _spade_reference(x, seg, p):
    mean = jnp.mean(x, axis=(2, 3), keepdims=True)
    var = jnp.mean(jnp.square(x - mean), axis=(2, 3), keepdims=True)
    normalized = (x - mean) * lax.rsqrt(var + EPS)
    actv = jax.nn.relu(_conv3x3(seg, p["w_shared"], p["b_shared"]))
    gamma = _conv3x3(actv, p["w_gamma"], p["b_gamma"])
    beta = _conv3x3(actv, p["w_beta"], p["b_beta"])
    return normalized * (1.0 + gamma) + beta


def spade_resnet_block_reference(x, seg, params):
    x = x.astype(jnp.float32)
    seg = seg.astype(jnp.float32)
    x_s = x                                              # fin == fout -> identity shortcut
    dx = _spade_reference(x, seg, params["spade0"])
    dx = jnp.where(dx > 0, dx, LEAKY_SLOPE * dx)
    dx = _spade_reference(dx, seg, params["spade1"])
    dx = jnp.where(dx > 0, dx, LEAKY_SLOPE * dx)
    dxp = jnp.pad(dx, ((0, 0), (0, 0), (1, 1), (1, 1)), mode="reflect")
    dx = _conv3x3(dxp, params["w_last"], padding=((0, 0), (0, 0)))
    return x_s + dx


if __name__ == "__main__":
    key = jax.random.PRNGKey(0)
    keys = jax.random.split(key, 8)

    N, C, H, W = 2, 4, 16, 16          # fin = fout = 4 -> identity shortcut
    label_nc = 3

    x = jax.random.normal(keys[0], (N, C, H, W), jnp.float32)
    seg = jax.random.normal(keys[1], (N, label_nc, H, W), jnp.float32)

    def spade_params(k):
        ks = jax.random.split(k, 6)
        return {
            "w_shared": jax.random.normal(ks[0], (NHIDDEN, label_nc, 3, 3), jnp.float32) * 0.1,
            "b_shared": jax.random.normal(ks[1], (NHIDDEN,), jnp.float32) * 0.1,
            "w_gamma": jax.random.normal(ks[2], (C, NHIDDEN, 3, 3), jnp.float32) * 0.05,
            "b_gamma": jax.random.normal(ks[3], (C,), jnp.float32) * 0.1,
            "w_beta": jax.random.normal(ks[4], (C, NHIDDEN, 3, 3), jnp.float32) * 0.05,
            "b_beta": jax.random.normal(ks[5], (C,), jnp.float32) * 0.1,
        }

    params = {
        "spade0": spade_params(keys[2]),
        "spade1": spade_params(keys[3]),
        "w_last": jax.random.normal(keys[4], (C, C, 3, 3), jnp.float32) * 0.1,
    }

    out = jax.jit(spade_resnet_block_pallas)(x, seg, params)
    out = jax.block_until_ready(out)

    ref = spade_resnet_block_reference(x, seg, params)

    assert out.shape == (N, C, H, W), out.shape
    assert bool(jnp.all(jnp.isfinite(out)))
    # bf16 MXU operands (f32 accumulation) -> agreement with the pure-f32 reference is at the
    # ~1e-2 level; norm stats / affine / residual stay f32.
    max_err = float(jnp.max(jnp.abs(out - ref)))
    assert bool(jnp.allclose(out, ref, atol=5e-2, rtol=5e-2)), max_err

    print("KERNEL_OK")
</pallas_src>

<mosaic_0001>
module attributes {stable_mosaic.version = 11 : i64} {
  func.func @kernel(%arg0: i32, %arg1: memref<1x8x324xbf16, #tpu.memory_space<vmem>>, %arg2: memref<1x8x286xf32, #tpu.memory_space<vmem>>, %arg3: memref<1x286xf32, #tpu.memory_space<vmem>>, %arg4: memref<2x288xi32, #tpu.memory_space<vmem>>, %arg5: memref<256x72xbf16, #tpu.memory_space<vmem>>, %arg6: memref<256x1xf32, #tpu.memory_space<vmem>>, %arg7: memref<9x32x256xbf16, #tpu.memory_space<vmem>>, %arg8: memref<32x1xf32, #tpu.memory_space<vmem>>, %arg9: memref<8x72xbf16, #tpu.memory_space<vmem>>, %arg10: memref<1x8x286xf32, #tpu.memory_space<vmem>>, %arg11: memref<256x324xbf16, #tpu.memory_space<vmem>>, %arg12: memref<8x324xbf16, #tpu.memory_space<vmem>>) attributes {dimension_semantics = [#tpu.dimension_semantics<parallel>], iteration_bounds = array<i64: 2>, scalar_prefetch = 0 : i64, scratch_operands = 2 : i64, tpu.core_type = #tpu.core_type<tc>, window_params = [{transform_indices = @transform_0, window_bounds = array<i64: 1, 8, 324>}, {transform_indices = @transform_1, window_bounds = array<i64: 1, 8, 286>}, {pipeline_mode = #tpu.pipeline_mode<synchronous>, transform_indices = @transform_2, window_bounds = array<i64: 1, 286>}, {pipeline_mode = #tpu.pipeline_mode<synchronous>, transform_indices = @transform_3, window_bounds = array<i64: 2, 288>}, {pipeline_mode = #tpu.pipeline_mode<synchronous>, transform_indices = @transform_4, window_bounds = array<i64: 256, 72>}, {pipeline_mode = #tpu.pipeline_mode<synchronous>, transform_indices = @transform_5, window_bounds = array<i64: 256, 1>}, {pipeline_mode = #tpu.pipeline_mode<synchronous>, transform_indices = @transform_6, window_bounds = array<i64: 9, 32, 256>}, {pipeline_mode = #tpu.pipeline_mode<synchronous>, transform_indices = @transform_7, window_bounds = array<i64: 32, 1>}, {pipeline_mode = #tpu.pipeline_mode<synchronous>, transform_indices = @transform_8, window_bounds = array<i64: 8, 72>}, {transform_indices = @transform_9, window_bounds = array<i64: 1, 8, 286>}]} {
    %c0 = arith.constant 0 : index
    %c0_0 = arith.constant 0 : index
    %c0_1 = arith.constant 0 : index
    %0 = vector.load %arg2[%c0, %c0_0, %c0_1] : memref<1x8x286xf32, #tpu.memory_space<vmem>>, vector<1x8x286xf32>
    %1 = vector.shape_cast %0 : vector<1x8x286xf32> to vector<8x286xf32>
    %c0_2 = arith.constant 0 : index
    %c0_3 = arith.constant 0 : index
    %2 = vector.load %arg3[%c0_2, %c0_3] : memref<1x286xf32, #tpu.memory_space<vmem>>, vector<1x286xf32>
    %c0_4 = arith.constant 0 : index
    %c0_5 = arith.constant 0 : index
    %3 = vector.load %arg4[%c0_4, %c0_5] : memref<2x288xi32, #tpu.memory_space<vmem>>, vector<1x288xi32>
    %c0_i32 = arith.constant 0 : i32
    %4 = vector.broadcast %c0_i32 : i32 to vector<1x288xi32>
    %5 = arith.cmpi ne, %3, %4 : vector<1x288xi32>
    %c1 = arith.constant 1 : index
    %c0_6 = arith.constant 0 : index
    %6 = vector.load %arg4[%c1, %c0_6] : memref<2x288xi32, #tpu.memory_space<vmem>>, vector<1x288xi32>
    %c0_i32_7 = arith.constant 0 : i32
    %7 = vector.broadcast %c0_i32_7 : i32 to vector<1x288xi32>
    %8 = arith.cmpi ne, %6, %7 : vector<1x288xi32>
    %cst = arith.constant 0.000000e+00 : bf16
    %9 = vector.broadcast %cst : bf16 to vector<256x19xbf16>
    %c0_8 = arith.constant 0 : index
    %c0_9 = arith.constant 0 : index
    %10 = vector.load %arg11[%c0_8, %c0_9] : memref<256x324xbf16, #tpu.memory_space<vmem>>, vector<256x19xbf16>
    tpu.vector_store %arg11[%c0_8, %c0_9], %9 {strides = array<i32>} : memref<256x324xbf16, #tpu.memory_space<vmem>>, vector<256x19xbf16>,
    %c0_10 = arith.constant 0 : index
    %c305 = arith.constant 305 : index
    %11 = vector.load %arg11[%c0_10, %c305] : memref<256x324xbf16, #tpu.memory_space<vmem>>, vector<256x19xbf16>
    tpu.vector_store %arg11[%c0_10, %c305], %9 {strides = array<i32>} : memref<256x324xbf16, #tpu.memory_space<vmem>>, vector<256x19xbf16>,
    %c0_11 = arith.constant 0 : index
    %c0_12 = arith.constant 0 : index
    %c0_13 = arith.constant 0 : index
    %12 = vector.load %arg1[%c0_11, %c0_12, %c0_13] : memref<1x8x324xbf16, #tpu.memory_space<vmem>>, vector<1x8x286xbf16>
    %13 = vector.shape_cast %12 : vector<1x8x286xbf16> to vector<8x286xbf16>
    %c0_14 = arith.constant 0 : index
    %c0_15 = arith.constant 0 : index
    %c1_16 = arith.constant 1 : index
    %14 = vector.load %arg1[%c0_14, %c0_15, %c1_16] : memref<1x8x324xbf16, #tpu.memory_space<vmem>>, vector<1x8x286xbf16>
    %15 = vector.shape_cast %14 : vector<1x8x286xbf16> to vector<8x286xbf16>
    %c0_17 = arith.constant 0 : index
    %c0_18 = arith.constant 0 : index
    %c2 = arith.constant 2 : index
    %16 = vector.load %arg1[%c0_17, %c0_18, %c2] : memref<1x8x324xbf16, #tpu.memory_space<vmem>>, vector<1x8x286xbf16>
    %17 = vector.shape_cast %16 : vector<1x8x286xbf16> to vector<8x286xbf16>
    %c0_19 = arith.constant 0 : index
    %c0_20 = arith.constant 0 : index
    %c18 = arith.constant 18 : index
    %18 = vector.load %arg1[%c0_19, %c0_20, %c18] : memref<1x8x324xbf16, #tpu.memory_space<vmem>>, vector<1x8x286xbf16>
    %19 = vector.shape_cast %18 : vector<1x8x286xbf16> to vector<8x286xbf16>
    %c0_21 = arith.constant 0 : index
    %c0_22 = arith.constant 0 : index
    %c19 = arith.constant 19 : index
    %20 = vector.load %arg1[%c0_21, %c0_22, %c19] : memref<1x8x324xbf16, #tpu.memory_space<vmem>>, vector<1x8x286xbf16>
    %21 = vector.shape_cast %20 : vector<1x8x286xbf16> to vector<8x286xbf16>
    %c0_23 = arith.constant 0 : index
    %c0_24 = arith.constant 0 : index
    %c20 = arith.constant 20 : index
    %22 = vector.load %arg1[%c0_23, %c0_24, %c20] : memref<1x8x324xbf16, #tpu.memory_space<vmem>>, vector<1x8x286xbf16>
    %23 = vector.shape_cast %22 : vector<1x8x286xbf16> to vector<8x286xbf16>
    %c0_25 = arith.constant 0 : index
    %c0_26 = arith.constant 0 : index
    %c36 = arith.constant 36 : index
    %24 = vector.load %arg1[%c0_25, %c0_26, %c36] : memref<1x8x324xbf16, #tpu.memory_space<vmem>>, vector<1x8x286xbf16>
    %25 = vector.shape_cast %24 : vector<1x8x286xbf16> to vector<8x286xbf16>
    %c0_27 = arith.constant 0 : index
    %c0_28 = arith.constant 0 : index
    %c37 = arith.constant 37 : index
    %26 = vector.load %arg1[%c0_27, %c0_28, %c37] : memref<1x8x324xbf16, #tpu.memory_space<vmem>>, vector<1x8x286xbf16>
    %27 = vector.shape_cast %26 : vector<1x8x286xbf16> to vector<8x286xbf16>
    %c0_29 = arith.constant 0 : index
    %c0_30 = arith.constant 0 : index
    %c38 = arith.constant 38 : index
    %28 = vector.load %arg1[%c0_29, %c0_30, %c38] : memref<1x8x324xbf16, #tpu.memory_space<vmem>>, vector<1x8x286xbf16>
    %29 = vector.shape_cast %28 : vector<1x8x286xbf16> to vector<8x286xbf16>
    %30 = tpu.concatenate %13, %15, %17, %19, %21, %23, %25, %27, %29 in 0 : vector<8x286xbf16>, vector<8x286xbf16>, vector<8x286xbf16>, vector<8x286xbf16>, vector<8x286xbf16>, vector<8x286xbf16>, vector<8x286xbf16>, vector<8x286xbf16>, vector<8x286xbf16> -> vector<72x286xbf16>
    %c0_31 = arith.constant 0 : index
    %c0_32 = arith.constant 0 : index
    %31 = vector.load %arg5[%c0_31, %c0_32] : memref<256x72xbf16, #tpu.memory_space<vmem>>, vector<256x72xbf16>
    %cst_33 = arith.constant dense<0.000000e+00> : vector<256x286xf32>
    %32 = tpu.matmul %31, %30, %cst_33 {dimension_numbers = #tpu.dot_dimension_numbers<[1], [0], [0], [1], [0, 0, 1, 1], [], []>} : vector<256x72xbf16>, vector<72x286xbf16>, vector<256x286xf32> -> vector<256x286xf32>
    %c0_34 = arith.constant 0 : index
    %c0_35 = arith.constant 0 : index
    %33 = vector.load %arg6[%c0_34, %c0_35] : memref<256x1xf32, #tpu.memory_space<vmem>>, vector<256x1xf32>
    %34 = vector.broadcast %33 : vector<256x1xf32> to vector<256x286xf32>
    %35 = arith.addf %32, %34 : vector<256x286xf32>
    %cst_36 = arith.constant 0.000000e+00 : f32
    %36 = vector.broadcast %cst_36 : f32 to vector<256x286xf32>
    %37 = arith.maximumf %35, %36 : vector<256x286xf32>
    %38 = vector.broadcast %2 : vector<1x286xf32> to vector<256x286xf32>
    %39 = arith.mulf %37, %38 : vector<256x286xf32>
    %40 = arith.truncf %39 : vector<256x286xf32> to vector<256x286xbf16>
    %c0_37 = arith.constant 0 : index
    %c19_38 = arith.constant 19 : index
    %41 = vector.load %arg11[%c0_37, %c19_38] : memref<256x324xbf16, #tpu.memory_space<vmem>>, vector<256x286xbf16>
    tpu.vector_store %arg11[%c0_37, %c19_38], %40 {strides = array<i32>} : memref<256x324xbf16, #tpu.memory_space<vmem>>, vector<256x286xbf16>,
    %c0_39 = arith.constant 0 : index
    %c0_40 = arith.constant 0 : index
    %42 = vector.load %arg11[%c0_39, %c0_40] : memref<256x324xbf16, #tpu.memory_space<vmem>>, vector<256x286xbf16>
    %c0_41 = arith.constant 0 : index
    %c0_42 = arith.constant 0 : index
    %c0_43 = arith.constant 0 : index
    %43 = vector.load %arg7[%c0_41, %c0_42, %c0_43] : memref<9x32x256xbf16, #tpu.memory_space<vmem>>, vector<1x32x256xbf16>
    %44 = vector.shape_cast %43 : vector<1x32x256xbf16> to vector<32x256xbf16>
    %cst_44 = arith.constant dense<0.000000e+00> : vector<32x286xf32>
    %45 = tpu.matmul %44, %42, %cst_44 {dimension_numbers = #tpu.dot_dimension_numbers<[1], [0], [0], [1], [0, 0, 1, 1], [], []>} : vector<32x256xbf16>, vector<256x286xbf16>, vector<32x286xf32> -> vector<32x286xf32>
    %c0_45 = arith.constant 0 : index
    %c1_46 = arith.constant 1 : index
    %46 = vector.load %arg11[%c0_45, %c1_46] : memref<256x324xbf16, #tpu.memory_space<vmem>>, vector<256x286xbf16>
    %c1_47 = arith.constant 1 : index
    %c0_48 = arith.constant 0 : index
    %c0_49 = arith.constant 0 : index
    %47 = vector.load %arg7[%c1_47, %c0_48, %c0_49] : memref<9x32x256xbf16, #tpu.memory_space<vmem>>, vector<1x32x256xbf16>
    %48 = vector.shape_cast %47 : vector<1x32x256xbf16> to vector<32x256xbf16>
    %cst_50 = arith.constant dense<0.000000e+00> : vector<32x286xf32>
    %49 = tpu.matmul %48, %46, %cst_50 {dimension_numbers = #tpu.dot_dimension_numbers<[1], [0], [0], [1], [0, 0, 1, 1], [], []>} : vector<32x256xbf16>, vector<256x286xbf16>, vector<32x286xf32> -> vector<32x286xf32>
    %50 = arith.addf %45, %49 : vector<32x286xf32>
    %c0_51 = arith.constant 0 : index
    %c2_52 = arith.constant 2 : index
    %51 = vector.load %arg11[%c0_51, %c2_52] : memref<256x324xbf16, #tpu.memory_space<vmem>>, vector<256x286xbf16>
    %c2_53 = arith.constant 2 : index
    %c0_54 = arith.constant 0 : index
    %c0_55 = arith.constant 0 : index
    %52 = vector.load %arg7[%c2_53, %c0_54, %c0_55] : memref<9x32x256xbf16, #tpu.memory_space<vmem>>, vector<1x32x256xbf16>
    %53 = vector.shape_cast %52 : vector<1x32x256xbf16> to vector<32x256xbf16>
    %cst_56 = arith.constant dense<0.000000e+00> : vector<32x286xf32>
    %54 = tpu.matmul %53, %51, %cst_56 {dimension_numbers = #tpu.dot_dimension_numbers<[1], [0], [0], [1], [0, 0, 1, 1], [], []>} : vector<32x256xbf16>, vector<256x286xbf16>, vector<32x286xf32> -> vector<32x286xf32>
    %55 = arith.addf %50, %54 : vector<32x286xf32>
    %c0_57 = arith.constant 0 : index
    %c18_58 = arith.constant 18 : index
    %56 = vector.load %arg11[%c0_57, %c18_58] : memref<256x324xbf16, #tpu.memory_space<vmem>>, vector<256x286xbf16>
    %c3 = arith.constant 3 : index
    %c0_59 = arith.constant 0 : index
    %c0_60 = arith.constant 0 : index
    %57 = vector.load %arg7[%c3, %c0_59, %c0_60] : memref<9x32x256xbf16, #tpu.memory_space<vmem>>, vector<1x32x256xbf16>
    %58 = vector.shape_cast %57 : vector<1x32x256xbf16> to vector<32x256xbf16>
    %cst_61 = arith.constant dense<0.000000e+00> : vector<32x286xf32>
    %59 = tpu.matmul %58, %56, %cst_61 {dimension_numbers = #tpu.dot_dimension_numbers<[1], [0], [0], [1], [0, 0, 1, 1], [], []>} : vector<32x256xbf16>, vector<256x286xbf16>, vector<32x286xf32> -> vector<32x286xf32>
    %60 = arith.addf %55, %59 : vector<32x286xf32>
    %c0_62 = arith.constant 0 : index
    %c19_63 = arith.constant 19 : index
    %61 = vector.load %arg11[%c0_62, %c19_63] : memref<256x324xbf16, #tpu.memory_space<vmem>>, vector<256x286xbf16>
    %c4 = arith.constant 4 : index
    %c0_64 = arith.constant 0 : index
    %c0_65 = arith.constant 0 : index
    %62 = vector.load %arg7[%c4, %c0_64, %c0_65] : memref<9x32x256xbf16, #tpu.memory_space<vmem>>, vector<1x32x256xbf16>
    %63 = vector.shape_cast %62 : vector<1x32x256xbf16> to vector<32x256xbf16>
    %cst_66 = arith.constant dense<0.000000e+00> : vector<32x286xf32>
    %64 = tpu.matmul %63, %61, %cst_66 {dimension_numbers = #tpu.dot_dimension_numbers<[1], [0], [0], [1], [0, 0, 1, 1], [], []>} : vector<32x256xbf16>, vector<256x286xbf16>, vector<32x286xf32> -> vector<32x286xf32>
    %65 = arith.addf %60, %64 : vector<32x286xf32>
    %c0_67 = arith.constant 0 : index
    %c20_68 = arith.constant 20 : index
    %66 = vector.load %arg11[%c0_67, %c20_68] : memref<256x324xbf16, #tpu.memory_space<vmem>>, vector<256x286xbf16>
    %c5 = arith.constant 5 : index
    %c0_69 = arith.constant 0 : index
    %c0_70 = arith.constant 0 : index
    %67 = vector.load %arg7[%c5, %c0_69, %c0_70] : memref<9x32x256xbf16, #tpu.memory_space<vmem>>, vector<1x32x256xbf16>
    %68 = vector.shape_cast %67 : vector<1x32x256xbf16> to vector<32x256xbf16>
    %cst_71 = arith.constant dense<0.000000e+00> : vector<32x286xf32>
    %69 = tpu.matmul %68, %66, %cst_71 {dimension_numbers = #tpu.dot_dimension_numbers<[1], [0], [0], [1], [0, 0, 1, 1], [], []>} : vector<32x256xbf16>, vector<256x286xbf16>, vector<32x286xf32> -> vector<32x286xf32>
    %70 = arith.addf %65, %69 : vector<32x286xf32>
    %c0_72 = arith.constant 0 : index
    %c36_73 = arith.constant 36 : index
    %71 = vector.load %arg11[%c0_72, %c36_73] : memref<256x324xbf16, #tpu.memory_space<vmem>>, vector<256x286xbf16>
    %c6 = arith.constant 6 : index
    %c0_74 = arith.constant 0 : index
    %c0_75 = arith.constant 0 : index
    %72 = vector.load %arg7[%c6, %c0_74, %c0_75] : memref<9x32x256xbf16, #tpu.memory_space<vmem>>, vector<1x32x256xbf16>
    %73 = vector.shape_cast %72 : vector<1x32x256xbf16> to vector<32x256xbf16>
    %cst_76 = arith.constant dense<0.000000e+00> : vector<32x286xf32>
    %74 = tpu.matmul %73, %71, %cst_76 {dimension_numbers = #tpu.dot_dimension_numbers<[1], [0], [0], [1], [0, 0, 1, 1], [], []>} : vector<32x256xbf16>, vector<256x286xbf16>, vector<32x286xf32> -> vector<32x286xf32>
    %75 = arith.addf %70, %74 : vector<32x286xf32>
    %c0_77 = arith.constant 0 : index
    %c37_78 = arith.constant 37 : index
    %76 = vector.load %arg11[%c0_77, %c37_78] : memref<256x324xbf16, #tpu.memory_space<vmem>>, vector<256x286xbf16>
    %c7 = arith.constant 7 : index
    %c0_79 = arith.constant 0 : index
    %c0_80 = arith.constant 0 : index
    %77 = vector.load %arg7[%c7, %c0_79, %c0_80] : memref<9x32x256xbf16, #tpu.memory_space<vmem>>, vector<1x32x256xbf16>
    %78 = vector.shape_cast %77 : vector<1x32x256xbf16> to vector<32x256xbf16>
    %cst_81 = arith.constant dense<0.000000e+00> : vector<32x286xf32>
    %79 = tpu.matmul %78, %76, %cst_81 {dimension_numbers = #tpu.dot_dimension_numbers<[1], [0], [0], [1], [0, 0, 1, 1], [], []>} : vector<32x256xbf16>, vector<256x286xbf16>, vector<32x286xf32> -> vector<32x286xf32>
    %80 = arith.addf %75, %79 : vector<32x286xf32>
    %c0_82 = arith.constant 0 : index
    %c38_83 = arith.constant 38 : index
    %81 = vector.load %arg11[%c0_82, %c38_83] : memref<256x324xbf16, #tpu.memory_space<vmem>>, vector<256x286xbf16>
    %c8 = arith.constant 8 : index
    %c0_84 = arith.constant 0 : index
    %c0_85 = arith.constant 0 : index
    %82 = vector.load %arg7[%c8, %c0_84, %c0_85] : memref<9x32x256xbf16, #tpu.memory_space<vmem>>, vector<1x32x256xbf16>
    %83 = vector.shape_cast %82 : vector<1x32x256xbf16> to vector<32x256xbf16>
    %cst_86 = arith.constant dense<0.000000e+00> : vector<32x286xf32>
    %84 = tpu.matmul %83, %81, %cst_86 {dimension_numbers = #tpu.dot_dimension_numbers<[1], [0], [0], [1], [0, 0, 1, 1], [], []>} : vector<32x256xbf16>, vector<256x286xbf16>, vector<32x286xf32> -> vector<32x286xf32>
    %85 = arith.addf %80, %84 : vector<32x286xf32>
    %c0_87 = arith.constant 0 : index
    %c0_88 = arith.constant 0 : index
    %86 = vector.load %arg8[%c0_87, %c0_88] : memref<32x1xf32, #tpu.memory_space<vmem>>, vector<32x1xf32>
    %87 = vector.broadcast %86 : vector<32x1xf32> to vector<32x286xf32>
    %88 = arith.addf %85, %87 : vector<32x286xf32>
    %89 = vector.extract_strided_slice %88 {offsets = [0, 0], sizes = [8, 286], strides = [1, 1]} : vector<32x286xf32> to vector<8x286xf32>
    %90 = vector.extract_strided_slice %88 {offsets = [8, 0], sizes = [8, 286], strides = [1, 1]} : vector<32x286xf32> to vector<8x286xf32>
    %91 = vector.extract_strided_slice %88 {offsets = [16, 0], sizes = [8, 286], strides = [1, 1]} : vector<32x286xf32> to vector<8x286xf32>
    %92 = vector.extract_strided_slice %88 {offsets = [24, 0], sizes = [8, 286], strides = [1, 1]} : vector<32x286xf32> to vector<8x286xf32>
    %cst_89 = arith.constant dense<0.000000e+00> : vector<8xf32>
    %93 = vector.multi_reduction <add>, %1, %cst_89 [1] : vector<8x286xf32> to vector<8xf32>
    %94 = vector.shape_cast %93 : vector<8xf32> to vector<8x1xf32>
    %cst_90 = arith.constant 3.906250e-03 : f32
    %95 = vector.broadcast %cst_90 : f32 to vector<8x1xf32>
    %96 = arith.mulf %94, %95 : vector<8x1xf32>
    %97 = arith.mulf %1, %1 : vector<8x286xf32>
    %cst_91 = arith.constant dense<0.000000e+00> : vector<8xf32>
    %98 = vector.multi_reduction <add>, %97, %cst_91 [1] : vector<8x286xf32> to vector<8xf32>
    %99 = vector.shape_cast %98 : vector<8xf32> to vector<8x1xf32>
    %cst_92 = arith.constant 3.906250e-03 : f32
    %100 = vector.broadcast %cst_92 : f32 to vector<8x1xf32>
    %101 = arith.mulf %99, %100 : vector<8x1xf32>
    %102 = arith.mulf %96, %96 : vector<8x1xf32>
    %103 = arith.subf %101, %102 : vector<8x1xf32>
    %104 = vector.broadcast %96 : vector<8x1xf32> to vector<8x286xf32>
    %105 = arith.subf %1, %104 : vector<8x286xf32>
    %cst_93 = arith.constant 9.99999974E-6 : f32
    %106 = vector.broadcast %cst_93 : f32 to vector<8x1xf32>
    %107 = arith.addf %103, %106 : vector<8x1xf32>
    %108 = math.rsqrt %107 : vector<8x1xf32>
    %109 = vector.broadcast %108 : vector<8x1xf32> to vector<8x286xf32>
    %110 = arith.mulf %105, %109 : vector<8x286xf32>
    %cst_94 = arith.constant 1.000000e+00 : f32
    %111 = vector.broadcast %cst_94 : f32 to vector<8x286xf32>
    %112 = arith.addf %111, %89 : vector<8x286xf32>
    %113 = arith.mulf %110, %112 : vector<8x286xf32>
    %114 = arith.addf %113, %90 : vector<8x286xf32>
    %cst_95 = arith.constant 0.000000e+00 : f32
    %115 = vector.broadcast %cst_95 : f32 to vector<8x286xf32>
    %116 = arith.cmpf ogt, %114, %115 : vector<8x286xf32>
    %cst_96 = arith.constant 2.000000e-01 : f32
    %117 = vector.broadcast %cst_96 : f32 to vector<8x286xf32>
    %118 = arith.mulf %117, %114 : vector<8x286xf32>
    %119 = arith.select %116, %114, %118 : vector<8x286xi1>, vector<8x286xf32>
    %120 = vector.broadcast %2 : vector<1x286xf32> to vector<8x286xf32>
    %121 = arith.mulf %119, %120 : vector<8x286xf32>
    %cst_97 = arith.constant dense<0.000000e+00> : vector<8xf32>
    %122 = vector.multi_reduction <add>, %121, %cst_97 [1] : vector<8x286xf32> to vector<8xf32>
    %123 = vector.shape_cast %122 : vector<8xf32> to vector<8x1xf32>
    %cst_98 = arith.constant 3.906250e-03 : f32
    %124 = vector.broadcast %cst_98 : f32 to vector<8x1xf32>
    %125 = arith.mulf %123, %124 : vector<8x1xf32>
    %126 = arith.mulf %121, %121 : vector<8x286xf32>
    %cst_99 = arith.constant dense<0.000000e+00> : vector<8xf32>
    %127 = vector.multi_reduction <add>, %126, %cst_99 [1] : vector<8x286xf32> to vector<8xf32>
    %128 = vector.shape_cast %127 : vector<8xf32> to vector<8x1xf32>
    %cst_100 = arith.constant 3.906250e-03 : f32
    %129 = vector.broadcast %cst_100 : f32 to vector<8x1xf32>
    %130 = arith.mulf %128, %129 : vector<8x1xf32>
    %131 = arith.mulf %125, %125 : vector<8x1xf32>
    %132 = arith.subf %130, %131 : vector<8x1xf32>
    %133 = vector.broadcast %125 : vector<8x1xf32> to vector<8x286xf32>
    %134 = arith.subf %121, %133 : vector<8x286xf32>
    %cst_101 = arith.constant 9.99999974E-6 : f32
    %135 = vector.broadcast %cst_101 : f32 to vector<8x1xf32>
    %136 = arith.addf %132, %135 : vector<8x1xf32>
    %137 = math.rsqrt %136 : vector<8x1xf32>
    %138 = vector.broadcast %137 : vector<8x1xf32> to vector<8x286xf32>
    %139 = arith.mulf %134, %138 : vector<8x286xf32>
    %cst_102 = arith.constant 1.000000e+00 : f32
    %140 = vector.broadcast %cst_102 : f32 to vector<8x286xf32>
    %141 = arith.addf %140, %91 : vector<8x286xf32>
    %142 = arith.mulf %139, %141 : vector<8x286xf32>
    %143 = arith.addf %142, %92 : vector<8x286xf32>
    %cst_103 = arith.constant 0.000000e+00 : f32
    %144 = vector.broadcast %cst_103 : f32 to vector<8x286xf32>
    %145 = arith.cmpf ogt, %143, %144 : vector<8x286xf32>
    %cst_104 = arith.constant 2.000000e-01 : f32
    %146 = vector.broadcast %cst_104 : f32 to vector<8x286xf32>
    %147 = arith.mulf %146, %143 : vector<8x286xf32>
    %148 = arith.select %145, %143, %147 : vector<8x286xi1>, vector<8x286xf32>
    %149 = arith.truncf %148 : vector<8x286xf32> to vector<8x286xbf16>
    %c0_105 = arith.constant 0 : index
    %c19_106 = arith.constant 19 : index
    %150 = vector.load %arg12[%c0_105, %c19_106] : memref<8x324xbf16, #tpu.memory_space<vmem>>, vector<8x286xbf16>
    tpu.vector_store %arg12[%c0_105, %c19_106], %149 {strides = array<i32>} : memref<8x324xbf16, #tpu.memory_space<vmem>>, vector<8x286xbf16>,
    %c0_107 = arith.constant 0 : index
    %c18_108 = arith.constant 18 : index
    %151 = vector.load %arg12[%c0_107, %c18_108] : memref<8x324xbf16, #tpu.memory_space<vmem>>, vector<8x288xbf16>
    %c0_109 = arith.constant 0 : index
    %c20_110 = arith.constant 20 : index
    %152 = vector.load %arg12[%c0_109, %c20_110] : memref<8x324xbf16, #tpu.memory_space<vmem>>, vector<8x288xbf16>
    %c0_111 = arith.constant 0 : index
    %c16 = arith.constant 16 : index
    %153 = vector.load %arg12[%c0_111, %c16] : memref<8x324xbf16, #tpu.memory_space<vmem>>, vector<8x288xbf16>
    %154 = vector.shape_cast %5 : vector<1x288xi1> to vector<1x288xi1>
    %155 = vector.broadcast %154 : vector<1x288xi1> to vector<8x288xi1>
    %156 = arith.select %155, %152, %151 : vector<8x288xi1>, vector<8x288xbf16>
    %157 = vector.shape_cast %8 : vector<1x288xi1> to vector<1x288xi1>
    %158 = vector.broadcast %157 : vector<1x288xi1> to vector<8x288xi1>
    %159 = arith.select %158, %153, %156 : vector<8x288xi1>, vector<8x288xbf16>
    %c0_112 = arith.constant 0 : index
    %c18_113 = arith.constant 18 : index
    %160 = vector.load %arg12[%c0_112, %c18_113] : memref<8x324xbf16, #tpu.memory_space<vmem>>, vector<8x288xbf16>
    tpu.vector_store %arg12[%c0_112, %c18_113], %159 {strides = array<i32>} : memref<8x324xbf16, #tpu.memory_space<vmem>>, vector<8x288xbf16>,
    %c0_114 = arith.constant 0 : index
    %c36_115 = arith.constant 36 : index
    %161 = vector.load %arg12[%c0_114, %c36_115] : memref<8x324xbf16, #tpu.memory_space<vmem>>, vector<8x18xbf16>
    %c0_116 = arith.constant 0 : index
    %c0_117 = arith.constant 0 : index
    %162 = vector.load %arg12[%c0_116, %c0_117] : memref<8x324xbf16, #tpu.memory_space<vmem>>, vector<8x18xbf16>
    tpu.vector_store %arg12[%c0_116, %c0_117], %161 {strides = array<i32>} : memref<8x324xbf16, #tpu.memory_space<vmem>>, vector<8x18xbf16>,
    %c0_118 = arith.constant 0 : index
    %c270 = arith.constant 270 : index
    %163 = vector.load %arg12[%c0_118, %c270] : memref<8x324xbf16, #tpu.memory_space<vmem>>, vector<8x18xbf16>
    %c0_119 = arith.constant 0 : index
    %c306 = arith.constant 306 : index
    %164 = vector.load %arg12[%c0_119, %c306] : memref<8x324xbf16, #tpu.memory_space<vmem>>, vector<8x18xbf16>
    tpu.vector_store %arg12[%c0_119, %c306], %163 {strides = array<i32>} : memref<8x324xbf16, #tpu.memory_space<vmem>>, vector<8x18xbf16>,
    %c0_120 = arith.constant 0 : index
    %c0_121 = arith.constant 0 : index
    %165 = vector.load %arg12[%c0_120, %c0_121] : memref<8x324xbf16, #tpu.memory_space<vmem>>, vector<8x286xbf16>
    %c0_122 = arith.constant 0 : index
    %c1_123 = arith.constant 1 : index
    %166 = vector.load %arg12[%c0_122, %c1_123] : memref<8x324xbf16, #tpu.memory_space<vmem>>, vector<8x286xbf16>
    %c0_124 = arith.constant 0 : index
    %c2_125 = arith.constant 2 : index
    %167 = vector.load %arg12[%c0_124, %c2_125] : memref<8x324xbf16, #tpu.memory_space<vmem>>, vector<8x286xbf16>
    %c0_126 = arith.constant 0 : index
    %c18_127 = arith.constant 18 : index
    %168 = vector.load %arg12[%c0_126, %c18_127] : memref<8x324xbf16, #tpu.memory_space<vmem>>, vector<8x286xbf16>
    %c0_128 = arith.constant 0 : index
    %c19_129 = arith.constant 19 : index
    %169 = vector.load %arg12[%c0_128, %c19_129] : memref<8x324xbf16, #tpu.memory_space<vmem>>, vector<8x286xbf16>
    %c0_130 = arith.constant 0 : index
    %c20_131 = arith.constant 20 : index
    %170 = vector.load %arg12[%c0_130, %c20_131] : memref<8x324xbf16, #tpu.memory_space<vmem>>, vector<8x286xbf16>
    %c0_132 = arith.constant 0 : index
    %c36_133 = arith.constant 36 : index
    %171 = vector.load %arg12[%c0_132, %c36_133] : memref<8x324xbf16, #tpu.memory_space<vmem>>, vector<8x286xbf16>
    %c0_134 = arith.constant 0 : index
    %c37_135 = arith.constant 37 : index
    %172 = vector.load %arg12[%c0_134, %c37_135] : memref<8x324xbf16, #tpu.memory_space<vmem>>, vector<8x286xbf16>
    %c0_136 = arith.constant 0 : index
    %c38_137 = arith.constant 38 : index
    %173 = vector.load %arg12[%c0_136, %c38_137] : memref<8x324xbf16, #tpu.memory_space<vmem>>, vector<8x286xbf16>
    %174 = tpu.concatenate %165, %166, %167, %168, %169, %170, %171, %172, %173 in 0 : vector<8x286xbf16>, vector<8x286xbf16>, vector<8x286xbf16>, vector<8x286xbf16>, vector<8x286xbf16>, vector<8x286xbf16>, vector<8x286xbf16>, vector<8x286xbf16>, vector<8x286xbf16> -> vector<72x286xbf16>
    %c0_138 = arith.constant 0 : index
    %c0_139 = arith.constant 0 : index
    %175 = vector.load %arg9[%c0_138, %c0_139] : memref<8x72xbf16, #tpu.memory_space<vmem>>, vector<8x72xbf16>
    %cst_140 = arith.constant dense<0.000000e+00> : vector<8x286xf32>
    %176 = tpu.matmul %175, %174, %cst_140 {dimension_numbers = #tpu.dot_dimension_numbers<[1], [0], [0], [1], [0, 0, 1, 1], [], []>} : vector<8x72xbf16>, vector<72x286xbf16>, vector<8x286xf32> -> vector<8x286xf32>
    %177 = arith.addf %1, %176 : vector<8x286xf32>
    %c0_141 = arith.constant 0 : index
    %c0_142 = arith.constant 0 : index
    %c0_143 = arith.constant 0 : index
    %178 = vector.load %arg10[%c0_141, %c0_142, %c0_143] : memref<1x8x286xf32, #tpu.memory_space<vmem>>, vector<1x8x286xf32>
    %179 = vector.shape_cast %178 : vector<1x8x286xf32> to vector<8x286xf32>
    %180 = vector.shape_cast %177 : vector<8x286xf32> to vector<1x8x286xf32>
    tpu.vector_store %arg10[%c0_141, %c0_142, %c0_143], %180 {strides = array<i32>} : memref<1x8x286xf32, #tpu.memory_space<vmem>>, vector<1x8x286xf32>,
    return
  }
  func.func @transform_0(%arg0: i32) -> (i32, i32, i32) {
    %c0_i32 = arith.constant 0 : i32
    %c0_i32_0 = arith.constant 0 : i32
    %c0_i32_1 = arith.constant 0 : i32
    return %arg0, %c0_i32, %c0_i32_0 : i32, i32, i32
  }
  func.func @transform_1(%arg0: i32) -> (i32, i32, i32) {
    %c0_i32 = arith.constant 0 : i32
    %c0_i32_0 = arith.constant 0 : i32
    %c0_i32_1 = arith.constant 0 : i32
    return %arg0, %c0_i32, %c0_i32_0 : i32, i32, i32
  }
  func.func @transform_2(%arg0: i32) -> (i32, i32) {
    %c0_i32 = arith.constant 0 : i32
    %c0_i32_0 = arith.constant 0 : i32
    %c0_i32_1 = arith.constant 0 : i32
    return %c0_i32, %c0_i32_0 : i32, i32
  }
  func.func @transform_3(%arg0: i32) -> (i32, i32) {
    %c0_i32 = arith.constant 0 : i32
    %c0_i32_0 = arith.constant 0 : i32
    %c0_i32_1 = arith.constant 0 : i32
    return %c0_i32, %c0_i32_0 : i32, i32
  }
  func.func @transform_4(%arg0: i32) -> (i32, i32) {
    %c0_i32 = arith.constant 0 : i32
    %c0_i32_0 = arith.constant 0 : i32
    %c0_i32_1 = arith.constant 0 : i32
    return %c0_i32, %c0_i32_0 : i32, i32
  }
  func.func @transform_5(%arg0: i32) -> (i32, i32) {
    %c0_i32 = arith.constant 0 : i32
    %c0_i32_0 = arith.constant 0 : i32
    %c0_i32_1 = arith.constant 0 : i32
    return %c0_i32, %c0_i32_0 : i32, i32
  }
  func.func @transform_6(%arg0: i32) -> (i32, i32, i32) {
    %c0_i32 = arith.constant 0 : i32
    %c0_i32_0 = arith.constant 0 : i32
    %c0_i32_1 = arith.constant 0 : i32
    %c0_i32_2 = arith.constant 0 : i32
    return %c0_i32, %c0_i32_0, %c0_i32_1 : i32, i32, i32
  }
  func.func @transform_7(%arg0: i32) -> (i32, i32) {
    %c0_i32 = arith.constant 0 : i32
    %c0_i32_0 = arith.constant 0 : i32
    %c0_i32_1 = arith.constant 0 : i32
    return %c0_i32, %c0_i32_0 : i32, i32
  }
  func.func @transform_8(%arg0: i32) -> (i32, i32) {
    %c0_i32 = arith.constant 0 : i32
    %c0_i32_0 = arith.constant 0 : i32
    %c0_i32_1 = arith.constant 0 : i32
    return %c0_i32, %c0_i32_0 : i32, i32
  }
  func.func @transform_9(%arg0: i32) -> (i32, i32, i32) {
    %c0_i32 = arith.constant 0 : i32
    %c0_i32_0 = arith.constant 0 : i32
    %c0_i32_1 = arith.constant 0 : i32
    return %arg0, %c0_i32, %c0_i32_0 : i32, i32, i32
  }
}

</mosaic_0001>

<llo_original>
// kernel: spade_resnet_block_pallas.1
$region0: #{spade_resnet_block_pallas.1}
  #allocation0 [shape = 'u32[]', space=smem, size = 0x4, offset = 0x4, fixed_abs, tag = 'smem constant byte address 0x4 - core index']
  #allocation1 [shape = 'u32[144,128]{1,0:T(1,128)}', space=vmem, size = 0x12000, scoped, tag = 'internal scratch']
  #allocation2 [shape = 'bf16[256,324]{1,0:T(16,128)(2,1)}', space=vmem, size = 0x30000, scoped, tag = 'scratch operand']
  #allocation3 [shape = 'bf16[8,324]{1,0:T(8,128)(2,1)}', space=vmem, size = 0x1800, scoped, tag = 'scratch operand']
  %s0 = inlined_call_operand.vmem [shape: bf16[2,8,324], index: 0, kind: input, shape index: {}]
  %s1 = inlined_call_operand.vmem [shape: f32[2,8,286], index: 1, kind: input, shape index: {}]
  %s2 = inlined_call_operand.vmem [shape: f32[1,286], index: 2, kind: input, shape index: {}]
  %s3 = inlined_call_operand.vmem [shape: s32[2,288], index: 3, kind: input, shape index: {}]
  %s4 = inlined_call_operand.vmem [shape: bf16[256,72], index: 4, kind: input, shape index: {}]
  %s5 = inlined_call_operand.vmem [shape: f32[256,1], index: 5, kind: input, shape index: {}]
  %s6 = inlined_call_operand.vmem [shape: bf16[9,32,256], index: 6, kind: input, shape index: {}]
  %s7 = inlined_call_operand.vmem [shape: f32[32,1], index: 7, kind: input, shape index: {}]
  %s8 = inlined_call_operand.vmem [shape: bf16[8,72], index: 8, kind: input, shape index: {}]
  %s9 = inlined_call_operand.vmem [shape: f32[2,8,286], index: 9, kind: output, shape index: {}]
  %s10 = sld [smem:[#allocation0]]
  $region69: #{spade_resnet_block_pallas.1} parent=0
    _
  %s12 = ssub.s32 1, %s10
  %s13 = scalar_select 0, %s12, %s10
  loop: start=0, step=1, limit=4
  $region2: #{spade_resnet_block_pallas.1} parent=0 // loop_pre_header
    _
  $region3: #{spade_resnet_block_pallas.1} parent=0 // loop_header
    %s15 = sphi 0, %s19
    %p16 = scmp.ge.s32.totalorder %s15, 4
    %s25 = sphi 0, %s27
    %s28 = sphi 0, %s25
    %s29 = sphi 0, %s28
    %s45 = sphi 0, %s29
    %s51 = sphi 0, %s53
    %s54 = sphi 0, %s51
    %s55 = sphi 0, %s54
    %s71 = sphi 0, %s55
    %s75 = sphi 0, %s75
    %s77 = sphi 0, %s75
    %s78 = sphi 0, %s77
    %s92 = sphi 0, %s78
    %s96 = sphi 0, %s96
    %s98 = sphi 0, %s96
    %s99 = sphi 0, %s98
    %s113 = sphi 0, %s99
    %s117 = sphi 0, %s117
    %s119 = sphi 0, %s117
    %s120 = sphi 0, %s119
    %s134 = sphi 0, %s120
    %s138 = sphi 0, %s138
    %s140 = sphi 0, %s138
    %s141 = sphi 0, %s140
    %s155 = sphi 0, %s141
    %s159 = sphi 0, %s159
    %s161 = sphi 0, %s159
    %s162 = sphi 0, %s161
    %s176 = sphi 0, %s162
    %s180 = sphi 0, %s180
    %s182 = sphi 0, %s180
    %s183 = sphi 0, %s182
    %s197 = sphi 0, %s183
    %s201 = sphi 0, %s201
    %s203 = sphi 0, %s201
    %s204 = sphi 0, %s203
    %s218 = sphi 0, %s204
    %s224 = sphi 0, %s226
    %s227 = sphi 0, %s224
    %s228 = sphi 0, %s227
    %s244 = sphi 0, %s228
  $region4: #{spade_resnet_block_pallas.1} parent=0 // loop_header_branch
    %18 = sbr.rel (%p16) target = $region8
  $region5: #{spade_resnet_block_pallas.1} parent=0 // loop_body
    %s20 = ssub.s32 %s15, 1
    %s21 = ssub.s32 %s15, 2
    %s22 = sadd.s32 %s15, 1
    %s23 = ssub.s32 %s15, %s22
    %p24 = scmp.eq.s32.totalorder %s23, 0
    %s26 = sadd.s32 %s25, 1
    %s27 = scalar_select %p24, %s25, %s26
    %p30 = pneg %p24
    %p31 = scmp.eq.s32.totalorder %s15, 1
    %p32 = por %p30, %p31
    %p33 = scmp.ne.s32.totalorder %s25, %s28
    %p34 = scmp.eq.s32.totalorder %s15, 0
    %p35 = por %p33, %p34
    %p36 = scmp.ne.s32.totalorder %s25, %s28
    %p37 = scmp.eq.s32.totalorder %s20, 1
    %p38 = por %p36, %p37
    %p39 = scmp.ne.s32.totalorder %s28, %s29
    %p40 = scmp.eq.s32.totalorder %s20, 0
    %p41 = por %p39, %p40
    %p42 = scmp.ne.s32.totalorder %s28, %s29
    %p43 = scmp.eq.s32.totalorder %s21, 1
    %p44 = por %p42, %p43
    %p46 = scmp.ne.s32.totalorder %s29, %s45
    %p47 = scmp.eq.s32.totalorder %s21, 0
    %p48 = por %p46, %p47
    %s49 = ssub.s32 %s15, %s22
    %p50 = scmp.eq.s32.totalorder %s49, 0
    %s52 = sadd.s32 %s51, 1
    %s53 = scalar_select %p50, %s51, %s52
    %p56 = pneg %p50
    %p57 = scmp.eq.s32.totalorder %s15, 1
    %p58 = por %p56, %p57
    %p59 = scmp.ne.s32.totalorder %s51, %s54
    %p60 = scmp.eq.s32.totalorder %s15, 0
    %p61 = por %p59, %p60
    %p62 = scmp.ne.s32.totalorder %s51, %s54
    %p63 = scmp.eq.s32.totalorder %s20, 1
    %p64 = por %p62, %p63
    %p65 = scmp.ne.s32.totalorder %s54, %s55
    %p66 = scmp.eq.s32.totalorder %s20, 0
    %p67 = por %p65, %p66
    %p68 = scmp.ne.s32.totalorder %s54, %s55
    %p69 = scmp.eq.s32.totalorder %s21, 1
    %p70 = por %p68, %p69
    %p72 = scmp.ne.s32.totalorder %s55, %s71
    %p73 = scmp.eq.s32.totalorder %s21, 0
    %p74 = por %p72, %p73
    %s76 = sadd.s32 %s75, 1
    %p79 = scmp.eq.s32.totalorder %s15, 1
    %p80 = scmp.ne.s32.totalorder %s75, %s77
    %p81 = scmp.eq.s32.totalorder %s15, 0
    %p82 = por %p80, %p81
    %p83 = scmp.ne.s32.totalorder %s75, %s77
    %p84 = scmp.eq.s32.totalorder %s20, 1
    %p85 = por %p83, %p84
    %p86 = scmp.ne.s32.totalorder %s77, %s78
    %p87 = scmp.eq.s32.totalorder %s20, 0
    %p88 = por %p86, %p87
    %p89 = scmp.ne.s32.totalorder %s77, %s78
    %p90 = scmp.eq.s32.totalorder %s21, 1
    %p91 = por %p89, %p90
    %p93 = scmp.ne.s32.totalorder %s78, %s92
    %p94 = scmp.eq.s32.totalorder %s21, 0
    %p95 = por %p93, %p94
    %s97 = sadd.s32 %s96, 1
    %p100 = scmp.eq.s32.totalorder %s15, 1
    %p101 = scmp.ne.s32.totalorder %s96, %s98
    %p102 = scmp.eq.s32.totalorder %s15, 0
    %p103 = por %p101, %p102
    %p104 = scmp.ne.s32.totalorder %s96, %s98
    %p105 = scmp.eq.s32.totalorder %s20, 1
    %p106 = por %p104, %p105
    %p107 = scmp.ne.s32.totalorder %s98, %s99
    %p108 = scmp.eq.s32.totalorder %s20, 0
    %p109 = por %p107, %p108
    %p110 = scmp.ne.s32.totalorder %s98, %s99
    %p111 = scmp.eq.s32.totalorder %s21, 1
    %p112 = por %p110, %p111
    %p114 = scmp.ne.s32.totalorder %s99, %s113
    %p115 = scmp.eq.s32.totalorder %s21, 0
    %p116 = por %p114, %p115
    %s118 = sadd.s32 %s117, 1
    %p121 = scmp.eq.s32.totalorder %s15, 1
    %p122 = scmp.ne.s32.totalorder %s117, %s119
    %p123 = scmp.eq.s32.totalorder %s15, 0
    %p124 = por %p122, %p123
    %p125 = scmp.ne.s32.totalorder %s117, %s119
    %p126 = scmp.eq.s32.totalorder %s20, 1
    %p127 = por %p125, %p126
    %p128 = scmp.ne.s32.totalorder %s119, %s120
    %p129 = scmp.eq.s32.totalorder %s20, 0
    %p130 = por %p128, %p129
    %p131 = scmp.ne.s32.totalorder %s119, %s120
    %p132 = scmp.eq.s32.totalorder %s21, 1
    %p133 = por %p131, %p132
    %p135 = scmp.ne.s32.totalorder %s120, %s134
    %p136 = scmp.eq.s32.totalorder %s21, 0
    %p137 = por %p135, %p136
    %s139 = sadd.s32 %s138, 1
    %p142 = scmp.eq.s32.totalorder %s15, 1
    %p143 = scmp.ne.s32.totalorder %s138, %s140
    %p144 = scmp.eq.s32.totalorder %s15, 0
    %p145 = por %p143, %p144
    %p146 = scmp.ne.s32.totalorder %s138, %s140
    %p147 = scmp.eq.s32.totalorder %s20, 1
    %p148 = por %p146, %p147
    %p149 = scmp.ne.s32.totalorder %s140, %s141
    %p150 = scmp.eq.s32.totalorder %s20, 0
    %p151 = por %p149, %p150
    %p152 = scmp.ne.s32.totalorder %s140, %s141
    %p153 = scmp.eq.s32.totalorder %s21, 1
    %p154 = por %p152, %p153
    %p156 = scmp.ne.s32.totalorder %s141, %s155
    %p157 = scmp.eq.s32.totalorder %s21, 0
    %p158 = por %p156, %p157
    %s160 = sadd.s32 %s159, 1
    %p163 = scmp.eq.s32.totalorder %s15, 1
    %p164 = scmp.ne.s32.totalorder %s159, %s161
    %p165 = scmp.eq.s32.totalorder %s15, 0
    %p166 = por %p164, %p165
    %p167 = scmp.ne.s32.totalorder %s159, %s161
    %p168 = scmp.eq.s32.totalorder %s20, 1
    %p169 = por %p167, %p168
    %p170 = scmp.ne.s32.totalorder %s161, %s162
    %p171 = scmp.eq.s32.totalorder %s20, 0
    %p172 = por %p170, %p171
    %p173 = scmp.ne.s32.totalorder %s161, %s162
    %p174 = scmp.eq.s32.totalorder %s21, 1
    %p175 = por %p173, %p174
    %p177 = scmp.ne.s32.totalorder %s162, %s176
    %p178 = scmp.eq.s32.totalorder %s21, 0
    %p179 = por %p177, %p178
    %s181 = sadd.s32 %s180, 1
    %p184 = scmp.eq.s32.totalorder %s15, 1
    %p185 = scmp.ne.s32.totalorder %s180, %s182
    %p186 = scmp.eq.s32.totalorder %s15, 0
    %p187 = por %p185, %p186
    %p188 = scmp.ne.s32.totalorder %s180, %s182
    %p189 = scmp.eq.s32.totalorder %s20, 1
    %p190 = por %p188, %p189
    %p191 = scmp.ne.s32.totalorder %s182, %s183
    %p192 = scmp.eq.s32.totalorder %s20, 0
    %p193 = por %p191, %p192
    %p194 = scmp.ne.s32.totalorder %s182, %s183
    %p195 = scmp.eq.s32.totalorder %s21, 1
    %p196 = por %p194, %p195
    %p198 = scmp.ne.s32.totalorder %s183, %s197
    %p199 = scmp.eq.s32.totalorder %s21, 0
    %p200 = por %p198, %p199
    %s202 = sadd.s32 %s201, 1
    %p205 = scmp.eq.s32.totalorder %s15, 1
    %p206 = scmp.ne.s32.totalorder %s201, %s203
    %p207 = scmp.eq.s32.totalorder %s15, 0
    %p208 = por %p206, %p207
    %p209 = scmp.ne.s32.totalorder %s201, %s203
    %p210 = scmp.eq.s32.totalorder %s20, 1
    %p211 = por %p209, %p210
    %p212 = scmp.ne.s32.totalorder %s203, %s204
    %p213 = scmp.eq.s32.totalorder %s20, 0
    %p214 = por %p212, %p213
    %p215 = scmp.ne.s32.totalorder %s203, %s204
    %p216 = scmp.eq.s32.totalorder %s21, 1
    %p217 = por %p215, %p216
    %p219 = scmp.ne.s32.totalorder %s204, %s218
    %p220 = scmp.eq.s32.totalorder %s21, 0
    %p221 = por %p219, %p220
    %s222 = ssub.s32 %s15, %s22
    %p223 = scmp.eq.s32.totalorder %s222, 0
    %s225 = sadd.s32 %s224, 1
    %s226 = scalar_select %p223, %s224, %s225
    %p229 = pneg %p223
    %p230 = scmp.eq.s32.totalorder %s15, 1
    %p231 = por %p229, %p230
    %p232 = scmp.ne.s32.totalorder %s224, %s227
    %p233 = scmp.eq.s32.totalorder %s15, 0
    %p234 = por %p232, %p233
    %p235 = scmp.ne.s32.totalorder %s224, %s227
    %p236 = scmp.eq.s32.totalorder %s20, 1
    %p237 = por %p235, %p236
    %p238 = scmp.ne.s32.totalorder %s227, %s228
    %p239 = scmp.eq.s32.totalorder %s20, 0
    %p240 = por %p238, %p239
    %p241 = scmp.ne.s32.totalorder %s227, %s228
    %p242 = scmp.eq.s32.totalorder %s21, 1
    %p243 = por %p241, %p242
    %p245 = scmp.ne.s32.totalorder %s228, %s244
    %p246 = scmp.eq.s32.totalorder %s21, 0
    %p247 = por %p245, %p246
    %p248 = scmp.le.s32.totalorder 1, %s15
    %p249 = scmp.lt.s32.totalorder %s15, 3
    %p250 = pnand %p248, %p249
    %p251 = pneg %p250
    // Predicated region
    $region9: #{spade_resnet_block_pallas.1} parent=5 // pred_check
      _
    $region10: #{spade_resnet_block_pallas.1} parent=5 // pred_check_branch
      %253 = sbr.rel (%p250) target = $region12
    $region11: #{spade_resnet_block_pallas.1} parent=5 // pred_region
      %s254 = ssub.s32 %s15, 1
      // Predicated region
      $region13: #{spade_resnet_block_pallas.1} parent=11 // pred_check
        %p255 = pneg %p88
      $region14: #{spade_resnet_block_pallas.1} parent=11 // pred_check_branch
        %257 = sbr.rel (%p255) target = $region16
      $region15: #{spade_resnet_block_pallas.1} parent=11 // pred_region
        _
      $region16: #{spade_resnet_block_pallas.1} parent=11 // pred_fallthru
        _
      // Predicated region
      $region17: #{spade_resnet_block_pallas.1} parent=11 // pred_check
        %p258 = pneg %p109
      $region18: #{spade_resnet_block_pallas.1} parent=11 // pred_check_branch
        %260 = sbr.rel (%p258) target = $region20
      $region19: #{spade_resnet_block_pallas.1} parent=11 // pred_region
        _
      $region20: #{spade_resnet_block_pallas.1} parent=11 // pred_fallthru
        _
      // Predicated region
      $region21: #{spade_resnet_block_pallas.1} parent=11 // pred_check
        %p261 = pneg %p130
      $region22: #{spade_resnet_block_pallas.1} parent=11 // pred_check_branch
        %263 = sbr.rel (%p261) target = $region24
      $region23: #{spade_resnet_block_pallas.1} parent=11 // pred_region
        _
      $region24: #{spade_resnet_block_pallas.1} parent=11 // pred_fallthru
        _
      // Predicated region
      $region25: #{spade_resnet_block_pallas.1} parent=11 // pred_check
        %p264 = pneg %p151
      $region26: #{spade_resnet_block_pallas.1} parent=11 // pred_check_branch
        %266 = sbr.rel (%p264) target = $region28
      $region27: #{spade_resnet_block_pallas.1} parent=11 // pred_region
        _
      $region28: #{spade_resnet_block_pallas.1} parent=11 // pred_fallthru
        _
      // Predicated region
      $region29: #{spade_resnet_block_pallas.1} parent=11 // pred_check
        %p267 = pneg %p172
      $region30: #{spade_resnet_block_pallas.1} parent=11 // pred_check_branch
        %269 = sbr.rel (%p267) target = $region32
      $region31: #{spade_resnet_block_pallas.1} parent=11 // pred_region
        _
      $region32: #{spade_resnet_block_pallas.1} parent=11 // pred_fallthru
        _
      // Predicated region
      $region33: #{spade_resnet_block_pallas.1} parent=11 // pred_check
        %p270 = pneg %p193
      $region34: #{spade_resnet_block_pallas.1} parent=11 // pred_check_branch
        %272 = sbr.rel (%p270) target = $region36
      $region35: #{spade_resnet_block_pallas.1} parent=11 // pred_region
        _
      $region36: #{spade_resnet_block_pallas.1} parent=11 // pred_fallthru
        _
      // Predicated region
      $region37: #{spade_resnet_block_pallas.1} parent=11 // pred_check
        %p273 = pneg %p214
      $region38: #{spade_resnet_block_pallas.1} parent=11 // pred_check_branch
        %275 = sbr.rel (%p273) target = $region40
      $region39: #{spade_resnet_block_pallas.1} parent=11 // pred_region
        _
      $region40: #{spade_resnet_block_pallas.1} parent=11 // pred_fallthru
        _
    $region12: #{spade_resnet_block_pallas.1} parent=5 // pred_fallthru
      _
    %p276 = scmp.lt.s32.totalorder %s15, 2
    // Predicated region
    $region41: #{spade_resnet_block_pallas.1} parent=5 // pred_check
      %p277 = pneg %p276
    $region42: #{spade_resnet_block_pallas.1} parent=5 // pred_check_branch
      %279 = sbr.rel (%p277) target = $region44
    $region43: #{spade_resnet_block_pallas.1} parent=5 // pred_region
      // Predicated region
      $region45: #{spade_resnet_block_pallas.1} parent=43 // pred_check
        %p280 = pneg %p35
      $region46: #{spade_resnet_block_pallas.1} parent=43 // pred_check_branch
        %282 = sbr.rel (%p280) target = $region48
      $region47: #{spade_resnet_block_pallas.1} parent=43 // pred_region
        %p283 = scmp.lt.s32.totalorder %s15, 1
        %s284 = scalar_select %p283, %s15, 1
        %s285 = smul.addr %s284, 3
        %s286 = smul.addr %s285, 4
        %s287 = scalar_lea.vmem %s0, %s286
      $region48: #{spade_resnet_block_pallas.1} parent=43 // pred_fallthru
        _
      // Predicated region
      $region49: #{spade_resnet_block_pallas.1} parent=43 // pred_check
        %p288 = pneg %p61
      $region50: #{spade_resnet_block_pallas.1} parent=43 // pred_check_branch
        %290 = sbr.rel (%p288) target = $region52
      $region51: #{spade_resnet_block_pallas.1} parent=43 // pred_region
        %p291 = scmp.lt.s32.totalorder %s15, 1
        %s292 = scalar_select %p291, %s15, 1
        %s293 = smul.addr %s292, 3
        %s294 = smul.addr %s293, 8
        %s295 = scalar_lea.vmem %s1, %s294
      $region52: #{spade_resnet_block_pallas.1} parent=43 // pred_fallthru
        _
    $region44: #{spade_resnet_block_pallas.1} parent=5 // pred_fallthru
      _
    %p296 = scmp.le.s32.totalorder 1, %s15
    %p297 = scmp.lt.s32.totalorder %s15, 3
    %p298 = pnand %p296, %p297
    %p299 = pneg %p298
    // Predicated region
    $region53: #{spade_resnet_block_pallas.1} parent=5 // pred_check
      _
    $region54: #{spade_resnet_block_pallas.1} parent=5 // pred_check_branch
      %301 = sbr.rel (%p298) target = $region56
    $region55: #{spade_resnet_block_pallas.1} parent=5 // pred_region
      %s302 = ssub.s32 %s15, 1
      %p303 = scmp.lt.s32.totalorder %s20, 1
      %s304 = scalar_select %p303, %s20, 1
      %s305 = smul.addr %s304, 3
      %s306 = smul.addr %s305, 4
      %s307 = scalar_lea.vmem %s0, %s306
      %p308 = pneg %p41
      %p309 = pneg %p38
      %p310 = scmp.lt.s32.totalorder %s20, 1
      %s311 = scalar_select %p310, %s20, 1
      %s312 = smul.addr %s311, 3
      %s313 = smul.addr %s312, 8
      %s314 = scalar_lea.vmem %s1, %s313
      %p315 = pneg %p67
      %p316 = pneg %p64
      %p317 = pneg %p88
      %p318 = pneg %p85
      %p319 = pneg %p109
      %p320 = pneg %p106
      %p321 = pneg %p130
      %p322 = pneg %p127
      %p323 = pneg %p151
      %p324 = pneg %p148
      %p325 = pneg %p172
      %p326 = pneg %p169
      %p327 = pneg %p193
      %p328 = pneg %p190
      %p329 = pneg %p214
      %p330 = pneg %p211
      %p331 = pneg %p240
      %p332 = pneg %p237
      %p333 = scmp.lt.s32.totalorder %s20, 1
      %s334 = scalar_select %p333, %s20, 1
      %s335 = smul.addr %s334, 3
      %s336 = smul.addr %s335, 8
      %s337 = scalar_lea.vmem %s9, %s336
      %p338 = scmp.lt.s32.totalorder %s20, 1
      %s339 = scalar_select %p338, %s20, 1
      %s340 = smul.addr %s339, 3
      %s341 = smul.addr %s340, 4
      %s342 = scalar_lea.vmem %s0, %s341
      %p343 = scmp.lt.s32.totalorder %s20, 1
      %s344 = scalar_select %p343, %s20, 1
      %s345 = smul.addr %s344, 3
      %s346 = smul.addr %s345, 8
      %s347 = scalar_lea.vmem %s1, %s346
      %p348 = scmp.lt.s32.totalorder %s20, 1
      %s349 = scalar_select %p348, %s20, 1
      %s350 = smul.addr %s349, 3
      %s351 = smul.addr %s350, 8
      %s352 = scalar_lea.vmem %s9, %s351
      %v356 = vld [vmem:[%s347] sm:$0xff]
      %v357 = vld [vmem:[%s347 + $0x8] sm:$0xff]
      %v358 = vld [vmem:[%s347 + $0x10] sm:$0xff]
      %v359 = vld [vmem:[%s2] sm:$0x7]
      %v360 = vld [vmem:[%s3] ss:$2 sm:$0x7]
      %vm361 = vcmp.ne.s32.totalorder %v360, 0
      %s362 = scalar_lea.vmem %s3, 1
      %v363 = vld [vmem:[%s362] ss:$2 sm:$0x7]
      %vm364 = vcmp.ne.s32.totalorder %v363, 0
      %vm365 = vcmask 154624
      %366 = vst.msk [vmem:[#allocation2] sm:$0xff] %vm365, 0
      %367 = vst.msk [vmem:[#allocation2 + $0x18] sm:$0xff] %vm365, 0
      %368 = vst.msk [vmem:[#allocation2 + $0x30] sm:$0xff] %vm365, 0
      %369 = vst.msk [vmem:[#allocation2 + $0x48] sm:$0xff] %vm365, 0
      %370 = vst.msk [vmem:[#allocation2 + $0x60] sm:$0xff] %vm365, 0
      %371 = vst.msk [vmem:[#allocation2 + $0x78] sm:$0xff] %vm365, 0
      %372 = vst.msk [vmem:[#allocation2 + $0x90] sm:$0xff] %vm365, 0
      %373 = vst.msk [vmem:[#allocation2 + $0xa8] sm:$0xff] %vm365, 0
      %374 = vst.msk [vmem:[#allocation2 + $0xc0] sm:$0xff] %vm365, 0
      %375 = vst.msk [vmem:[#allocation2 + $0xd8] sm:$0xff] %vm365, 0
      %376 = vst.msk [vmem:[#allocation2 + $0xf0] sm:$0xff] %vm365, 0
      %377 = vst.msk [vmem:[#allocation2 + $0x108] sm:$0xff] %vm365, 0
      %378 = vst.msk [vmem:[#allocation2 + $0x120] sm:$0xff] %vm365, 0
      %379 = vst.msk [vmem:[#allocation2 + $0x138] sm:$0xff] %vm365, 0
      %380 = vst.msk [vmem:[#allocation2 + $0x150] sm:$0xff] %vm365, 0
      %381 = vst.msk [vmem:[#allocation2 + $0x168] sm:$0xff] %vm365, 0
      %vm382 = vcmask 556424
      %383 = vst.msk [vmem:[#allocation2 + $0x10] sm:$0xff] %vm382, 0
      %384 = vst.msk [vmem:[#allocation2 + $0x28] sm:$0xff] %vm382, 0
      %385 = vst.msk [vmem:[#allocation2 + $0x40] sm:$0xff] %vm382, 0
      %386 = vst.msk [vmem:[#allocation2 + $0x58] sm:$0xff] %vm382, 0
      %387 = vst.msk [vmem:[#allocation2 + $0x70] sm:$0xff] %vm382, 0
      %388 = vst.msk [vmem:[#allocation2 + $0x88] sm:$0xff] %vm382, 0
      %389 = vst.msk [vmem:[#allocation2 + $0xa0] sm:$0xff] %vm382, 0
      %390 = vst.msk [vmem:[#allocation2 + $0xb8] sm:$0xff] %vm382, 0
      %391 = vst.msk [vmem:[#allocation2 + $0xd0] sm:$0xff] %vm382, 0
      %392 = vst.msk [vmem:[#allocation2 + $0xe8] sm:$0xff] %vm382, 0
      %393 = vst.msk [vmem:[#allocation2 + $0x100] sm:$0xff] %vm382, 0
      %394 = vst.msk [vmem:[#allocation2 + $0x118] sm:$0xff] %vm382, 0
      %395 = vst.msk [vmem:[#allocation2 + $0x130] sm:$0xff] %vm382, 0
      %396 = vst.msk [vmem:[#allocation2 + $0x148] sm:$0xff] %vm382, 0
      %397 = vst.msk [vmem:[#allocation2 + $0x160] sm:$0xff] %vm382, 0
      %398 = vst.msk [vmem:[#allocation2 + $0x178] sm:$0xff] %vm382, 0
      %v399 = vld [vmem:[%s342] sm:$0xff]
      %v400 = vld [vmem:[%s342 + $0x8] sm:$0xf]
      %v403 = vunpack.c.l.b16 %v399
      %v404 = vunpack.c.h.b16 %v399
      %v405 = vunpack.c.l.b16 %v400
      %v406 = vpack.c.b16 %v403, %v403
      %v407 = vpack.c.b16 %v404, %v404
      %v408 = vpack.c.b16 %v405, %v405
      %409 = vrot.lane.b32.xlu0 %v406, 127
      %v410 = vpop.permute.xlu0 %409
      %411 = vrot.lane.b32.xlu0 %v407, 127
      %v412 = vpop.permute.xlu0 %411
      %413 = vrot.lane.b32.xlu0 %v408, 127
      %v414 = vpop.permute.xlu0 %413
      %vm415 = vcmask 1039360
      %v416 = vsel %vm415, %v410, %v412
      %v417 = vsel %vm415, %v412, %v414
      %418 = vrot.lane.b32.xlu0 %v406, 126
      %v419 = vpop.permute.xlu0 %418
      %420 = vrot.lane.b32.xlu0 %v407, 126
      %v421 = vpop.permute.xlu0 %420
      %422 = vrot.lane.b32.xlu0 %v408, 126
      %v423 = vpop.permute.xlu0 %422
      %vm424 = vcmask 1031168
      %v425 = vsel %vm424, %v419, %v421
      %v426 = vsel %vm424, %v421, %v423
      %427 = vrot.lane.b32.xlu0 %v406, 110
      %v428 = vpop.permute.xlu0 %427
      %429 = vrot.lane.b32.xlu0 %v407, 110
      %v430 = vpop.permute.xlu0 %429
      %431 = vrot.lane.b32.xlu0 %v408, 110
      %v432 = vpop.permute.xlu0 %431
      %vm433 = vcmask 900096
      %v434 = vsel %vm433, %v428, %v430
      %v435 = vsel %vm433, %v430, %v432
      %436 = vrot.lane.b32.xlu0 %v406, 109
      %v437 = vpop.permute.xlu0 %436
      %438 = vrot.lane.b32.xlu0 %v407, 109
      %v439 = vpop.permute.xlu0 %438
      %440 = vrot.lane.b32.xlu0 %v408, 109
      %v441 = vpop.permute.xlu0 %440
      %vm442 = vcmask 891904
      %v443 = vsel %vm442, %v437, %v439
      %v444 = vsel %vm442, %v439, %v441
      %445 = vrot.lane.b32.xlu0 %v406, 108
      %v446 = vpop.permute.xlu0 %445
      %447 = vrot.lane.b32.xlu0 %v407, 108
      %v448 = vpop.permute.xlu0 %447
      %449 = vrot.lane.b32.xlu0 %v408, 108
      %v450 = vpop.permute.xlu0 %449
      %vm451 = vcmask 883712
      %v452 = vsel %vm451, %v446, %v448
      %v453 = vsel %vm451, %v448, %v450
      %454 = vrot.lane.b32.xlu0 %v406, 92
      %v455 = vpop.permute.xlu0 %454
      %456 = vrot.lane.b32.xlu0 %v407, 92
      %v457 = vpop.permute.xlu0 %456
      %458 = vrot.lane.b32.xlu0 %v408, 92
      %v459 = vpop.permute.xlu0 %458
      %vm460 = vcmask 752640
      %v461 = vsel %vm460, %v455, %v457
      %v462 = vsel %vm460, %v457, %v459
      %463 = vrot.lane.b32.xlu0 %v406, 91
      %v464 = vpop.permute.xlu0 %463
      %465 = vrot.lane.b32.xlu0 %v407, 91
      %v466 = vpop.permute.xlu0 %465
      %467 = vrot.lane.b32.xlu0 %v408, 91
      %v468 = vpop.permute.xlu0 %467
      %vm469 = vcmask 744448
      %v470 = vsel %vm469, %v464, %v466
      %v471 = vsel %vm469, %v466, %v468
      %472 = vrot.lane.b32.xlu0 %v406, 90
      %v473 = vpop.permute.xlu0 %472
      %474 = vrot.lane.b32.xlu0 %v407, 90
      %v475 = vpop.permute.xlu0 %474
      %476 = vrot.lane.b32.xlu0 %v408, 90
      %v477 = vpop.permute.xlu0 %476
      %vm478 = vcmask 736256
      %v479 = vsel %vm478, %v473, %v475
      %v480 = vsel %vm478, %v475, %v477
      %vm481 = vcmask 1043456
      %v484 = vsel %vm481, %v406, %v416
      %v488 = vsel %vm481, %v407, %v417
      %v492 = vsel %vm481, %v408, %v414
      %v496 = vsel %vm481, %v425, %v434
      %v500 = vsel %vm481, %v426, %v435
      %v504 = vsel %vm481, %v423, %v432
      %v508 = vsel %vm481, %v443, %v452
      %v512 = vsel %vm481, %v444, %v453
      %v516 = vsel %vm481, %v441, %v450
      %v520 = vsel %vm481, %v461, %v470
      %v524 = vsel %vm481, %v462, %v471
      %v528 = vsel %vm481, %v459, %v468
      %v530 = vld [vmem:[%s4] sm:$0xf]
      %v531 = vld [vmem:[%s4 + $0x4] sm:$0xf]
      %v532 = vld [vmem:[%s4 + $0x8] sm:$0xf]
      %v533 = vld [vmem:[%s4 + $0xc] sm:$0xf]
      %v534 = vld [vmem:[%s4 + $0x10] sm:$0xf]
      %v535 = vld [vmem:[%s4 + $0x14] sm:$0xf]
      %v536 = vld [vmem:[%s4 + $0x18] sm:$0xf]
      %v537 = vld [vmem:[%s4 + $0x1c] sm:$0xf]
      %v538 = vld [vmem:[%s4 + $0x20] sm:$0xf]
      %v539 = vld [vmem:[%s4 + $0x24] sm:$0xf]
      %v540 = vld [vmem:[%s4 + $0x28] sm:$0xf]
      %v541 = vld [vmem:[%s4 + $0x2c] sm:$0xf]
      %v542 = vld [vmem:[%s4 + $0x30] sm:$0xf]
      %v543 = vld [vmem:[%s4 + $0x34] sm:$0xf]
      %v544 = vld [vmem:[%s4 + $0x38] sm:$0xf]
      %v545 = vld [vmem:[%s4 + $0x3c] sm:$0xf]
      %v546 = vld [vmem:[%s4 + $0x40] sm:$0xf]
      %v547 = vld [vmem:[%s4 + $0x44] sm:$0xf]
      %v548 = vld [vmem:[%s4 + $0x48] sm:$0xf]
      %v549 = vld [vmem:[%s4 + $0x4c] sm:$0xf]
      %v550 = vld [vmem:[%s4 + $0x50] sm:$0xf]
      %v551 = vld [vmem:[%s4 + $0x54] sm:$0xf]
      %v552 = vld [vmem:[%s4 + $0x58] sm:$0xf]
      %v553 = vld [vmem:[%s4 + $0x5c] sm:$0xf]
      %v554 = vld [vmem:[%s4 + $0x60] sm:$0xf]
      %v555 = vld [vmem:[%s4 + $0x64] sm:$0xf]
      %v556 = vld [vmem:[%s4 + $0x68] sm:$0xf]
      %v557 = vld [vmem:[%s4 + $0x6c] sm:$0xf]
      %v558 = vld [vmem:[%s4 + $0x70] sm:$0xf]
      %v559 = vld [vmem:[%s4 + $0x74] sm:$0xf]
      %v560 = vld [vmem:[%s4 + $0x78] sm:$0xf]
      %v561 = vld [vmem:[%s4 + $0x7c] sm:$0xf]
      %v562 = vld [vmem:[%s5] sm:$0xff]
      %v563 = vld [vmem:[%s5 + $0x8] sm:$0xff]
      %v564 = vld [vmem:[%s5 + $0x10] sm:$0xff]
      %v565 = vld [vmem:[%s5 + $0x18] sm:$0xff]
      %v566 = vld [vmem:[%s5 + $0x20] sm:$0xff]
      %v567 = vld [vmem:[%s5 + $0x28] sm:$0xff]
      %v568 = vld [vmem:[%s5 + $0x30] sm:$0xff]
      %v569 = vld [vmem:[%s5 + $0x38] sm:$0xff]
      %v570 = vld [vmem:[%s5 + $0x40] sm:$0xff]
      %v571 = vld [vmem:[%s5 + $0x48] sm:$0xff]
      %v572 = vld [vmem:[%s5 + $0x50] sm:$0xff]
      %v573 = vld [vmem:[%s5 + $0x58] sm:$0xff]
      %v574 = vld [vmem:[%s5 + $0x60] sm:$0xff]
      %v575 = vld [vmem:[%s5 + $0x68] sm:$0xff]
      %v576 = vld [vmem:[%s5 + $0x70] sm:$0xff]
      %v577 = vld [vmem:[%s5 + $0x78] sm:$0xff]
      %v578 = vld [vmem:[%s5 + $0x80] sm:$0xff]
      %v579 = vld [vmem:[%s5 + $0x88] sm:$0xff]
      %v580 = vld [vmem:[%s5 + $0x90] sm:$0xff]
      %v581 = vld [vmem:[%s5 + $0x98] sm:$0xff]
      %v582 = vld [vmem:[%s5 + $0xa0] sm:$0xff]
      %v583 = vld [vmem:[%s5 + $0xa8] sm:$0xff]
      %v584 = vld [vmem:[%s5 + $0xb0] sm:$0xff]
      %v585 = vld [vmem:[%s5 + $0xb8] sm:$0xff]
      %v586 = vld [vmem:[%s5 + $0xc0] sm:$0xff]
      %v587 = vld [vmem:[%s5 + $0xc8] sm:$0xff]
      %v588 = vld [vmem:[%s5 + $0xd0] sm:$0xff]
      %v589 = vld [vmem:[%s5 + $0xd8] sm:$0xff]
      %v590 = vld [vmem:[%s5 + $0xe0] sm:$0xff]
      %v591 = vld [vmem:[%s5 + $0xe8] sm:$0xff]
      %v592 = vld [vmem:[%s5 + $0xf0] sm:$0xff]
      %v593 = vld [vmem:[%s5 + $0xf8] sm:$0xff]
      %595 = vset.pattern.permute.xlu0 0
      %596 = vperm.xlu0 %595, %v562
      %v597 = vpop.permute.xlu0 %596
      %600 = vset.pattern.permute.xlu0 0
      %601 = vperm.xlu0 %600, %v563
      %v602 = vpop.permute.xlu0 %601
      %605 = vset.pattern.permute.xlu0 0
      %606 = vperm.xlu0 %605, %v564
      %v607 = vpop.permute.xlu0 %606
      %610 = vset.pattern.permute.xlu0 0
      %611 = vperm.xlu0 %610, %v565
      %v612 = vpop.permute.xlu0 %611
      %615 = vset.pattern.permute.xlu0 0
      %616 = vperm.xlu0 %615, %v566
      %v617 = vpop.permute.xlu0 %616
      %620 = vset.pattern.permute.xlu0 0
      %621 = vperm.xlu0 %620, %v567
      %v622 = vpop.permute.xlu0 %621
      %625 = vset.pattern.permute.xlu0 0
      %626 = vperm.xlu0 %625, %v568
      %v627 = vpop.permute.xlu0 %626
      %630 = vset.pattern.permute.xlu0 0
      %631 = vperm.xlu0 %630, %v569
      %v632 = vpop.permute.xlu0 %631
      %635 = vset.pattern.permute.xlu0 0
      %636 = vperm.xlu0 %635, %v570
      %v637 = vpop.permute.xlu0 %636
      %640 = vset.pattern.permute.xlu0 0
      %641 = vperm.xlu0 %640, %v571
      %v642 = vpop.permute.xlu0 %641
      %645 = vset.pattern.permute.xlu0 0
      %646 = vperm.xlu0 %645, %v572
      %v647 = vpop.permute.xlu0 %646
      %650 = vset.pattern.permute.xlu0 0
      %651 = vperm.xlu0 %650, %v573
      %v652 = vpop.permute.xlu0 %651
      %655 = vset.pattern.permute.xlu0 0
      %656 = vperm.xlu0 %655, %v574
      %v657 = vpop.permute.xlu0 %656
      %660 = vset.pattern.permute.xlu0 0
      %661 = vperm.xlu0 %660, %v575
      %v662 = vpop.permute.xlu0 %661
      %665 = vset.pattern.permute.xlu0 0
      %666 = vperm.xlu0 %665, %v576
      %v667 = vpop.permute.xlu0 %666
      %670 = vset.pattern.permute.xlu0 0
      %671 = vperm.xlu0 %670, %v577
      %v672 = vpop.permute.xlu0 %671
      %675 = vset.pattern.permute.xlu0 0
      %676 = vperm.xlu0 %675, %v578
      %v677 = vpop.permute.xlu0 %676
      %680 = vset.pattern.permute.xlu0 0
      %681 = vperm.xlu0 %680, %v579
      %v682 = vpop.permute.xlu0 %681
      %685 = vset.pattern.permute.xlu0 0
      %686 = vperm.xlu0 %685, %v580
      %v687 = vpop.permute.xlu0 %686
      %690 = vset.pattern.permute.xlu0 0
      %691 = vperm.xlu0 %690, %v581
      %v692 = vpop.permute.xlu0 %691
      %695 = vset.pattern.permute.xlu0 0
      %696 = vperm.xlu0 %695, %v582
      %v697 = vpop.permute.xlu0 %696
      %700 = vset.pattern.permute.xlu0 0
      %701 = vperm.xlu0 %700, %v583
      %v702 = vpop.permute.xlu0 %701
      %705 = vset.pattern.permute.xlu0 0
      %706 = vperm.xlu0 %705, %v584
      %v707 = vpop.permute.xlu0 %706
      %710 = vset.pattern.permute.xlu0 0
      %711 = vperm.xlu0 %710, %v585
      %v712 = vpop.permute.xlu0 %711
      %715 = vset.pattern.permute.xlu0 0
      %716 = vperm.xlu0 %715, %v586
      %v717 = vpop.permute.xlu0 %716
      %720 = vset.pattern.permute.xlu0 0
      %721 = vperm.xlu0 %720, %v587
      %v722 = vpop.permute.xlu0 %721
      %725 = vset.pattern.permute.xlu0 0
      %726 = vperm.xlu0 %725, %v588
      %v727 = vpop.permute.xlu0 %726
      %730 = vset.pattern.permute.xlu0 0
      %731 = vperm.xlu0 %730, %v589
      %v732 = vpop.permute.xlu0 %731
      %735 = vset.pattern.permute.xlu0 0
      %736 = vperm.xlu0 %735, %v590
      %v737 = vpop.permute.xlu0 %736
      %740 = vset.pattern.permute.xlu0 0
      %741 = vperm.xlu0 %740, %v591
      %v742 = vpop.permute.xlu0 %741
      %745 = vset.pattern.permute.xlu0 0
      %746 = vperm.xlu0 %745, %v592
      %v747 = vpop.permute.xlu0 %746
      %750 = vset.pattern.permute.xlu0 0
      %751 = vperm.xlu0 %750, %v593
      %v752 = vpop.permute.xlu0 %751
      %v786 = vunpack.c.l.b16 %v530
      %v787 = vunpack.c.l.b16 %v531
      %v788 = vunpack.c.l.b16 %v532
      %v789 = vunpack.c.l.b16 %v533
      %v790 = vunpack.c.l.b16 %v534
      %v791 = vunpack.c.l.b16 %v535
      %v792 = vunpack.c.l.b16 %v536
      %v793 = vunpack.c.l.b16 %v537
      %v794 = vunpack.c.l.b16 %v538
      %v795 = vunpack.c.l.b16 %v539
      %v796 = vunpack.c.l.b16 %v540
      %v797 = vunpack.c.l.b16 %v541
      %v798 = vunpack.c.l.b16 %v542
      %v799 = vunpack.c.l.b16 %v543
      %v800 = vunpack.c.l.b16 %v544
      %v801 = vunpack.c.l.b16 %v545
      %v802 = vunpack.c.l.b16 %v546
      %v803 = vunpack.c.l.b16 %v547
      %v804 = vunpack.c.l.b16 %v548
      %v805 = vunpack.c.l.b16 %v549
      %v806 = vunpack.c.l.b16 %v550
      %v807 = vunpack.c.l.b16 %v551
      %v808 = vunpack.c.l.b16 %v552
      %v809 = vunpack.c.l.b16 %v553
      %v810 = vunpack.c.l.b16 %v554
      %v811 = vunpack.c.l.b16 %v555
      %v812 = vunpack.c.l.b16 %v556
      %v813 = vunpack.c.l.b16 %v557
      %v814 = vunpack.c.l.b16 %v558
      %v815 = vunpack.c.l.b16 %v559
      %v816 = vunpack.c.l.b16 %v560
      %v817 = vunpack.c.l.b16 %v561
      %v818 = vpack.c.b16 %v787, %v786
      %v819 = vpack.c.b16 %v789, %v788
      %v820 = vpack.c.b16 %v791, %v790
      %v821 = vpack.c.b16 %v793, %v792
      %v822 = vpack.c.b16 %v795, %v794
      %v823 = vpack.c.b16 %v797, %v796
      %v824 = vpack.c.b16 %v799, %v798
      %v825 = vpack.c.b16 %v801, %v800
      %v826 = vpack.c.b16 %v803, %v802
      %v827 = vpack.c.b16 %v805, %v804
      %v828 = vpack.c.b16 %v807, %v806
      %v829 = vpack.c.b16 %v809, %v808
      %v830 = vpack.c.b16 %v811, %v810
      %v831 = vpack.c.b16 %v813, %v812
      %v832 = vpack.c.b16 %v815, %v814
      %v833 = vpack.c.b16 %v817, %v816
      %vm834 = vcmask 588800
      %v836 = vsel %vm834, %v818, 0
      %v839 = vsel %vm834, %v819, 0
      %v842 = vsel %vm834, %v820, 0
      %v845 = vsel %vm834, %v821, 0
      %v848 = vsel %vm834, %v822, 0
      %v851 = vsel %vm834, %v823, 0
      %v854 = vsel %vm834, %v824, 0
      %v857 = vsel %vm834, %v825, 0
      %v860 = vsel %vm834, %v826, 0
      %v863 = vsel %vm834, %v827, 0
      %v866 = vsel %vm834, %v828, 0
      %v869 = vsel %vm834, %v829, 0
      %v872 = vsel %vm834, %v830, 0
      %v875 = vsel %vm834, %v831, 0
      %v878 = vsel %vm834, %v832, 0
      %v881 = vsel %vm834, %v833, 0
      %v884 = vsel %vm481, %v479, 0
      %v887 = vsel %vm481, %v480, 0
      %v890 = vsel %vm481, %v477, 0
      %892 = vmatprep.subr.bf16.mxu0 %v488
      %893 = vmatpush1.bf16.msra.mxu0 %v484
      %894 = vmatprep.subr.bf16.mxu0 %v500
      %895 = vmatpush1.bf16.msra.mxu0 %v496
      %896 = vmatprep.subr.bf16.mxu0 %v512
      %897 = vmatpush1.bf16.msra.mxu0 %v508
      %898 = vmatprep.subr.bf16.mxu0 %v524
      %899 = vmatpush1.bf16.msra.mxu0 %v520
      %900 = vmatprep.subr.bf16.mxu0 %v887
      %901 = vmatpush1.bf16.msra.mxu0 %v884
      %902 = vmatprep.subr.bf16.mxu0 0
      %903 = vmatpush1.bf16.msra.mxu0 0
      %904 = vmatprep.subr.bf16.mxu0 0
      %905 = vmatpush1.bf16.msra.mxu0 0
      %906 = vmatprep.subr.bf16.mxu0 0
      %907 = vmatpush1.bf16.msra.mxu0 0
      %908 = vmatprep.subr.bf16.mxu0 0
      %909 = vmatpush1.bf16.msra.mxu0 0
      %910 = vmatprep.subr.bf16.mxu0 0
      %911 = vmatpush1.bf16.msra.mxu0 0
      %912 = vmatprep.subr.bf16.mxu0 0
      %913 = vmatpush1.bf16.msra.mxu0 0
      %914 = vmatprep.subr.bf16.mxu0 0
      %915 = vmatpush1.bf16.msra.mxu0 0
      %916 = vmatprep.subr.bf16.mxu0 0
      %917 = vmatpush1.bf16.msra.mxu0 0
      %918 = vmatprep.subr.bf16.mxu0 0
      %919 = vmatpush1.bf16.msra.mxu0 0
      %920 = vmatprep.subr.bf16.mxu0 0
      %921 = vmatpush1.bf16.msra.mxu0 0
      %922 = vmatprep.subr.bf16.mxu0 0
      %923 = vmatpush1.bf16.msra.mxu0 0
      %924 = vmatprep.mubr.bf16.mxu0 0
      %925 = vmatmul.mubr.bf16.gmra.mrb[0].mxu0 %v836
      %v926 = vpop.f32.mrb[0].mxu0
      %v927 = vadd.f32 %v597, %v926
      %v928 = vpop.f32.mrb[0].mxu0
      %v929 = vadd.f32 %v597, %v928
      %v930 = vpop.f32.mrb[0].mxu0
      %v931 = vadd.f32 %v602, %v930
      %v932 = vpop.f32.mrb[0].mxu0
      %v933 = vadd.f32 %v602, %v932
      %934 = vmatprep.mubr.bf16.mxu0 0
      %935 = vmatmul.mubr.bf16.gmra.mrb[0].mxu0 %v839
      %v936 = vpop.f32.mrb[0].mxu0
      %v937 = vadd.f32 %v607, %v936
      %v938 = vpop.f32.mrb[0].mxu0
      %v939 = vadd.f32 %v607, %v938
      %v940 = vpop.f32.mrb[0].mxu0
      %v941 = vadd.f32 %v612, %v940
      %v942 = vpop.f32.mrb[0].mxu0
      %v943 = vadd.f32 %v612, %v942
      %944 = vmatprep.mubr.bf16.mxu0 0
      %945 = vmatmul.mubr.bf16.gmra.mrb[0].mxu0 %v842
      %v946 = vpop.f32.mrb[0].mxu0
      %v947 = vadd.f32 %v617, %v946
      %v948 = vpop.f32.mrb[0].mxu0
      %v949 = vadd.f32 %v617, %v948
      %v950 = vpop.f32.mrb[0].mxu0
      %v951 = vadd.f32 %v622, %v950
      %v952 = vpop.f32.mrb[0].mxu0
      %v953 = vadd.f32 %v622, %v952
      %954 = vmatprep.mubr.bf16.mxu0 0
      %955 = vmatmul.mubr.bf16.gmra.mrb[0].mxu0 %v845
      %v956 = vpop.f32.mrb[0].mxu0
      %v957 = vadd.f32 %v627, %v956
      %v958 = vpop.f32.mrb[0].mxu0
      %v959 = vadd.f32 %v627, %v958
      %v960 = vpop.f32.mrb[0].mxu0
      %v961 = vadd.f32 %v632, %v960
      %v962 = vpop.f32.mrb[0].mxu0
      %v963 = vadd.f32 %v632, %v962
      %964 = vmatprep.mubr.bf16.mxu0 0
      %965 = vmatmul.mubr.bf16.gmra.mrb[0].mxu0 %v848
      %v966 = vpop.f32.mrb[0].mxu0
      %v967 = vadd.f32 %v637, %v966
      %v968 = vpop.f32.mrb[0].mxu0
      %v969 = vadd.f32 %v637, %v968
      %v970 = vpop.f32.mrb[0].mxu0
      %v971 = vadd.f32 %v642, %v970
      %v972 = vpop.f32.mrb[0].mxu0
      %v973 = vadd.f32 %v642, %v972
      %974 = vmatprep.mubr.bf16.mxu0 0
      %975 = vmatmul.mubr.bf16.gmra.mrb[0].mxu0 %v851
      %v976 = vpop.f32.mrb[0].mxu0
      %v977 = vadd.f32 %v647, %v976
      %v978 = vpop.f32.mrb[0].mxu0
      %v979 = vadd.f32 %v647, %v978
      %v980 = vpop.f32.mrb[0].mxu0
      %v981 = vadd.f32 %v652, %v980
      %v982 = vpop.f32.mrb[0].mxu0
      %v983 = vadd.f32 %v652, %v982
      %984 = vmatprep.mubr.bf16.mxu0 0
      %985 = vmatmul.mubr.bf16.gmra.mrb[0].mxu0 %v854
      %v986 = vpop.f32.mrb[0].mxu0
      %v987 = vadd.f32 %v657, %v986
      %v988 = vpop.f32.mrb[0].mxu0
      %v989 = vadd.f32 %v657, %v988
      %v990 = vpop.f32.mrb[0].mxu0
      %v991 = vadd.f32 %v662, %v990
      %v992 = vpop.f32.mrb[0].mxu0
      %v993 = vadd.f32 %v662, %v992
      %994 = vmatprep.mubr.bf16.mxu0 0
      %995 = vmatmul.mubr.bf16.gmra.mrb[0].mxu0 %v857
      %v996 = vpop.f32.mrb[0].mxu0
      %v997 = vadd.f32 %v667, %v996
      %v998 = vpop.f32.mrb[0].mxu0
      %v999 = vadd.f32 %v667, %v998
      %v1000 = vpop.f32.mrb[0].mxu0
      %v1001 = vadd.f32 %v672, %v1000
      %v1002 = vpop.f32.mrb[0].mxu0
      %v1003 = vadd.f32 %v672, %v1002
      %1004 = vmatprep.mubr.bf16.mxu0 0
      %1005 = vmatmul.mubr.bf16.gmra.mrb[0].mxu0 %v860
      %v1006 = vpop.f32.mrb[0].mxu0
      %v1007 = vadd.f32 %v677, %v1006
      %v1008 = vpop.f32.mrb[0].mxu0
      %v1009 = vadd.f32 %v677, %v1008
      %v1010 = vpop.f32.mrb[0].mxu0
      %v1011 = vadd.f32 %v682, %v1010
      %v1012 = vpop.f32.mrb[0].mxu0
      %v1013 = vadd.f32 %v682, %v1012
      %1014 = vmatprep.mubr.bf16.mxu0 0
      %1015 = vmatmul.mubr.bf16.gmra.mrb[0].mxu0 %v863
      %v1016 = vpop.f32.mrb[0].mxu0
      %v1017 = vadd.f32 %v687, %v1016
      %v1018 = vpop.f32.mrb[0].mxu0
      %v1019 = vadd.f32 %v687, %v1018
      %v1020 = vpop.f32.mrb[0].mxu0
      %v1021 = vadd.f32 %v692, %v1020
      %v1022 = vpop.f32.mrb[0].mxu0
      %v1023 = vadd.f32 %v692, %v1022
      %1024 = vmatprep.mubr.bf16.mxu0 0
      %1025 = vmatmul.mubr.bf16.gmra.mrb[0].mxu0 %v866
      %v1026 = vpop.f32.mrb[0].mxu0
      %v1027 = vadd.f32 %v697, %v1026
      %v1028 = vpop.f32.mrb[0].mxu0
      %v1029 = vadd.f32 %v697, %v1028
      %v1030 = vpop.f32.mrb[0].mxu0
      %v1031 = vadd.f32 %v702, %v1030
      %v1032 = vpop.f32.mrb[0].mxu0
      %v1033 = vadd.f32 %v702, %v1032
      %1034 = vmatprep.mubr.bf16.mxu0 0
      %1035 = vmatmul.mubr.bf16.gmra.mrb[0].mxu0 %v869
      %v1036 = vpop.f32.mrb[0].mxu0
      %v1037 = vadd.f32 %v707, %v1036
      %v1038 = vpop.f32.mrb[0].mxu0
      %v1039 = vadd.f32 %v707, %v1038
      %v1040 = vpop.f32.mrb[0].mxu0
      %v1041 = vadd.f32 %v712, %v1040
      %v1042 = vpop.f32.mrb[0].mxu0
      %v1043 = vadd.f32 %v712, %v1042
      %1044 = vmatprep.mubr.bf16.mxu0 0
      %1045 = vmatmul.mubr.bf16.gmra.mrb[0].mxu0 %v872
      %v1046 = vpop.f32.mrb[0].mxu0
      %v1047 = vadd.f32 %v717, %v1046
      %v1048 = vpop.f32.mrb[0].mxu0
      %v1049 = vadd.f32 %v717, %v1048
      %v1050 = vpop.f32.mrb[0].mxu0
      %v1051 = vadd.f32 %v722, %v1050
      %v1052 = vpop.f32.mrb[0].mxu0
      %v1053 = vadd.f32 %v722, %v1052
      %1054 = vmatprep.mubr.bf16.mxu0 0
      %1055 = vmatmul.mubr.bf16.gmra.mrb[0].mxu0 %v875
      %v1056 = vpop.f32.mrb[0].mxu0
      %v1057 = vadd.f32 %v727, %v1056
      %v1058 = vpop.f32.mrb[0].mxu0
      %v1059 = vadd.f32 %v727, %v1058
      %v1060 = vpop.f32.mrb[0].mxu0
      %v1061 = vadd.f32 %v732, %v1060
      %v1062 = vpop.f32.mrb[0].mxu0
      %v1063 = vadd.f32 %v732, %v1062
      %1064 = vmatprep.mubr.bf16.mxu0 0
      %1065 = vmatmul.mubr.bf16.gmra.mrb[0].mxu0 %v878
      %v1066 = vpop.f32.mrb[0].mxu0
      %v1067 = vadd.f32 %v737, %v1066
      %v1068 = vpop.f32.mrb[0].mxu0
      %v1069 = vadd.f32 %v737, %v1068
      %v1070 = vpop.f32.mrb[0].mxu0
      %v1071 = vadd.f32 %v742, %v1070
      %v1072 = vpop.f32.mrb[0].mxu0
      %v1073 = vadd.f32 %v742, %v1072
      %1074 = vmatprep.mubr.bf16.mxu0 0
      %1075 = vmatmul.mubr.bf16.gmra.mrb[0].mxu0 %v881
      %v1076 = vpop.f32.mrb[0].mxu0
      %v1077 = vadd.f32 %v747, %v1076
      %v1078 = vpop.f32.mrb[0].mxu0
      %v1079 = vadd.f32 %v747, %v1078
      %v1080 = vpop.f32.mrb[0].mxu0
      %v1081 = vadd.f32 %v752, %v1080
      %v1082 = vpop.f32.mrb[0].mxu0
      %v1083 = vadd.f32 %v752, %v1082
      %1084 = vdwg.mxu0
      %1085 = vmatprep.subr.bf16.mxu0 0
      %1086 = vmatpush1.bf16.msra.mxu0 %v492
      %1087 = vmatprep.subr.bf16.mxu0 0
      %1088 = vmatpush1.bf16.msra.mxu0 %v504
      %1089 = vmatprep.subr.bf16.mxu0 0
      %1090 = vmatpush1.bf16.msra.mxu0 %v516
      %1091 = vmatprep.subr.bf16.mxu0 0
      %1092 = vmatpush1.bf16.msra.mxu0 %v528
      %1093 = vmatprep.subr.bf16.mxu0 0
      %1094 = vmatpush1.bf16.msra.mxu0 %v890
      %1095 = vmatprep.subr.bf16.mxu0 0
      %1096 = vmatpush1.bf16.msra.mxu0 0
      %1097 = vmatprep.subr.bf16.mxu0 0
      %1098 = vmatpush1.bf16.msra.mxu0 0
      %1099 = vmatprep.subr.bf16.mxu0 0
      %1100 = vmatpush1.bf16.msra.mxu0 0
      %1101 = vmatprep.subr.bf16.mxu0 0
      %1102 = vmatpush1.bf16.msra.mxu0 0
      %1103 = vmatprep.subr.bf16.mxu0 0
      %1104 = vmatpush1.bf16.msra.mxu0 0
      %1105 = vmatprep.subr.bf16.mxu0 0
      %1106 = vmatpush1.bf16.msra.mxu0 0
      %1107 = vmatprep.subr.bf16.mxu0 0
      %1108 = vmatpush1.bf16.msra.mxu0 0
      %1109 = vmatprep.subr.bf16.mxu0 0
      %1110 = vmatpush1.bf16.msra.mxu0 0
      %1111 = vmatprep.subr.bf16.mxu0 0
      %1112 = vmatpush1.bf16.msra.mxu0 0
      %1113 = vmatprep.subr.bf16.mxu0 0
      %1114 = vmatpush1.bf16.msra.mxu0 0
      %1115 = vmatprep.subr.bf16.mxu0 0
      %1116 = vmatpush1.bf16.msra.mxu0 0
      %1117 = vmatprep.mubr.bf16.mxu0 0
      %1118 = vmatmul.mubr.bf16.gmra.mrb[0].mxu0 %v836
      %v1119 = vpop.f32.mrb[0].mxu0
      %v1120 = vadd.f32 %v597, %v1119
      %v1121 = vpop.f32.mrb[0].mxu0
      %v1122 = vpop.f32.mrb[0].mxu0
      %v1123 = vadd.f32 %v602, %v1122
      %v1124 = vpop.f32.mrb[0].mxu0
      %1125 = vmatprep.mubr.bf16.mxu0 0
      %1126 = vmatmul.mubr.bf16.gmra.mrb[0].mxu0 %v839
      %v1127 = vpop.f32.mrb[0].mxu0
      %v1128 = vadd.f32 %v607, %v1127
      %v1129 = vpop.f32.mrb[0].mxu0
      %v1130 = vpop.f32.mrb[0].mxu0
      %v1131 = vadd.f32 %v612, %v1130
      %v1132 = vpop.f32.mrb[0].mxu0
      %1133 = vmatprep.mubr.bf16.mxu0 0
      %1134 = vmatmul.mubr.bf16.gmra.mrb[0].mxu0 %v842
      %v1135 = vpop.f32.mrb[0].mxu0
      %v1136 = vadd.f32 %v617, %v1135
      %v1137 = vpop.f32.mrb[0].mxu0
      %v1138 = vpop.f32.mrb[0].mxu0
      %v1139 = vadd.f32 %v622, %v1138
      %v1140 = vpop.f32.mrb[0].mxu0
      %1141 = vmatprep.mubr.bf16.mxu0 0
      %1142 = vmatmul.mubr.bf16.gmra.mrb[0].mxu0 %v845
      %v1143 = vpop.f32.mrb[0].mxu0
      %v1144 = vadd.f32 %v627, %v1143
      %v1145 = vpop.f32.mrb[0].mxu0
      %v1146 = vpop.f32.mrb[0].mxu0
      %v1147 = vadd.f32 %v632, %v1146
      %v1148 = vpop.f32.mrb[0].mxu0
      %1149 = vmatprep.mubr.bf16.mxu0 0
      %1150 = vmatmul.mubr.bf16.gmra.mrb[0].mxu0 %v848
      %v1151 = vpop.f32.mrb[0].mxu0
      %v1152 = vadd.f32 %v637, %v1151
      %v1153 = vpop.f32.mrb[0].mxu0
      %v1154 = vpop.f32.mrb[0].mxu0
      %v1155 = vadd.f32 %v642, %v1154
      %v1156 = vpop.f32.mrb[0].mxu0
      %1157 = vmatprep.mubr.bf16.mxu0 0
      %1158 = vmatmul.mubr.bf16.gmra.mrb[0].mxu0 %v851
      %v1159 = vpop.f32.mrb[0].mxu0
      %v1160 = vadd.f32 %v647, %v1159
      %v1161 = vpop.f32.mrb[0].mxu0
      %v1162 = vpop.f32.mrb[0].mxu0
      %v1163 = vadd.f32 %v652, %v1162
      %v1164 = vpop.f32.mrb[0].mxu0
      %1165 = vmatprep.mubr.bf16.mxu0 0
      %1166 = vmatmul.mubr.bf16.gmra.mrb[0].mxu0 %v854
      %v1167 = vpop.f32.mrb[0].mxu0
      %v1168 = vadd.f32 %v657, %v1167
      %v1169 = vpop.f32.mrb[0].mxu0
      %v1170 = vpop.f32.mrb[0].mxu0
      %v1171 = vadd.f32 %v662, %v1170
      %v1172 = vpop.f32.mrb[0].mxu0
      %1173 = vmatprep.mubr.bf16.mxu0 0
      %1174 = vmatmul.mubr.bf16.gmra.mrb[0].mxu0 %v857
      %v1175 = vpop.f32.mrb[0].mxu0
      %v1176 = vadd.f32 %v667, %v1175
      %v1177 = vpop.f32.mrb[0].mxu0
      %v1178 = vpop.f32.mrb[0].mxu0
      %v1179 = vadd.f32 %v672, %v1178
      %v1180 = vpop.f32.mrb[0].mxu0
      %1181 = vmatprep.mubr.bf16.mxu0 0
      %1182 = vmatmul.mubr.bf16.gmra.mrb[0].mxu0 %v860
      %v1183 = vpop.f32.mrb[0].mxu0
      %v1184 = vadd.f32 %v677, %v1183
      %v1185 = vpop.f32.mrb[0].mxu0
      %v1186 = vpop.f32.mrb[0].mxu0
      %v1187 = vadd.f32 %v682, %v1186
      %v1188 = vpop.f32.mrb[0].mxu0
      %1189 = vmatprep.mubr.bf16.mxu0 0
      %1190 = vmatmul.mubr.bf16.gmra.mrb[0].mxu0 %v863
      %v1191 = vpop.f32.mrb[0].mxu0
      %v1192 = vadd.f32 %v687, %v1191
      %v1193 = vpop.f32.mrb[0].mxu0
      %v1194 = vpop.f32.mrb[0].mxu0
      %v1195 = vadd.f32 %v692, %v1194
      %v1196 = vpop.f32.mrb[0].mxu0
      %1197 = vmatprep.mubr.bf16.mxu0 0
      %1198 = vmatmul.mubr.bf16.gmra.mrb[0].mxu0 %v866
      %v1199 = vpop.f32.mrb[0].mxu0
      %v1200 = vadd.f32 %v697, %v1199
      %v1201 = vpop.f32.mrb[0].mxu0
      %v1202 = vpop.f32.mrb[0].mxu0
      %v1203 = vadd.f32 %v702, %v1202
      %v1204 = vpop.f32.mrb[0].mxu0
      %1205 = vmatprep.mubr.bf16.mxu0 0
      %1206 = vmatmul.mubr.bf16.gmra.mrb[0].mxu0 %v869
      %v1207 = vpop.f32.mrb[0].mxu0
      %v1208 = vadd.f32 %v707, %v1207
      %v1209 = vpop.f32.mrb[0].mxu0
      %v1210 = vpop.f32.mrb[0].mxu0
      %v1211 = vadd.f32 %v712, %v1210
      %v1212 = vpop.f32.mrb[0].mxu0
      %1213 = vmatprep.mubr.bf16.mxu0 0
      %1214 = vmatmul.mubr.bf16.gmra.mrb[0].mxu0 %v872
      %v1215 = vpop.f32.mrb[0].mxu0
      %v1216 = vadd.f32 %v717, %v1215
      %v1217 = vpop.f32.mrb[0].mxu0
      %v1218 = vpop.f32.mrb[0].mxu0
      %v1219 = vadd.f32 %v722, %v1218
      %v1220 = vpop.f32.mrb[0].mxu0
      %1221 = vmatprep.mubr.bf16.mxu0 0
      %1222 = vmatmul.mubr.bf16.gmra.mrb[0].mxu0 %v875
      %v1223 = vpop.f32.mrb[0].mxu0
      %v1224 = vadd.f32 %v727, %v1223
      %v1225 = vpop.f32.mrb[0].mxu0
      %v1226 = vpop.f32.mrb[0].mxu0
      %v1227 = vadd.f32 %v732, %v1226
      %v1228 = vpop.f32.mrb[0].mxu0
      %1229 = vmatprep.mubr.bf16.mxu0 0
      %1230 = vmatmul.mubr.bf16.gmra.mrb[0].mxu0 %v878
      %v1231 = vpop.f32.mrb[0].mxu0
      %v1232 = vadd.f32 %v737, %v1231
      %v1233 = vpop.f32.mrb[0].mxu0
      %v1234 = vpop.f32.mrb[0].mxu0
      %v1235 = vadd.f32 %v742, %v1234
      %v1236 = vpop.f32.mrb[0].mxu0
      %1237 = vmatprep.mubr.bf16.mxu0 0
      %1238 = vmatmul.mubr.bf16.gmra.mrb[0].mxu0 %v881
      %v1239 = vpop.f32.mrb[0].mxu0
      %v1240 = vadd.f32 %v747, %v1239
      %v1241 = vpop.f32.mrb[0].mxu0
      %v1242 = vpop.f32.mrb[0].mxu0
      %v1243 = vadd.f32 %v752, %v1242
      %v1244 = vpop.f32.mrb[0].mxu0
      %1245 = vdwg.mxu0
      %v1246 = vmax.f32 %v927, 0.0
      %v1247 = vmax.f32 %v929, 0.0
      %v1248 = vmax.f32 %v1120, 0.0
      %v1249 = vmax.f32 %v931, 0.0
      %v1250 = vmax.f32 %v933, 0.0
      %v1251 = vmax.f32 %v1123, 0.0
      %v1252 = vmax.f32 %v937, 0.0
      %v1253 = vmax.f32 %v939, 0.0
      %v1254 = vmax.f32 %v1128, 0.0
      %v1255 = vmax.f32 %v941, 0.0
      %v1256 = vmax.f32 %v943, 0.0
      %v1257 = vmax.f32 %v1131, 0.0
      %v1258 = vmax.f32 %v947, 0.0
      %v1259 = vmax.f32 %v949, 0.0
      %v1260 = vmax.f32 %v1136, 0.0
      %v1261 = vmax.f32 %v951, 0.0
      %v1262 = vmax.f32 %v953, 0.0
      %v1263 = vmax.f32 %v1139, 0.0
      %v1264 = vmax.f32 %v957, 0.0
      %v1265 = vmax.f32 %v959, 0.0
      %v1266 = vmax.f32 %v1144, 0.0
      %v1267 = vmax.f32 %v961, 0.0
      %v1268 = vmax.f32 %v963, 0.0
      %v1269 = vmax.f32 %v1147, 0.0
      %v1270 = vmax.f32 %v967, 0.0
      %v1271 = vmax.f32 %v969, 0.0
      %v1272 = vmax.f32 %v1152, 0.0
      %v1273 = vmax.f32 %v971, 0.0
      %v1274 = vmax.f32 %v973, 0.0
      %v1275 = vmax.f32 %v1155, 0.0
      %v1276 = vmax.f32 %v977, 0.0
      %v1277 = vmax.f32 %v979, 0.0
      %v1278 = vmax.f32 %v1160, 0.0
      %v1279 = vmax.f32 %v981, 0.0
      %v1280 = vmax.f32 %v983, 0.0
      %v1281 = vmax.f32 %v1163, 0.0
      %v1282 = vmax.f32 %v987, 0.0
      %v1283 = vmax.f32 %v989, 0.0
      %v1284 = vmax.f32 %v1168, 0.0
      %v1285 = vmax.f32 %v991, 0.0
      %v1286 = vmax.f32 %v993, 0.0
      %v1287 = vmax.f32 %v1171, 0.0
      %v1288 = vmax.f32 %v997, 0.0
      %v1289 = vmax.f32 %v999, 0.0
      %v1290 = vmax.f32 %v1176, 0.0
      %v1291 = vmax.f32 %v1001, 0.0
      %v1292 = vmax.f32 %v1003, 0.0
      %v1293 = vmax.f32 %v1179, 0.0
      %v1294 = vmax.f32 %v1007, 0.0
      %v1295 = vmax.f32 %v1009, 0.0
      %v1296 = vmax.f32 %v1184, 0.0
      %v1297 = vmax.f32 %v1011, 0.0
      %v1298 = vmax.f32 %v1013, 0.0
      %v1299 = vmax.f32 %v1187, 0.0
      %v1300 = vmax.f32 %v1017, 0.0
      %v1301 = vmax.f32 %v1019, 0.0
      %v1302 = vmax.f32 %v1192, 0.0
      %v1303 = vmax.f32 %v1021, 0.0
      %v1304 = vmax.f32 %v1023, 0.0
      %v1305 = vmax.f32 %v1195, 0.0
      %v1306 = vmax.f32 %v1027, 0.0
      %v1307 = vmax.f32 %v1029, 0.0
      %v1308 = vmax.f32 %v1200, 0.0
      %v1309 = vmax.f32 %v1031, 0.0
      %v1310 = vmax.f32 %v1033, 0.0
      %v1311 = vmax.f32 %v1203, 0.0
      %v1312 = vmax.f32 %v1037, 0.0
      %v1313 = vmax.f32 %v1039, 0.0
      %v1314 = vmax.f32 %v1208, 0.0
      %v1315 = vmax.f32 %v1041, 0.0
      %v1316 = vmax.f32 %v1043, 0.0
      %v1317 = vmax.f32 %v1211, 0.0
      %v1318 = vmax.f32 %v1047, 0.0
      %v1319 = vmax.f32 %v1049, 0.0
      %v1320 = vmax.f32 %v1216, 0.0
      %v1321 = vmax.f32 %v1051, 0.0
      %v1322 = vmax.f32 %v1053, 0.0
      %v1323 = vmax.f32 %v1219, 0.0
      %v1324 = vmax.f32 %v1057, 0.0
      %v1325 = vmax.f32 %v1059, 0.0
      %v1326 = vmax.f32 %v1224, 0.0
      %v1327 = vmax.f32 %v1061, 0.0
      %v1328 = vmax.f32 %v1063, 0.0
      %v1329 = vmax.f32 %v1227, 0.0
      %v1330 = vmax.f32 %v1067, 0.0
      %v1331 = vmax.f32 %v1069, 0.0
      %v1332 = vmax.f32 %v1232, 0.0
      %v1333 = vmax.f32 %v1071, 0.0
      %v1334 = vmax.f32 %v1073, 0.0
      %v1335 = vmax.f32 %v1235, 0.0
      %v1336 = vmax.f32 %v1077, 0.0
      %v1337 = vmax.f32 %v1079, 0.0
      %v1338 = vmax.f32 %v1240, 0.0
      %v1339 = vmax.f32 %v1081, 0.0
      %v1340 = vmax.f32 %v1083, 0.0
      %v1341 = vmax.f32 %v1243, 0.0
      %v1343 = vlaneseq
      %v1344 = vshrl.u32 %v1343, 7
      %v1345 = vsub.s32 0, %v1344
      %v1346 = vrot.slane %v359, %v1345
      %v1347 = vlaneseq
      %v1348 = vshrl.u32 %v1347, 7
      %v1349 = vsub.s32 1, %v1348
      %v1350 = vrot.slane %v359, %v1349
      %v1351 = vlaneseq
      %v1352 = vshrl.u32 %v1351, 7
      %v1353 = vsub.s32 2, %v1352
      %v1354 = vrot.slane %v359, %v1353
      %v1358 = vmul.f32 %v1246, %v1346
      %v1359 = vmul.f32 %v1247, %v1350
      %v1360 = vmul.f32 %v1248, %v1354
      %v1361 = vmul.f32 %v1249, %v1346
      %v1362 = vmul.f32 %v1250, %v1350
      %v1363 = vmul.f32 %v1251, %v1354
      %v1364 = vmul.f32 %v1252, %v1346
      %v1365 = vmul.f32 %v1253, %v1350
      %v1366 = vmul.f32 %v1254, %v1354
      %v1367 = vmul.f32 %v1255, %v1346
      %v1368 = vmul.f32 %v1256, %v1350
      %v1369 = vmul.f32 %v1257, %v1354
      %v1370 = vmul.f32 %v1258, %v1346
      %v1371 = vmul.f32 %v1259, %v1350
      %v1372 = vmul.f32 %v1260, %v1354
      %v1373 = vmul.f32 %v1261, %v1346
      %v1374 = vmul.f32 %v1262, %v1350
      %v1375 = vmul.f32 %v1263, %v1354
      %v1376 = vmul.f32 %v1264, %v1346
      %v1377 = vmul.f32 %v1265, %v1350
      %v1378 = vmul.f32 %v1266, %v1354
      %v1379 = vmul.f32 %v1267, %v1346
      %v1380 = vmul.f32 %v1268, %v1350
      %v1381 = vmul.f32 %v1269, %v1354
      %v1382 = vmul.f32 %v1270, %v1346
      %v1383 = vmul.f32 %v1271, %v1350
      %v1384 = vmul.f32 %v1272, %v1354
      %v1385 = vmul.f32 %v1273, %v1346
      %v1386 = vmul.f32 %v1274, %v1350
      %v1387 = vmul.f32 %v1275, %v1354
      %v1388 = vmul.f32 %v1276, %v1346
      %v1389 = vmul.f32 %v1277, %v1350
      %v1390 = vmul.f32 %v1278, %v1354
      %v1391 = vmul.f32 %v1279, %v1346
      %v1392 = vmul.f32 %v1280, %v1350
      %v1393 = vmul.f32 %v1281, %v1354
      %v1394 = vmul.f32 %v1282, %v1346
      %v1395 = vmul.f32 %v1283, %v1350
      %v1396 = vmul.f32 %v1284, %v1354
      %v1397 = vmul.f32 %v1285, %v1346
      %v1398 = vmul.f32 %v1286, %v1350
      %v1399 = vmul.f32 %v1287, %v1354
      %v1400 = vmul.f32 %v1288, %v1346
      %v1401 = vmul.f32 %v1289, %v1350
      %v1402 = vmul.f32 %v1290, %v1354
      %v1403 = vmul.f32 %v1291, %v1346
      %v1404 = vmul.f32 %v1292, %v1350
      %v1405 = vmul.f32 %v1293, %v1354
      %v1406 = vmul.f32 %v1294, %v1346
      %v1407 = vmul.f32 %v1295, %v1350
      %v1408 = vmul.f32 %v1296, %v1354
      %v1409 = vmul.f32 %v1297, %v1346
      %v1410 = vmul.f32 %v1298, %v1350
      %v1411 = vmul.f32 %v1299, %v1354
      %v1412 = vmul.f32 %v1300, %v1346
      %v1413 = vmul.f32 %v1301, %v1350
      %v1414 = vmul.f32 %v1302, %v1354
      %v1415 = vmul.f32 %v1303, %v1346
      %v1416 = vmul.f32 %v1304, %v1350
      %v1417 = vmul.f32 %v1305, %v1354
      %v1418 = vmul.f32 %v1306, %v1346
      %v1419 = vmul.f32 %v1307, %v1350
      %v1420 = vmul.f32 %v1308, %v1354
      %v1421 = vmul.f32 %v1309, %v1346
      %v1422 = vmul.f32 %v1310, %v1350
      %v1423 = vmul.f32 %v1311, %v1354
      %v1424 = vmul.f32 %v1312, %v1346
      %v1425 = vmul.f32 %v1313, %v1350
      %v1426 = vmul.f32 %v1314, %v1354
      %v1427 = vmul.f32 %v1315, %v1346
      %v1428 = vmul.f32 %v1316, %v1350
      %v1429 = vmul.f32 %v1317, %v1354
      %v1430 = vmul.f32 %v1318, %v1346
      %v1431 = vmul.f32 %v1319, %v1350
      %v1432 = vmul.f32 %v1320, %v1354
      %v1433 = vmul.f32 %v1321, %v1346
      %v1434 = vmul.f32 %v1322, %v1350
      %v1435 = vmul.f32 %v1323, %v1354
      %v1436 = vmul.f32 %v1324, %v1346
      %v1437 = vmul.f32 %v1325, %v1350
      %v1438 = vmul.f32 %v1326, %v1354
      %v1439 = vmul.f32 %v1327, %v1346
      %v1440 = vmul.f32 %v1328, %v1350
      %v1441 = vmul.f32 %v1329, %v1354
      %v1442 = vmul.f32 %v1330, %v1346
      %v1443 = vmul.f32 %v1331, %v1350
      %v1444 = vmul.f32 %v1332, %v1354
      %v1445 = vmul.f32 %v1333, %v1346
      %v1446 = vmul.f32 %v1334, %v1350
      %v1447 = vmul.f32 %v1335, %v1354
      %v1448 = vmul.f32 %v1336, %v1346
      %v1449 = vmul.f32 %v1337, %v1350
      %v1450 = vmul.f32 %v1338, %v1354
      %v1451 = vmul.f32 %v1339, %v1346
      %v1452 = vmul.f32 %v1340, %v1350
      %v1453 = vmul.f32 %v1341, %v1354
      %v1454 = vpack.c.bf16 %v1361, %v1358
      %v1455 = vpack.c.bf16 %v1362, %v1359
      %v1456 = vpack.c.bf16 %v1363, %v1360
      %v1457 = vpack.c.bf16 %v1367, %v1364
      %v1458 = vpack.c.bf16 %v1368, %v1365
      %v1459 = vpack.c.bf16 %v1369, %v1366
      %v1460 = vpack.c.bf16 %v1373, %v1370
      %v1461 = vpack.c.bf16 %v1374, %v1371
      %v1462 = vpack.c.bf16 %v1375, %v1372
      %v1463 = vpack.c.bf16 %v1379, %v1376
      %v1464 = vpack.c.bf16 %v1380, %v1377
      %v1465 = vpack.c.bf16 %v1381, %v1378
      %v1466 = vpack.c.bf16 %v1385, %v1382
      %v1467 = vpack.c.bf16 %v1386, %v1383
      %v1468 = vpack.c.bf16 %v1387, %v1384
      %v1469 = vpack.c.bf16 %v1391, %v1388
      %v1470 = vpack.c.bf16 %v1392, %v1389
      %v1471 = vpack.c.bf16 %v1393, %v1390
      %v1472 = vpack.c.bf16 %v1397, %v1394
      %v1473 = vpack.c.bf16 %v1398, %v1395
      %v1474 = vpack.c.bf16 %v1399, %v1396
      %v1475 = vpack.c.bf16 %v1403, %v1400
      %v1476 = vpack.c.bf16 %v1404, %v1401
      %v1477 = vpack.c.bf16 %v1405, %v1402
      %v1478 = vpack.c.bf16 %v1409, %v1406
      %v1479 = vpack.c.bf16 %v1410, %v1407
      %v1480 = vpack.c.bf16 %v1411, %v1408
      %v1481 = vpack.c.bf16 %v1415, %v1412
      %v1482 = vpack.c.bf16 %v1416, %v1413
      %v1483 = vpack.c.bf16 %v1417, %v1414
      %v1484 = vpack.c.bf16 %v1421, %v1418
      %v1485 = vpack.c.bf16 %v1422, %v1419
      %v1486 = vpack.c.bf16 %v1423, %v1420
      %v1487 = vpack.c.bf16 %v1427, %v1424
      %v1488 = vpack.c.bf16 %v1428, %v1425
      %v1489 = vpack.c.bf16 %v1429, %v1426
      %v1490 = vpack.c.bf16 %v1433, %v1430
      %v1491 = vpack.c.bf16 %v1434, %v1431
      %v1492 = vpack.c.bf16 %v1435, %v1432
      %v1493 = vpack.c.bf16 %v1439, %v1436
      %v1494 = vpack.c.bf16 %v1440, %v1437
      %v1495 = vpack.c.bf16 %v1441, %v1438
      %v1496 = vpack.c.bf16 %v1445, %v1442
      %v1497 = vpack.c.bf16 %v1446, %v1443
      %v1498 = vpack.c.bf16 %v1447, %v1444
      %v1499 = vpack.c.bf16 %v1451, %v1448
      %v1500 = vpack.c.bf16 %v1452, %v1449
      %v1501 = vpack.c.bf16 %v1453, %v1450
      %1550 = vrot.lane.b32.xlu0 %v1454, 19
      %v1551 = vpop.permute.xlu0 %1550
      %1552 = vrot.lane.b32.xlu0 %v1455, 19
      %v1553 = vpop.permute.xlu0 %1552
      %1554 = vrot.lane.b32.xlu0 %v1456, 19
      %v1555 = vpop.permute.xlu0 %1554
      %1556 = vrot.lane.b32.xlu0 %v1457, 19
      %v1557 = vpop.permute.xlu0 %1556
      %1558 = vrot.lane.b32.xlu0 %v1458, 19
      %v1559 = vpop.permute.xlu0 %1558
      %1560 = vrot.lane.b32.xlu0 %v1459, 19
      %v1561 = vpop.permute.xlu0 %1560
      %1562 = vrot.lane.b32.xlu0 %v1460, 19
      %v1563 = vpop.permute.xlu0 %1562
      %1564 = vrot.lane.b32.xlu0 %v1461, 19
      %v1565 = vpop.permute.xlu0 %1564
      %1566 = vrot.lane.b32.xlu0 %v1462, 19
      %v1567 = vpop.permute.xlu0 %1566
      %1568 = vrot.lane.b32.xlu0 %v1463, 19
      %v1569 = vpop.permute.xlu0 %1568
      %1570 = vrot.lane.b32.xlu0 %v1464, 19
      %v1571 = vpop.permute.xlu0 %1570
      %1572 = vrot.lane.b32.xlu0 %v1465, 19
      %v1573 = vpop.permute.xlu0 %1572
      %1574 = vrot.lane.b32.xlu0 %v1466, 19
      %v1575 = vpop.permute.xlu0 %1574
      %1576 = vrot.lane.b32.xlu0 %v1467, 19
      %v1577 = vpop.permute.xlu0 %1576
      %1578 = vrot.lane.b32.xlu0 %v1468, 19
      %v1579 = vpop.permute.xlu0 %1578
      %1580 = vrot.lane.b32.xlu0 %v1469, 19
      %v1581 = vpop.permute.xlu0 %1580
      %1582 = vrot.lane.b32.xlu0 %v1470, 19
      %v1583 = vpop.permute.xlu0 %1582
      %1584 = vrot.lane.b32.xlu0 %v1471, 19
      %v1585 = vpop.permute.xlu0 %1584
      %1586 = vrot.lane.b32.xlu0 %v1472, 19
      %v1587 = vpop.permute.xlu0 %1586
      %1588 = vrot.lane.b32.xlu0 %v1473, 19
      %v1589 = vpop.permute.xlu0 %1588
      %1590 = vrot.lane.b32.xlu0 %v1474, 19
      %v1591 = vpop.permute.xlu0 %1590
      %1592 = vrot.lane.b32.xlu0 %v1475, 19
      %v1593 = vpop.permute.xlu0 %1592
      %1594 = vrot.lane.b32.xlu0 %v1476, 19
      %v1595 = vpop.permute.xlu0 %1594
      %1596 = vrot.lane.b32.xlu0 %v1477, 19
      %v1597 = vpop.permute.xlu0 %1596
      %1598 = vrot.lane.b32.xlu0 %v1478, 19
      %v1599 = vpop.permute.xlu0 %1598
      %1600 = vrot.lane.b32.xlu0 %v1479, 19
      %v1601 = vpop.permute.xlu0 %1600
      %1602 = vrot.lane.b32.xlu0 %v1480, 19
      %v1603 = vpop.permute.xlu0 %1602
      %1604 = vrot.lane.b32.xlu0 %v1481, 19
      %v1605 = vpop.permute.xlu0 %1604
      %1606 = vrot.lane.b32.xlu0 %v1482, 19
      %v1607 = vpop.permute.xlu0 %1606
      %1608 = vrot.lane.b32.xlu0 %v1483, 19
      %v1609 = vpop.permute.xlu0 %1608
      %1610 = vrot.lane.b32.xlu0 %v1484, 19
      %v1611 = vpop.permute.xlu0 %1610
      %1612 = vrot.lane.b32.xlu0 %v1485, 19
      %v1613 = vpop.permute.xlu0 %1612
      %1614 = vrot.lane.b32.xlu0 %v1486, 19
      %v1615 = vpop.permute.xlu0 %1614
      %1616 = vrot.lane.b32.xlu0 %v1487, 19
      %v1617 = vpop.permute.xlu0 %1616
      %1618 = vrot.lane.b32.xlu0 %v1488, 19
      %v1619 = vpop.permute.xlu0 %1618
      %1620 = vrot.lane.b32.xlu0 %v1489, 19
      %v1621 = vpop.permute.xlu0 %1620
      %1622 = vrot.lane.b32.xlu0 %v1490, 19
      %v1623 = vpop.permute.xlu0 %1622
      %1624 = vrot.lane.b32.xlu0 %v1491, 19
      %v1625 = vpop.permute.xlu0 %1624
      %1626 = vrot.lane.b32.xlu0 %v1492, 19
      %v1627 = vpop.permute.xlu0 %1626
      %1628 = vrot.lane.b32.xlu0 %v1493, 19
      %v1629 = vpop.permute.xlu0 %1628
      %1630 = vrot.lane.b32.xlu0 %v1494, 19
      %v1631 = vpop.permute.xlu0 %1630
      %1632 = vrot.lane.b32.xlu0 %v1495, 19
      %v1633 = vpop.permute.xlu0 %1632
      %1634 = vrot.lane.b32.xlu0 %v1496, 19
      %v1635 = vpop.permute.xlu0 %1634
      %1636 = vrot.lane.b32.xlu0 %v1497, 19
      %v1637 = vpop.permute.xlu0 %1636
      %1638 = vrot.lane.b32.xlu0 %v1498, 19
      %v1639 = vpop.permute.xlu0 %1638
      %1640 = vrot.lane.b32.xlu0 %v1499, 19
      %v1641 = vpop.permute.xlu0 %1640
      %1642 = vrot.lane.b32.xlu0 %v1500, 19
      %v1643 = vpop.permute.xlu0 %1642
      %1644 = vrot.lane.b32.xlu0 %v1501, 19
      %v1645 = vpop.permute.xlu0 %1644
      %vm1646 = vcmask 154624
      %v1647 = vsel %vm1646, %v1551, %v1553
      %v1648 = vsel %vm1646, %v1553, %v1555
      %v1649 = vsel %vm1646, %v1557, %v1559
      %v1650 = vsel %vm1646, %v1559, %v1561
      %v1651 = vsel %vm1646, %v1563, %v1565
      %v1652 = vsel %vm1646, %v1565, %v1567
      %v1653 = vsel %vm1646, %v1569, %v1571
      %v1654 = vsel %vm1646, %v1571, %v1573
      %v1655 = vsel %vm1646, %v1575, %v1577
      %v1656 = vsel %vm1646, %v1577, %v1579
      %v1657 = vsel %vm1646, %v1581, %v1583
      %v1658 = vsel %vm1646, %v1583, %v1585
      %v1659 = vsel %vm1646, %v1587, %v1589
      %v1660 = vsel %vm1646, %v1589, %v1591
      %v1661 = vsel %vm1646, %v1593, %v1595
      %v1662 = vsel %vm1646, %v1595, %v1597
      %v1663 = vsel %vm1646, %v1599, %v1601
      %v1664 = vsel %vm1646, %v1601, %v1603
      %v1665 = vsel %vm1646, %v1605, %v1607
      %v1666 = vsel %vm1646, %v1607, %v1609
      %v1667 = vsel %vm1646, %v1611, %v1613
      %v1668 = vsel %vm1646, %v1613, %v1615
      %v1669 = vsel %vm1646, %v1617, %v1619
      %v1670 = vsel %vm1646, %v1619, %v1621
      %v1671 = vsel %vm1646, %v1623, %v1625
      %v1672 = vsel %vm1646, %v1625, %v1627
      %v1673 = vsel %vm1646, %v1629, %v1631
      %v1674 = vsel %vm1646, %v1631, %v1633
      %v1675 = vsel %vm1646, %v1635, %v1637
      %v1676 = vsel %vm1646, %v1637, %v1639
      %v1677 = vsel %vm1646, %v1641, %v1643
      %v1678 = vsel %vm1646, %v1643, %v1645
      %vm1727 = vcmask 1047704
      %1728 = vst.msk [vmem:[#allocation2] sm:$0xff] %vm1727, %v1551
      %1729 = vst [vmem:[#allocation2 + $0x8] sm:$0xff] %v1647
      %vm1730 = vcmask 400384
      %1731 = vst.msk [vmem:[#allocation2 + $0x10] sm:$0xff] %vm1730, %v1648
      %1732 = vst.msk [vmem:[#allocation2 + $0x18] sm:$0xff] %vm1727, %v1557
      %1733 = vst [vmem:[#allocation2 + $0x20] sm:$0xff] %v1649
      %1734 = vst.msk [vmem:[#allocation2 + $0x28] sm:$0xff] %vm1730, %v1650
      %1735 = vst.msk [vmem:[#allocation2 + $0x30] sm:$0xff] %vm1727, %v1563
      %1736 = vst [vmem:[#allocation2 + $0x38] sm:$0xff] %v1651
      %1737 = vst.msk [vmem:[#allocation2 + $0x40] sm:$0xff] %vm1730, %v1652
      %1738 = vst.msk [vmem:[#allocation2 + $0x48] sm:$0xff] %vm1727, %v1569
      %1739 = vst [vmem:[#allocation2 + $0x50] sm:$0xff] %v1653
      %1740 = vst.msk [vmem:[#allocation2 + $0x58] sm:$0xff] %vm1730, %v1654
      %1741 = vst.msk [vmem:[#allocation2 + $0x60] sm:$0xff] %vm1727, %v1575
      %1742 = vst [vmem:[#allocation2 + $0x68] sm:$0xff] %v1655
      %1743 = vst.msk [vmem:[#allocation2 + $0x70] sm:$0xff] %vm1730, %v1656
      %1744 = vst.msk [vmem:[#allocation2 + $0x78] sm:$0xff] %vm1727, %v1581
      %1745 = vst [vmem:[#allocation2 + $0x80] sm:$0xff] %v1657
      %1746 = vst.msk [vmem:[#allocation2 + $0x88] sm:$0xff] %vm1730, %v1658
      %1747 = vst.msk [vmem:[#allocation2 + $0x90] sm:$0xff] %vm1727, %v1587
      %1748 = vst [vmem:[#allocation2 + $0x98] sm:$0xff] %v1659
      %1749 = vst.msk [vmem:[#allocation2 + $0xa0] sm:$0xff] %vm1730, %v1660
      %1750 = vst.msk [vmem:[#allocation2 + $0xa8] sm:$0xff] %vm1727, %v1593
      %1751 = vst [vmem:[#allocation2 + $0xb0] sm:$0xff] %v1661
      %1752 = vst.msk [vmem:[#allocation2 + $0xb8] sm:$0xff] %vm1730, %v1662
      %1753 = vst.msk [vmem:[#allocation2 + $0xc0] sm:$0xff] %vm1727, %v1599
      %1754 = vst [vmem:[#allocation2 + $0xc8] sm:$0xff] %v1663
      %1755 = vst.msk [vmem:[#allocation2 + $0xd0] sm:$0xff] %vm1730, %v1664
      %1756 = vst.msk [vmem:[#allocation2 + $0xd8] sm:$0xff] %vm1727, %v1605
      %1757 = vst [vmem:[#allocation2 + $0xe0] sm:$0xff] %v1665
      %1758 = vst.msk [vmem:[#allocation2 + $0xe8] sm:$0xff] %vm1730, %v1666
      %1759 = vst.msk [vmem:[#allocation2 + $0xf0] sm:$0xff] %vm1727, %v1611
      %1760 = vst [vmem:[#allocation2 + $0xf8] sm:$0xff] %v1667
      %1761 = vst.msk [vmem:[#allocation2 + $0x100] sm:$0xff] %vm1730, %v1668
      %1762 = vst.msk [vmem:[#allocation2 + $0x108] sm:$0xff] %vm1727, %v1617
      %1763 = vst [vmem:[#allocation2 + $0x110] sm:$0xff] %v1669
      %1764 = vst.msk [vmem:[#allocation2 + $0x118] sm:$0xff] %vm1730, %v1670
      %1765 = vst.msk [vmem:[#allocation2 + $0x120] sm:$0xff] %vm1727, %v1623
      %1766 = vst [vmem:[#allocation2 + $0x128] sm:$0xff] %v1671
      %1767 = vst.msk [vmem:[#allocation2 + $0x130] sm:$0xff] %vm1730, %v1672
      %1768 = vst.msk [vmem:[#allocation2 + $0x138] sm:$0xff] %vm1727, %v1629
      %1769 = vst [vmem:[#allocation2 + $0x140] sm:$0xff] %v1673
      %1770 = vst.msk [vmem:[#allocation2 + $0x148] sm:$0xff] %vm1730, %v1674
      %1771 = vst.msk [vmem:[#allocation2 + $0x150] sm:$0xff] %vm1727, %v1635
      %1772 = vst [vmem:[#allocation2 + $0x158] sm:$0xff] %v1675
      %1773 = vst.msk [vmem:[#allocation2 + $0x160] sm:$0xff] %vm1730, %v1676
      %1774 = vst.msk [vmem:[#allocation2 + $0x168] sm:$0xff] %vm1727, %v1641
      %1775 = vst [vmem:[#allocation2 + $0x170] sm:$0xff] %v1677
      %1776 = vst.msk [vmem:[#allocation2 + $0x178] sm:$0xff] %vm1730, %v1678
      %v1777 = vld [vmem:[#allocation2] sm:$0xff]
      %v1778 = vld [vmem:[#allocation2 + $0x8] sm:$0xff]
      %v1779 = vld [vmem:[#allocation2 + $0x10] sm:$0xff]
      %v1780 = vld [vmem:[#allocation2 + $0x18] sm:$0xff]
      %v1781 = vld [vmem:[#allocation2 + $0x20] sm:$0xff]
      %v1782 = vld [vmem:[#allocation2 + $0x28] sm:$0xff]
      %v1783 = vld [vmem:[#allocation2 + $0x30] sm:$0xff]
      %v1784 = vld [vmem:[#allocation2 + $0x38] sm:$0xff]
      %v1785 = vld [vmem:[#allocation2 + $0x40] sm:$0xff]
      %v1786 = vld [vmem:[#allocation2 + $0x48] sm:$0xff]
      %v1787 = vld [vmem:[#allocation2 + $0x50] sm:$0xff]
      %v1788 = vld [vmem:[#allocation2 + $0x58] sm:$0xff]
      %v1789 = vld [vmem:[#allocation2 + $0x60] sm:$0xff]
      %v1790 = vld [vmem:[#allocation2 + $0x68] sm:$0xff]
      %v1791 = vld [vmem:[#allocation2 + $0x70] sm:$0xff]
      %v1792 = vld [vmem:[#allocation2 + $0x78] sm:$0xff]
      %v1793 = vld [vmem:[#allocation2 + $0x80] sm:$0xff]
      %v1794 = vld [vmem:[#allocation2 + $0x88] sm:$0xff]
      %v1795 = vld [vmem:[#allocation2 + $0x90] sm:$0xff]
      %v1796 = vld [vmem:[#allocation2 + $0x98] sm:$0xff]
      %v1797 = vld [vmem:[#allocation2 + $0xa0] sm:$0xff]
      %v1798 = vld [vmem:[#allocation2 + $0xa8] sm:$0xff]
      %v1799 = vld [vmem:[#allocation2 + $0xb0] sm:$0xff]
      %v1800 = vld [vmem:[#allocation2 + $0xb8] sm:$0xff]
      %v1801 = vld [vmem:[#allocation2 + $0xc0] sm:$0xff]
      %v1802 = vld [vmem:[#allocation2 + $0xc8] sm:$0xff]
      %v1803 = vld [vmem:[#allocation2 + $0xd0] sm:$0xff]
      %v1804 = vld [vmem:[#allocation2 + $0xd8] sm:$0xff]
      %v1805 = vld [vmem:[#allocation2 + $0xe0] sm:$0xff]
      %v1806 = vld [vmem:[#allocation2 + $0xe8] sm:$0xff]
      %v1807 = vld [vmem:[#allocation2 + $0xf0] sm:$0xff]
      %v1808 = vld [vmem:[#allocation2 + $0xf8] sm:$0xff]
      %v1809 = vld [vmem:[#allocation2 + $0x100] sm:$0xff]
      %v1810 = vld [vmem:[#allocation2 + $0x108] sm:$0xff]
      %v1811 = vld [vmem:[#allocation2 + $0x110] sm:$0xff]
      %v1812 = vld [vmem:[#allocation2 + $0x118] sm:$0xff]
      %v1813 = vld [vmem:[#allocation2 + $0x120] sm:$0xff]
      %v1814 = vld [vmem:[#allocation2 + $0x128] sm:$0xff]
      %v1815 = vld [vmem:[#allocation2 + $0x130] sm:$0xff]
      %v1816 = vld [vmem:[#allocation2 + $0x138] sm:$0xff]
      %v1817 = vld [vmem:[#allocation2 + $0x140] sm:$0xff]
      %v1818 = vld [vmem:[#allocation2 + $0x148] sm:$0xff]
      %v1819 = vld [vmem:[#allocation2 + $0x150] sm:$0xff]
      %v1820 = vld [vmem:[#allocation2 + $0x158] sm:$0xff]
      %v1821 = vld [vmem:[#allocation2 + $0x160] sm:$0xff]
      %v1822 = vld [vmem:[#allocation2 + $0x168] sm:$0xff]
      %v1823 = vld [vmem:[#allocation2 + $0x170] sm:$0xff]
      %v1824 = vld [vmem:[#allocation2 + $0x178] sm:$0xff]
      %v1825 = vld [vmem:[%s6] sm:$0xff]
      %v1826 = vld [vmem:[%s6 + $0x8] sm:$0xff]
      %v1827 = vld [vmem:[%s6 + $0x10] sm:$0xff]
      %v1828 = vld [vmem:[%s6 + $0x18] sm:$0xff]
      %s1829 = scalar_lea.vmem %s6, 32
      %v1830 = vld [vmem:[%s1829] sm:$0xff]
      %v1831 = vld [vmem:[%s1829 + $0x8] sm:$0xff]
      %v1832 = vld [vmem:[%s1829 + $0x10] sm:$0xff]
      %v1833 = vld [vmem:[%s1829 + $0x18] sm:$0xff]
      %v1838 = vunpack.c.l.b16 %v1830
      %v1839 = vunpack.c.h.b16 %v1830
      %v1840 = vunpack.c.l.b16 %v1831
      %v1841 = vunpack.c.h.b16 %v1831
      %v1842 = vunpack.c.l.b16 %v1832
      %v1843 = vunpack.c.h.b16 %v1832
      %v1844 = vunpack.c.l.b16 %v1833
      %v1845 = vunpack.c.h.b16 %v1833
      %v1846 = vpack.c.b16 %v1840, %v1838
      %v1847 = vpack.c.b16 %v1841, %v1839
      %v1848 = vpack.c.b16 %v1844, %v1842
      %v1849 = vpack.c.b16 %v1845, %v1843
      %1902 = vrot.lane.b32.xlu0 %v1777, 127
      %v1903 = vpop.permute.xlu0 %1902
      %1904 = vrot.lane.b32.xlu0 %v1778, 127
      %v1905 = vpop.permute.xlu0 %1904
      %1906 = vrot.lane.b32.xlu0 %v1779, 127
      %v1907 = vpop.permute.xlu0 %1906
      %1908 = vrot.lane.b32.xlu0 %v1780, 127
      %v1909 = vpop.permute.xlu0 %1908
      %1910 = vrot.lane.b32.xlu0 %v1781, 127
      %v1911 = vpop.permute.xlu0 %1910
      %1912 = vrot.lane.b32.xlu0 %v1782, 127
      %v1913 = vpop.permute.xlu0 %1912
      %1914 = vrot.lane.b32.xlu0 %v1783, 127
      %v1915 = vpop.permute.xlu0 %1914
      %1916 = vrot.lane.b32.xlu0 %v1784, 127
      %v1917 = vpop.permute.xlu0 %1916
      %1918 = vrot.lane.b32.xlu0 %v1785, 127
      %v1919 = vpop.permute.xlu0 %1918
      %1920 = vrot.lane.b32.xlu0 %v1786, 127
      %v1921 = vpop.permute.xlu0 %1920
      %1922 = vrot.lane.b32.xlu0 %v1787, 127
      %v1923 = vpop.permute.xlu0 %1922
      %1924 = vrot.lane.b32.xlu0 %v1788, 127
      %v1925 = vpop.permute.xlu0 %1924
      %1926 = vrot.lane.b32.xlu0 %v1789, 127
      %v1927 = vpop.permute.xlu0 %1926
      %1928 = vrot.lane.b32.xlu0 %v1790, 127
      %v1929 = vpop.permute.xlu0 %1928
      %1930 = vrot.lane.b32.xlu0 %v1791, 127
      %v1931 = vpop.permute.xlu0 %1930
      %1932 = vrot.lane.b32.xlu0 %v1792, 127
      %v1933 = vpop.permute.xlu0 %1932
      %1934 = vrot.lane.b32.xlu0 %v1793, 127
      %v1935 = vpop.permute.xlu0 %1934
      %1936 = vrot.lane.b32.xlu0 %v1794, 127
      %v1937 = vpop.permute.xlu0 %1936
      %1938 = vrot.lane.b32.xlu0 %v1795, 127
      %v1939 = vpop.permute.xlu0 %1938
      %1940 = vrot.lane.b32.xlu0 %v1796, 127
      %v1941 = vpop.permute.xlu0 %1940
      %1942 = vrot.lane.b32.xlu0 %v1797, 127
      %v1943 = vpop.permute.xlu0 %1942
      %1944 = vrot.lane.b32.xlu0 %v1798, 127
      %v1945 = vpop.permute.xlu0 %1944
      %1946 = vrot.lane.b32.xlu0 %v1799, 127
      %v1947 = vpop.permute.xlu0 %1946
      %1948 = vrot.lane.b32.xlu0 %v1800, 127
      %v1949 = vpop.permute.xlu0 %1948
      %1950 = vrot.lane.b32.xlu0 %v1801, 127
      %v1951 = vpop.permute.xlu0 %1950
      %1952 = vrot.lane.b32.xlu0 %v1802, 127
      %v1953 = vpop.permute.xlu0 %1952
      %1954 = vrot.lane.b32.xlu0 %v1803, 127
      %v1955 = vpop.permute.xlu0 %1954
      %1956 = vrot.lane.b32.xlu0 %v1804, 127
      %v1957 = vpop.permute.xlu0 %1956
      %1958 = vrot.lane.b32.xlu0 %v1805, 127
      %v1959 = vpop.permute.xlu0 %1958
      %1960 = vrot.lane.b32.xlu0 %v1806, 127
      %v1961 = vpop.permute.xlu0 %1960
      %1962 = vrot.lane.b32.xlu0 %v1807, 127
      %v1963 = vpop.permute.xlu0 %1962
      %1964 = vrot.lane.b32.xlu0 %v1808, 127
      %v1965 = vpop.permute.xlu0 %1964
      %1966 = vrot.lane.b32.xlu0 %v1809, 127
      %v1967 = vpop.permute.xlu0 %1966
      %1968 = vrot.lane.b32.xlu0 %v1810, 127
      %v1969 = vpop.permute.xlu0 %1968
      %1970 = vrot.lane.b32.xlu0 %v1811, 127
      %v1971 = vpop.permute.xlu0 %1970
      %1972 = vrot.lane.b32.xlu0 %v1812, 127
      %v1973 = vpop.permute.xlu0 %1972
      %1974 = vrot.lane.b32.xlu0 %v1813, 127
      %v1975 = vpop.permute.xlu0 %1974
      %1976 = vrot.lane.b32.xlu0 %v1814, 127
      %v1977 = vpop.permute.xlu0 %1976
      %1978 = vrot.lane.b32.xlu0 %v1815, 127
      %v1979 = vpop.permute.xlu0 %1978
      %1980 = vrot.lane.b32.xlu0 %v1816, 127
      %v1981 = vpop.permute.xlu0 %1980
      %1982 = vrot.lane.b32.xlu0 %v1817, 127
      %v1983 = vpop.permute.xlu0 %1982
      %1984 = vrot.lane.b32.xlu0 %v1818, 127
      %v1985 = vpop.permute.xlu0 %1984
      %1986 = vrot.lane.b32.xlu0 %v1819, 127
      %v1987 = vpop.permute.xlu0 %1986
      %1988 = vrot.lane.b32.xlu0 %v1820, 127
      %v1989 = vpop.permute.xlu0 %1988
      %1990 = vrot.lane.b32.xlu0 %v1821, 127
      %v1991 = vpop.permute.xlu0 %1990
      %1992 = vrot.lane.b32.xlu0 %v1822, 127
      %v1993 = vpop.permute.xlu0 %1992
      %1994 = vrot.lane.b32.xlu0 %v1823, 127
      %v1995 = vpop.permute.xlu0 %1994
      %1996 = vrot.lane.b32.xlu0 %v1824, 127
      %v1997 = vpop.permute.xlu0 %1996
      %v1998 = vsel %vm415, %v1903, %v1905
      %v1999 = vsel %vm415, %v1905, %v1907
      %v2000 = vsel %vm415, %v1909, %v1911
      %v2001 = vsel %vm415, %v1911, %v1913
      %v2002 = vsel %vm415, %v1915, %v1917
      %v2003 = vsel %vm415, %v1917, %v1919
      %v2004 = vsel %vm415, %v1921, %v1923
      %v2005 = vsel %vm415, %v1923, %v1925
      %v2006 = vsel %vm415, %v1927, %v1929
      %v2007 = vsel %vm415, %v1929, %v1931
      %v2008 = vsel %vm415, %v1933, %v1935
      %v2009 = vsel %vm415, %v1935, %v1937
      %v2010 = vsel %vm415, %v1939, %v1941
      %v2011 = vsel %vm415, %v1941, %v1943
      %v2012 = vsel %vm415, %v1945, %v1947
      %v2013 = vsel %vm415, %v1947, %v1949
      %v2014 = vsel %vm415, %v1951, %v1953
      %v2015 = vsel %vm415, %v1953, %v1955
      %v2016 = vsel %vm415, %v1957, %v1959
      %v2017 = vsel %vm415, %v1959, %v1961
      %v2018 = vsel %vm415, %v1963, %v1965
      %v2019 = vsel %vm415, %v1965, %v1967
      %v2020 = vsel %vm415, %v1969, %v1971
      %v2021 = vsel %vm415, %v1971, %v1973
      %v2022 = vsel %vm415, %v1975, %v1977
      %v2023 = vsel %vm415, %v1977, %v1979
      %v2024 = vsel %vm415, %v1981, %v1983
      %v2025 = vsel %vm415, %v1983, %v1985
      %v2026 = vsel %vm415, %v1987, %v1989
      %v2027 = vsel %vm415, %v1989, %v1991
      %v2028 = vsel %vm415, %v1993, %v1995
      %v2029 = vsel %vm415, %v1995, %v1997
      %2078 = vmatprep.subr.bf16.mxu0 %v1999
      %2079 = vmatpush1.bf16.msra.mxu0 %v1998
      %2080 = vmatprep.subr.bf16.mxu0 %v2001
      %2081 = vmatpush1.bf16.msra.mxu0 %v2000
      %2082 = vmatprep.subr.bf16.mxu0 %v2003
      %2083 = vmatpush1.bf16.msra.mxu0 %v2002
      %2084 = vmatprep.subr.bf16.mxu0 %v2005
      %2085 = vmatpush1.bf16.msra.mxu0 %v2004
      %2086 = vmatprep.subr.bf16.mxu0 %v2007
      %2087 = vmatpush1.bf16.msra.mxu0 %v2006
      %2088 = vmatprep.subr.bf16.mxu0 %v2009
      %2089 = vmatpush1.bf16.msra.mxu0 %v2008
      %2090 = vmatprep.subr.bf16.mxu0 %v2011
      %2091 = vmatpush1.bf16.msra.mxu0 %v2010
      %2092 = vmatprep.subr.bf16.mxu0 %v2013
      %2093 = vmatpush1.bf16.msra.mxu0 %v2012
      %2094 = vmatprep.subr.bf16.mxu0 %v2015
      %2095 = vmatpush1.bf16.msra.mxu0 %v2014
      %2096 = vmatprep.subr.bf16.mxu0 %v2017
      %2097 = vmatpush1.bf16.msra.mxu0 %v2016
      %2098 = vmatprep.subr.bf16.mxu0 %v2019
      %2099 = vmatpush1.bf16.msra.mxu0 %v2018
      %2100 = vmatprep.subr.bf16.mxu0 %v2021
      %2101 = vmatpush1.bf16.msra.mxu0 %v2020
      %2102 = vmatprep.subr.bf16.mxu0 %v2023
      %2103 = vmatpush1.bf16.msra.mxu0 %v2022
      %2104 = vmatprep.subr.bf16.mxu0 %v2025
      %2105 = vmatpush1.bf16.msra.mxu0 %v2024
      %2106 = vmatprep.subr.bf16.mxu0 %v2027
      %2107 = vmatpush1.bf16.msra.mxu0 %v2026
      %2108 = vmatprep.subr.bf16.mxu0 %v2029
      %2109 = vmatpush1.bf16.msra.mxu0 %v2028
      %2110 = vmatprep.mubr.bf16.mxu0 %v1847
      %2111 = vmatmul.mubr.bf16.gmra.mrb[0].mxu0 %v1846
      %v2112 = vpop.f32.mrb[0].mxu0
      %v2113 = vadd.f32 0.0, %v2112
      %v2114 = vpop.f32.mrb[0].mxu0
      %v2115 = vadd.f32 0.0, %v2114
      %v2116 = vpop.f32.mrb[0].mxu0
      %v2117 = vadd.f32 0.0, %v2116
      %v2118 = vpop.f32.mrb[0].mxu0
      %v2119 = vadd.f32 0.0, %v2118
      %2120 = vmatprep.mubr.bf16.mxu0 %v1849
      %2121 = vmatmul.mubr.bf16.gmra.mrb[0].mxu0 %v1848
      %v2122 = vpop.f32.mrb[0].mxu0
      %v2123 = vadd.f32 0.0, %v2122
      %v2124 = vpop.f32.mrb[0].mxu0
      %v2125 = vadd.f32 0.0, %v2124
      %v2126 = vpop.f32.mrb[0].mxu0
      %v2127 = vadd.f32 0.0, %v2126
      %v2128 = vpop.f32.mrb[0].mxu0
      %v2129 = vadd.f32 0.0, %v2128
      %2130 = vdwg.mxu0
      %2131 = vmatprep.subr.bf16.mxu0 0
      %2132 = vmatpush1.bf16.msra.mxu0 %v1907
      %2133 = vmatprep.subr.bf16.mxu0 0
      %2134 = vmatpush1.bf16.msra.mxu0 %v1913
      %2135 = vmatprep.subr.bf16.mxu0 0
      %2136 = vmatpush1.bf16.msra.mxu0 %v1919
      %2137 = vmatprep.subr.bf16.mxu0 0
      %2138 = vmatpush1.bf16.msra.mxu0 %v1925
      %2139 = vmatprep.subr.bf16.mxu0 0
      %2140 = vmatpush1.bf16.msra.mxu0 %v1931
      %2141 = vmatprep.subr.bf16.mxu0 0
      %2142 = vmatpush1.bf16.msra.mxu0 %v1937
      %2143 = vmatprep.subr.bf16.mxu0 0
      %2144 = vmatpush1.bf16.msra.mxu0 %v1943
      %2145 = vmatprep.subr.bf16.mxu0 0
      %2146 = vmatpush1.bf16.msra.mxu0 %v1949
      %2147 = vmatprep.subr.bf16.mxu0 0
      %2148 = vmatpush1.bf16.msra.mxu0 %v1955
      %2149 = vmatprep.subr.bf16.mxu0 0
      %2150 = vmatpush1.bf16.msra.mxu0 %v1961
      %2151 = vmatprep.subr.bf16.mxu0 0
      %2152 = vmatpush1.bf16.msra.mxu0 %v1967
      %2153 = vmatprep.subr.bf16.mxu0 0
      %2154 = vmatpush1.bf16.msra.mxu0 %v1973
      %2155 = vmatprep.subr.bf16.mxu0 0
      %2156 = vmatpush1.bf16.msra.mxu0 %v1979
      %2157 = vmatprep.subr.bf16.mxu0 0
      %2158 = vmatpush1.bf16.msra.mxu0 %v1985
      %2159 = vmatprep.subr.bf16.mxu0 0
      %2160 = vmatpush1.bf16.msra.mxu0 %v1991
      %2161 = vmatprep.subr.bf16.mxu0 0
      %2162 = vmatpush1.bf16.msra.mxu0 %v1997
      %2163 = vmatprep.mubr.bf16.mxu0 %v1847
      %2164 = vmatmul.mubr.bf16.gmra.mrb[0].mxu0 %v1846
      %v2165 = vpop.f32.mrb[0].mxu0
      %v2166 = vadd.f32 0.0, %v2165
      %v2167 = vpop.f32.mrb[0].mxu0
      %v2168 = vpop.f32.mrb[0].mxu0
      %v2169 = vadd.f32 0.0, %v2168
      %v2170 = vpop.f32.mrb[0].mxu0
      %2171 = vmatprep.mubr.bf16.mxu0 %v1849
      %2172 = vmatmul.mubr.bf16.gmra.mrb[0].mxu0 %v1848
      %v2173 = vpop.f32.mrb[0].mxu0
      %v2174 = vadd.f32 0.0, %v2173
      %v2175 = vpop.f32.mrb[0].mxu0
      %v2176 = vpop.f32.mrb[0].mxu0
      %v2177 = vadd.f32 0.0, %v2176
      %v2178 = vpop.f32.mrb[0].mxu0
      %2179 = vdwg.mxu0
      %v2184 = vunpack.c.l.b16 %v1825
      %v2185 = vunpack.c.h.b16 %v1825
      %v2186 = vunpack.c.l.b16 %v1826
      %v2187 = vunpack.c.h.b16 %v1826
      %v2188 = vunpack.c.l.b16 %v1827
      %v2189 = vunpack.c.h.b16 %v1827
      %v2190 = vunpack.c.l.b16 %v1828
      %v2191 = vunpack.c.h.b16 %v1828
      %v2192 = vpack.c.b16 %v2186, %v2184
      %v2193 = vpack.c.b16 %v2187, %v2185
      %v2194 = vpack.c.b16 %v2190, %v2188
      %v2195 = vpack.c.b16 %v2191, %v2189
      %2200 = vmatprep.subr.bf16.mxu0 %v1778
      %2201 = vmatpush1.bf16.msra.mxu0 %v1777
      %2202 = vmatprep.subr.bf16.mxu0 %v1781
      %2203 = vmatpush1.bf16.msra.mxu0 %v1780
      %2204 = vmatprep.subr.bf16.mxu0 %v1784
      %2205 = vmatpush1.bf16.msra.mxu0 %v1783
      %2206 = vmatprep.subr.bf16.mxu0 %v1787
      %2207 = vmatpush1.bf16.msra.mxu0 %v1786
      %2208 = vmatprep.subr.bf16.mxu0 %v1790
      %2209 = vmatpush1.bf16.msra.mxu0 %v1789
      %2210 = vmatprep.subr.bf16.mxu0 %v1793
      %2211 = vmatpush1.bf16.msra.mxu0 %v1792
      %2212 = vmatprep.subr.bf16.mxu0 %v1796
      %2213 = vmatpush1.bf16.msra.mxu0 %v1795
      %2214 = vmatprep.subr.bf16.mxu0 %v1799
      %2215 = vmatpush1.bf16.msra.mxu0 %v1798
      %2216 = vmatprep.subr.bf16.mxu0 %v1802
      %2217 = vmatpush1.bf16.msra.mxu0 %v1801
      %2218 = vmatprep.subr.bf16.mxu0 %v1805
      %2219 = vmatpush1.bf16.msra.mxu0 %v1804
      %2220 = vmatprep.subr.bf16.mxu0 %v1808
      %2221 = vmatpush1.bf16.msra.mxu0 %v1807
      %2222 = vmatprep.subr.bf16.mxu0 %v1811
      %2223 = vmatpush1.bf16.msra.mxu0 %v1810
      %2224 = vmatprep.subr.bf16.mxu0 %v1814
      %2225 = vmatpush1.bf16.msra.mxu0 %v1813
      %2226 = vmatprep.subr.bf16.mxu0 %v1817
      %2227 = vmatpush1.bf16.msra.mxu0 %v1816
      %2228 = vmatprep.subr.bf16.mxu0 %v1820
      %2229 = vmatpush1.bf16.msra.mxu0 %v1819
      %2230 = vmatprep.subr.bf16.mxu0 %v1823
      %2231 = vmatpush1.bf16.msra.mxu0 %v1822
      %2232 = vmatprep.mubr.bf16.mxu0 %v2193
      %2233 = vmatmul.mubr.bf16.gmra.mrb[0].mxu0 %v2192
      %v2234 = vpop.f32.mrb[0].mxu0
      %v2235 = vadd.f32 %v2113, %v2234
      %v2236 = vpop.f32.mrb[0].mxu0
      %v2237 = vadd.f32 %v2115, %v2236
      %v2238 = vpop.f32.mrb[0].mxu0
      %v2239 = vadd.f32 %v2117, %v2238
      %v2240 = vpop.f32.mrb[0].mxu0
      %v2241 = vadd.f32 %v2119, %v2240
      %2242 = vmatprep.mubr.bf16.mxu0 %v2195
      %2243 = vmatmul.mubr.bf16.gmra.mrb[0].mxu0 %v2194
      %v2244 = vpop.f32.mrb[0].mxu0
      %v2245 = vadd.f32 %v2123, %v2244
      %v2246 = vpop.f32.mrb[0].mxu0
      %v2247 = vadd.f32 %v2125, %v2246
      %v2248 = vpop.f32.mrb[0].mxu0
      %v2249 = vadd.f32 %v2127, %v2248
      %v2250 = vpop.f32.mrb[0].mxu0
      %v2251 = vadd.f32 %v2129, %v2250
      %2252 = vdwg.mxu0
      %2253 = vmatprep.subr.bf16.mxu0 0
      %2254 = vmatpush1.bf16.msra.mxu0 %v1779
      %2255 = vmatprep.subr.bf16.mxu0 0
      %2256 = vmatpush1.bf16.msra.mxu0 %v1782
      %2257 = vmatprep.subr.bf16.mxu0 0
      %2258 = vmatpush1.bf16.msra.mxu0 %v1785
      %2259 = vmatprep.subr.bf16.mxu0 0
      %2260 = vmatpush1.bf16.msra.mxu0 %v1788
      %2261 = vmatprep.subr.bf16.mxu0 0
      %2262 = vmatpush1.bf16.msra.mxu0 %v1791
      %2263 = vmatprep.subr.bf16.mxu0 0
      %2264 = vmatpush1.bf16.msra.mxu0 %v1794
      %2265 = vmatprep.subr.bf16.mxu0 0
      %2266 = vmatpush1.bf16.msra.mxu0 %v1797
      %2267 = vmatprep.subr.bf16.mxu0 0
      %2268 = vmatpush1.bf16.msra.mxu0 %v1800
      %2269 = vmatprep.subr.bf16.mxu0 0
      %2270 = vmatpush1.bf16.msra.mxu0 %v1803
      %2271 = vmatprep.subr.bf16.mxu0 0
      %2272 = vmatpush1.bf16.msra.mxu0 %v1806
      %2273 = vmatprep.subr.bf16.mxu0 0
      %2274 = vmatpush1.bf16.msra.mxu0 %v1809
      %2275 = vmatprep.subr.bf16.mxu0 0
      %2276 = vmatpush1.bf16.msra.mxu0 %v1812
      %2277 = vmatprep.subr.bf16.mxu0 0
      %2278 = vmatpush1.bf16.msra.mxu0 %v1815
      %2279 = vmatprep.subr.bf16.mxu0 0
      %2280 = vmatpush1.bf16.msra.mxu0 %v1818
      %2281 = vmatprep.subr.bf16.mxu0 0
      %2282 = vmatpush1.bf16.msra.mxu0 %v1821
      %2283 = vmatprep.subr.bf16.mxu0 0
      %2284 = vmatpush1.bf16.msra.mxu0 %v1824
      %2285 = vmatprep.mubr.bf16.mxu0 %v2193
      %2286 = vmatmul.mubr.bf16.gmra.mrb[0].mxu0 %v2192
      %v2287 = vpop.f32.mrb[0].mxu0
      %v2288 = vadd.f32 %v2166, %v2287
      %v2289 = vpop.f32.mrb[0].mxu0
      %v2290 = vpop.f32.mrb[0].mxu0
      %v2291 = vadd.f32 %v2169, %v2290
      %v2292 = vpop.f32.mrb[0].mxu0
      %2293 = vmatprep.mubr.bf16.mxu0 %v2195
      %2294 = vmatmul.mubr.bf16.gmra.mrb[0].mxu0 %v2194
      %v2295 = vpop.f32.mrb[0].mxu0
      %v2296 = vadd.f32 %v2174, %v2295
      %v2297 = vpop.f32.mrb[0].mxu0
      %v2298 = vpop.f32.mrb[0].mxu0
      %v2299 = vadd.f32 %v2177, %v2298
      %v2300 = vpop.f32.mrb[0].mxu0
      %2301 = vdwg.mxu0
      %s2302 = scalar_lea.vmem %s6, 64
      %v2303 = vld [vmem:[%s2302] sm:$0xff]
      %v2304 = vld [vmem:[%s2302 + $0x8] sm:$0xff]
      %v2305 = vld [vmem:[%s2302 + $0x10] sm:$0xff]
      %v2306 = vld [vmem:[%s2302 + $0x18] sm:$0xff]
      %v2311 = vunpack.c.l.b16 %v2303
      %v2312 = vunpack.c.h.b16 %v2303
      %v2313 = vunpack.c.l.b16 %v2304
      %v2314 = vunpack.c.h.b16 %v2304
      %v2315 = vunpack.c.l.b16 %v2305
      %v2316 = vunpack.c.h.b16 %v2305
      %v2317 = vunpack.c.l.b16 %v2306
      %v2318 = vunpack.c.h.b16 %v2306
      %v2319 = vpack.c.b16 %v2313, %v2311
      %v2320 = vpack.c.b16 %v2314, %v2312
      %v2321 = vpack.c.b16 %v2317, %v2315
      %v2322 = vpack.c.b16 %v2318, %v2316
      %2327 = vrot.lane.b32.xlu0 %v1777, 126
      %v2328 = vpop.permute.xlu0 %2327
      %2329 = vrot.lane.b32.xlu0 %v1778, 126
      %v2330 = vpop.permute.xlu0 %2329
      %2331 = vrot.lane.b32.xlu0 %v1779, 126
      %v2332 = vpop.permute.xlu0 %2331
      %2333 = vrot.lane.b32.xlu0 %v1780, 126
      %v2334 = vpop.permute.xlu0 %2333
      %2335 = vrot.lane.b32.xlu0 %v1781, 126
      %v2336 = vpop.permute.xlu0 %2335
      %2337 = vrot.lane.b32.xlu0 %v1782, 126
      %v2338 = vpop.permute.xlu0 %2337
      %2339 = vrot.lane.b32.xlu0 %v1783, 126
      %v2340 = vpop.permute.xlu0 %2339
      %2341 = vrot.lane.b32.xlu0 %v1784, 126
      %v2342 = vpop.permute.xlu0 %2341
      %2343 = vrot.lane.b32.xlu0 %v1785, 126
      %v2344 = vpop.permute.xlu0 %2343
      %2345 = vrot.lane.b32.xlu0 %v1786, 126
      %v2346 = vpop.permute.xlu0 %2345
      %2347 = vrot.lane.b32.xlu0 %v1787, 126
      %v2348 = vpop.permute.xlu0 %2347
      %2349 = vrot.lane.b32.xlu0 %v1788, 126
      %v2350 = vpop.permute.xlu0 %2349
      %2351 = vrot.lane.b32.xlu0 %v1789, 126
      %v2352 = vpop.permute.xlu0 %2351
      %2353 = vrot.lane.b32.xlu0 %v1790, 126
      %v2354 = vpop.permute.xlu0 %2353
      %2355 = vrot.lane.b32.xlu0 %v1791, 126
      %v2356 = vpop.permute.xlu0 %2355
      %2357 = vrot.lane.b32.xlu0 %v1792, 126
      %v2358 = vpop.permute.xlu0 %2357
      %2359 = vrot.lane.b32.xlu0 %v1793, 126
      %v2360 = vpop.permute.xlu0 %2359
      %2361 = vrot.lane.b32.xlu0 %v1794, 126
      %v2362 = vpop.permute.xlu0 %2361
      %2363 = vrot.lane.b32.xlu0 %v1795, 126
      %v2364 = vpop.permute.xlu0 %2363
      %2365 = vrot.lane.b32.xlu0 %v1796, 126
      %v2366 = vpop.permute.xlu0 %2365
      %2367 = vrot.lane.b32.xlu0 %v1797, 126
      %v2368 = vpop.permute.xlu0 %2367
      %2369 = vrot.lane.b32.xlu0 %v1798, 126
      %v2370 = vpop.permute.xlu0 %2369
      %2371 = vrot.lane.b32.xlu0 %v1799, 126
      %v2372 = vpop.permute.xlu0 %2371
      %2373 = vrot.lane.b32.xlu0 %v1800, 126
      %v2374 = vpop.permute.xlu0 %2373
      %2375 = vrot.lane.b32.xlu0 %v1801, 126
      %v2376 = vpop.permute.xlu0 %2375
      %2377 = vrot.lane.b32.xlu0 %v1802, 126
      %v2378 = vpop.permute.xlu0 %2377
      %2379 = vrot.lane.b32.xlu0 %v1803, 126
      %v2380 = vpop.permute.xlu0 %2379
      %2381 = vrot.lane.b32.xlu0 %v1804, 126
      %v2382 = vpop.permute.xlu0 %2381
      %2383 = vrot.lane.b32.xlu0 %v1805, 126
      %v2384 = vpop.permute.xlu0 %2383
      %2385 = vrot.lane.b32.xlu0 %v1806, 126
      %v2386 = vpop.permute.xlu0 %2385
      %2387 = vrot.lane.b32.xlu0 %v1807, 126
      %v2388 = vpop.permute.xlu0 %2387
      %2389 = vrot.lane.b32.xlu0 %v1808, 126
      %v2390 = vpop.permute.xlu0 %2389
      %2391 = vrot.lane.b32.xlu0 %v1809, 126
      %v2392 = vpop.permute.xlu0 %2391
      %2393 = vrot.lane.b32.xlu0 %v1810, 126
      %v2394 = vpop.permute.xlu0 %2393
      %2395 = vrot.lane.b32.xlu0 %v1811, 126
      %v2396 = vpop.permute.xlu0 %2395
      %2397 = vrot.lane.b32.xlu0 %v1812, 126
      %v2398 = vpop.permute.xlu0 %2397
      %2399 = vrot.lane.b32.xlu0 %v1813, 126
      %v2400 = vpop.permute.xlu0 %2399
      %2401 = vrot.lane.b32.xlu0 %v1814, 126
      %v2402 = vpop.permute.xlu0 %2401
      %2403 = vrot.lane.b32.xlu0 %v1815, 126
      %v2404 = vpop.permute.xlu0 %2403
      %2405 = vrot.lane.b32.xlu0 %v1816, 126
      %v2406 = vpop.permute.xlu0 %2405
      %2407 = vrot.lane.b32.xlu0 %v1817, 126
      %v2408 = vpop.permute.xlu0 %2407
      %2409 = vrot.lane.b32.xlu0 %v1818, 126
      %v2410 = vpop.permute.xlu0 %2409
      %2411 = vrot.lane.b32.xlu0 %v1819, 126
      %v2412 = vpop.permute.xlu0 %2411
      %2413 = vrot.lane.b32.xlu0 %v1820, 126
      %v2414 = vpop.permute.xlu0 %2413
      %2415 = vrot.lane.b32.xlu0 %v1821, 126
      %v2416 = vpop.permute.xlu0 %2415
      %2417 = vrot.lane.b32.xlu0 %v1822, 126
      %v2418 = vpop.permute.xlu0 %2417
      %2419 = vrot.lane.b32.xlu0 %v1823, 126
      %v2420 = vpop.permute.xlu0 %2419
      %2421 = vrot.lane.b32.xlu0 %v1824, 126
      %v2422 = vpop.permute.xlu0 %2421
      %v2423 = vsel %vm424, %v2328, %v2330
      %v2424 = vsel %vm424, %v2330, %v2332
      %v2425 = vsel %vm424, %v2334, %v2336
      %v2426 = vsel %vm424, %v2336, %v2338
      %v2427 = vsel %vm424, %v2340, %v2342
      %v2428 = vsel %vm424, %v2342, %v2344
      %v2429 = vsel %vm424, %v2346, %v2348
      %v2430 = vsel %vm424, %v2348, %v2350
      %v2431 = vsel %vm424, %v2352, %v2354
      %v2432 = vsel %vm424, %v2354, %v2356
      %v2433 = vsel %vm424, %v2358, %v2360
      %v2434 = vsel %vm424, %v2360, %v2362
      %v2435 = vsel %vm424, %v2364, %v2366
      %v2436 = vsel %vm424, %v2366, %v2368
      %v2437 = vsel %vm424, %v2370, %v2372
      %v2438 = vsel %vm424, %v2372, %v2374
      %v2439 = vsel %vm424, %v2376, %v2378
      %v2440 = vsel %vm424, %v2378, %v2380
      %v2441 = vsel %vm424, %v2382, %v2384
      %v2442 = vsel %vm424, %v2384, %v2386
      %v2443 = vsel %vm424, %v2388, %v2390
      %v2444 = vsel %vm424, %v2390, %v2392
      %v2445 = vsel %vm424, %v2394, %v2396
      %v2446 = vsel %vm424, %v2396, %v2398
      %v2447 = vsel %vm424, %v2400, %v2402
      %v2448 = vsel %vm424, %v2402, %v2404
      %v2449 = vsel %vm424, %v2406, %v2408
      %v2450 = vsel %vm424, %v2408, %v2410
      %v2451 = vsel %vm424, %v2412, %v2414
      %v2452 = vsel %vm424, %v2414, %v2416
      %v2453 = vsel %vm424, %v2418, %v2420
      %v2454 = vsel %vm424, %v2420, %v2422
      %2503 = vmatprep.subr.bf16.mxu0 %v2424
      %2504 = vmatpush1.bf16.msra.mxu0 %v2423
      %2505 = vmatprep.subr.bf16.mxu0 %v2426
      %2506 = vmatpush1.bf16.msra.mxu0 %v2425
      %2507 = vmatprep.subr.bf16.mxu0 %v2428
      %2508 = vmatpush1.bf16.msra.mxu0 %v2427
      %2509 = vmatprep.subr.bf16.mxu0 %v2430
      %2510 = vmatpush1.bf16.msra.mxu0 %v2429
      %2511 = vmatprep.subr.bf16.mxu0 %v2432
      %2512 = vmatpush1.bf16.msra.mxu0 %v2431
      %2513 = vmatprep.subr.bf16.mxu0 %v2434
      %2514 = vmatpush1.bf16.msra.mxu0 %v2433
      %2515 = vmatprep.subr.bf16.mxu0 %v2436
      %2516 = vmatpush1.bf16.msra.mxu0 %v2435
      %2517 = vmatprep.subr.bf16.mxu0 %v2438
      %2518 = vmatpush1.bf16.msra.mxu0 %v2437
      %2519 = vmatprep.subr.bf16.mxu0 %v2440
      %2520 = vmatpush1.bf16.msra.mxu0 %v2439
      %2521 = vmatprep.subr.bf16.mxu0 %v2442
      %2522 = vmatpush1.bf16.msra.mxu0 %v2441
      %2523 = vmatprep.subr.bf16.mxu0 %v2444
      %2524 = vmatpush1.bf16.msra.mxu0 %v2443
      %2525 = vmatprep.subr.bf16.mxu0 %v2446
      %2526 = vmatpush1.bf16.msra.mxu0 %v2445
      %2527 = vmatprep.subr.bf16.mxu0 %v2448
      %2528 = vmatpush1.bf16.msra.mxu0 %v2447
      %2529 = vmatprep.subr.bf16.mxu0 %v2450
      %2530 = vmatpush1.bf16.msra.mxu0 %v2449
      %2531 = vmatprep.subr.bf16.mxu0 %v2452
      %2532 = vmatpush1.bf16.msra.mxu0 %v2451
      %2533 = vmatprep.subr.bf16.mxu0 %v2454
      %2534 = vmatpush1.bf16.msra.mxu0 %v2453
      %2535 = vmatprep.mubr.bf16.mxu0 %v2320
      %2536 = vmatmul.mubr.bf16.gmra.mrb[0].mxu0 %v2319
      %v2537 = vpop.f32.mrb[0].mxu0
      %v2538 = vadd.f32 0.0, %v2537
      %v2539 = vpop.f32.mrb[0].mxu0
      %v2540 = vadd.f32 0.0, %v2539
      %v2541 = vpop.f32.mrb[0].mxu0
      %v2542 = vadd.f32 0.0, %v2541
      %v2543 = vpop.f32.mrb[0].mxu0
      %v2544 = vadd.f32 0.0, %v2543
      %2545 = vmatprep.mubr.bf16.mxu0 %v2322
      %2546 = vmatmul.mubr.bf16.gmra.mrb[0].mxu0 %v2321
      %v2547 = vpop.f32.mrb[0].mxu0
      %v2548 = vadd.f32 0.0, %v2547
      %v2549 = vpop.f32.mrb[0].mxu0
      %v2550 = vadd.f32 0.0, %v2549
      %v2551 = vpop.f32.mrb[0].mxu0
      %v2552 = vadd.f32 0.0, %v2551
      %v2553 = vpop.f32.mrb[0].mxu0
      %v2554 = vadd.f32 0.0, %v2553
      %2555 = vdwg.mxu0
      %2556 = vmatprep.subr.bf16.mxu0 0
      %2557 = vmatpush1.bf16.msra.mxu0 %v2332
      %2558 = vmatprep.subr.bf16.mxu0 0
      %2559 = vmatpush1.bf16.msra.mxu0 %v2338
      %2560 = vmatprep.subr.bf16.mxu0 0
      %2561 = vmatpush1.bf16.msra.mxu0 %v2344
      %2562 = vmatprep.subr.bf16.mxu0 0
      %2563 = vmatpush1.bf16.msra.mxu0 %v2350
      %2564 = vmatprep.subr.bf16.mxu0 0
      %2565 = vmatpush1.bf16.msra.mxu0 %v2356
      %2566 = vmatprep.subr.bf16.mxu0 0
      %2567 = vmatpush1.bf16.msra.mxu0 %v2362
      %2568 = vmatprep.subr.bf16.mxu0 0
      %2569 = vmatpush1.bf16.msra.mxu0 %v2368
      %2570 = vmatprep.subr.bf16.mxu0 0
      %2571 = vmatpush1.bf16.msra.mxu0 %v2374
      %2572 = vmatprep.subr.bf16.mxu0 0
      %2573 = vmatpush1.bf16.msra.mxu0 %v2380
      %2574 = vmatprep.subr.bf16.mxu0 0
      %2575 = vmatpush1.bf16.msra.mxu0 %v2386
      %2576 = vmatprep.subr.bf16.mxu0 0
      %2577 = vmatpush1.bf16.msra.mxu0 %v2392
      %2578 = vmatprep.subr.bf16.mxu0 0
      %2579 = vmatpush1.bf16.msra.mxu0 %v2398
      %2580 = vmatprep.subr.bf16.mxu0 0
      %2581 = vmatpush1.bf16.msra.mxu0 %v2404
      %2582 = vmatprep.subr.bf16.mxu0 0
      %2583 = vmatpush1.bf16.msra.mxu0 %v2410
      %2584 = vmatprep.subr.bf16.mxu0 0
      %2585 = vmatpush1.bf16.msra.mxu0 %v2416
      %2586 = vmatprep.subr.bf16.mxu0 0
      %2587 = vmatpush1.bf16.msra.mxu0 %v2422
      %2588 = vmatprep.mubr.bf16.mxu0 %v2320
      %2589 = vmatmul.mubr.bf16.gmra.mrb[0].mxu0 %v2319
      %v2590 = vpop.f32.mrb[0].mxu0
      %v2591 = vadd.f32 0.0, %v2590
      %v2592 = vpop.f32.mrb[0].mxu0
      %v2593 = vpop.f32.mrb[0].mxu0
      %v2594 = vadd.f32 0.0, %v2593
      %v2595 = vpop.f32.mrb[0].mxu0
      %2596 = vmatprep.mubr.bf16.mxu0 %v2322
      %2597 = vmatmul.mubr.bf16.gmra.mrb[0].mxu0 %v2321
      %v2598 = vpop.f32.mrb[0].mxu0
      %v2599 = vadd.f32 0.0, %v2598
      %v2600 = vpop.f32.mrb[0].mxu0
      %v2601 = vpop.f32.mrb[0].mxu0
      %v2602 = vadd.f32 0.0, %v2601
      %v2603 = vpop.f32.mrb[0].mxu0
      %2604 = vdwg.mxu0
      %v2605 = vadd.f32 %v2235, %v2538
      %v2606 = vadd.f32 %v2237, %v2540
      %v2607 = vadd.f32 %v2288, %v2591
      %v2608 = vadd.f32 %v2239, %v2542
      %v2609 = vadd.f32 %v2241, %v2544
      %v2610 = vadd.f32 %v2291, %v2594
      %v2611 = vadd.f32 %v2245, %v2548
      %v2612 = vadd.f32 %v2247, %v2550
      %v2613 = vadd.f32 %v2296, %v2599
      %v2614 = vadd.f32 %v2249, %v2552
      %v2615 = vadd.f32 %v2251, %v2554
      %v2616 = vadd.f32 %v2299, %v2602
      %s2617 = scalar_lea.vmem %s6, 96
      %v2618 = vld [vmem:[%s2617] sm:$0xff]
      %v2619 = vld [vmem:[%s2617 + $0x8] sm:$0xff]
      %v2620 = vld [vmem:[%s2617 + $0x10] sm:$0xff]
      %v2621 = vld [vmem:[%s2617 + $0x18] sm:$0xff]
      %v2626 = vunpack.c.l.b16 %v2618
      %v2627 = vunpack.c.h.b16 %v2618
      %v2628 = vunpack.c.l.b16 %v2619
      %v2629 = vunpack.c.h.b16 %v2619
      %v2630 = vunpack.c.l.b16 %v2620
      %v2631 = vunpack.c.h.b16 %v2620
      %v2632 = vunpack.c.l.b16 %v2621
      %v2633 = vunpack.c.h.b16 %v2621
      %v2634 = vpack.c.b16 %v2628, %v2626
      %v2635 = vpack.c.b16 %v2629, %v2627
      %v2636 = vpack.c.b16 %v2632, %v2630
      %v2637 = vpack.c.b16 %v2633, %v2631
      %2642 = vrot.lane.b32.xlu0 %v1777, 110
      %v2643 = vpop.permute.xlu0 %2642
      %2644 = vrot.lane.b32.xlu0 %v1778, 110
      %v2645 = vpop.permute.xlu0 %2644
      %2646 = vrot.lane.b32.xlu0 %v1779, 110
      %v2647 = vpop.permute.xlu0 %2646
      %2648 = vrot.lane.b32.xlu0 %v1780, 110
      %v2649 = vpop.permute.xlu0 %2648
      %2650 = vrot.lane.b32.xlu0 %v1781, 110
      %v2651 = vpop.permute.xlu0 %2650
      %2652 = vrot.lane.b32.xlu0 %v1782, 110
      %v2653 = vpop.permute.xlu0 %2652
      %2654 = vrot.lane.b32.xlu0 %v1783, 110
      %v2655 = vpop.permute.xlu0 %2654
      %2656 = vrot.lane.b32.xlu0 %v1784, 110
      %v2657 = vpop.permute.xlu0 %2656
      %2658 = vrot.lane.b32.xlu0 %v1785, 110
      %v2659 = vpop.permute.xlu0 %2658
      %2660 = vrot.lane.b32.xlu0 %v1786, 110
      %v2661 = vpop.permute.xlu0 %2660
      %2662 = vrot.lane.b32.xlu0 %v1787, 110
      %v2663 = vpop.permute.xlu0 %2662
      %2664 = vrot.lane.b32.xlu0 %v1788, 110
      %v2665 = vpop.permute.xlu0 %2664
      %2666 = vrot.lane.b32.xlu0 %v1789, 110
      %v2667 = vpop.permute.xlu0 %2666
      %2668 = vrot.lane.b32.xlu0 %v1790, 110
      %v2669 = vpop.permute.xlu0 %2668
      %2670 = vrot.lane.b32.xlu0 %v1791, 110
      %v2671 = vpop.permute.xlu0 %2670
      %2672 = vrot.lane.b32.xlu0 %v1792, 110
      %v2673 = vpop.permute.xlu0 %2672
      %2674 = vrot.lane.b32.xlu0 %v1793, 110
      %v2675 = vpop.permute.xlu0 %2674
      %2676 = vrot.lane.b32.xlu0 %v1794, 110
      %v2677 = vpop.permute.xlu0 %2676
      %2678 = vrot.lane.b32.xlu0 %v1795, 110
      %v2679 = vpop.permute.xlu0 %2678
      %2680 = vrot.lane.b32.xlu0 %v1796, 110
      %v2681 = vpop.permute.xlu0 %2680
      %2682 = vrot.lane.b32.xlu0 %v1797, 110
      %v2683 = vpop.permute.xlu0 %2682
      %2684 = vrot.lane.b32.xlu0 %v1798, 110
      %v2685 = vpop.permute.xlu0 %2684
      %2686 = vrot.lane.b32.xlu0 %v1799, 110
      %v2687 = vpop.permute.xlu0 %2686
      %2688 = vrot.lane.b32.xlu0 %v1800, 110
      %v2689 = vpop.permute.xlu0 %2688
      %2690 = vrot.lane.b32.xlu0 %v1801, 110
      %v2691 = vpop.permute.xlu0 %2690
      %2692 = vrot.lane.b32.xlu0 %v1802, 110
      %v2693 = vpop.permute.xlu0 %2692
      %2694 = vrot.lane.b32.xlu0 %v1803, 110
      %v2695 = vpop.permute.xlu0 %2694
      %2696 = vrot.lane.b32.xlu0 %v1804, 110
      %v2697 = vpop.permute.xlu0 %2696
      %2698 = vrot.lane.b32.xlu0 %v1805, 110
      %v2699 = vpop.permute.xlu0 %2698
      %2700 = vrot.lane.b32.xlu0 %v1806, 110
      %v2701 = vpop.permute.xlu0 %2700
      %2702 = vrot.lane.b32.xlu0 %v1807, 110
      %v2703 = vpop.permute.xlu0 %2702
      %2704 = vrot.lane.b32.xlu0 %v1808, 110
      %v2705 = vpop.permute.xlu0 %2704
      %2706 = vrot.lane.b32.xlu0 %v1809, 110
      %v2707 = vpop.permute.xlu0 %2706
      %2708 = vrot.lane.b32.xlu0 %v1810, 110
      %v2709 = vpop.permute.xlu0 %2708
      %2710 = vrot.lane.b32.xlu0 %v1811, 110
      %v2711 = vpop.permute.xlu0 %2710
      %2712 = vrot.lane.b32.xlu0 %v1812, 110
      %v2713 = vpop.permute.xlu0 %2712
      %2714 = vrot.lane.b32.xlu0 %v1813, 110
      %v2715 = vpop.permute.xlu0 %2714
      %2716 = vrot.lane.b32.xlu0 %v1814, 110
      %v2717 = vpop.permute.xlu0 %2716
      %2718 = vrot.lane.b32.xlu0 %v1815, 110
      %v2719 = vpop.permute.xlu0 %2718
      %2720 = vrot.lane.b32.xlu0 %v1816, 110
      %v2721 = vpop.permute.xlu0 %2720
      %2722 = vrot.lane.b32.xlu0 %v1817, 110
      %v2723 = vpop.permute.xlu0 %2722
      %2724 = vrot.lane.b32.xlu0 %v1818, 110
      %v2725 = vpop.permute.xlu0 %2724
      %2726 = vrot.lane.b32.xlu0 %v1819, 110
      %v2727 = vpop.permute.xlu0 %2726
      %2728 = vrot.lane.b32.xlu0 %v1820, 110
      %v2729 = vpop.permute.xlu0 %2728
      %2730 = vrot.lane.b32.xlu0 %v1821, 110
      %v2731 = vpop.permute.xlu0 %2730
      %2732 = vrot.lane.b32.xlu0 %v1822, 110
      %v2733 = vpop.permute.xlu0 %2732
      %2734 = vrot.lane.b32.xlu0 %v1823, 110
      %v2735 = vpop.permute.xlu0 %2734
      %2736 = vrot.lane.b32.xlu0 %v1824, 110
      %v2737 = vpop.permute.xlu0 %2736
      %v2738 = vsel %vm433, %v2643, %v2645
      %v2739 = vsel %vm433, %v2645, %v2647
      %v2740 = vsel %vm433, %v2649, %v2651
      %v2741 = vsel %vm433, %v2651, %v2653
      %v2742 = vsel %vm433, %v2655, %v2657
      %v2743 = vsel %vm433, %v2657, %v2659
      %v2744 = vsel %vm433, %v2661, %v2663
      %v2745 = vsel %vm433, %v2663, %v2665
      %v2746 = vsel %vm433, %v2667, %v2669
      %v2747 = vsel %vm433, %v2669, %v2671
      %v2748 = vsel %vm433, %v2673, %v2675
      %v2749 = vsel %vm433, %v2675, %v2677
      %v2750 = vsel %vm433, %v2679, %v2681
      %v2751 = vsel %vm433, %v2681, %v2683
      %v2752 = vsel %vm433, %v2685, %v2687
      %v2753 = vsel %vm433, %v2687, %v2689
      %v2754 = vsel %vm433, %v2691, %v2693
      %v2755 = vsel %vm433, %v2693, %v2695
      %v2756 = vsel %vm433, %v2697, %v2699
      %v2757 = vsel %vm433, %v2699, %v2701
      %v2758 = vsel %vm433, %v2703, %v2705
      %v2759 = vsel %vm433, %v2705, %v2707
      %v2760 = vsel %vm433, %v2709, %v2711
      %v2761 = vsel %vm433, %v2711, %v2713
      %v2762 = vsel %vm433, %v2715, %v2717
      %v2763 = vsel %vm433, %v2717, %v2719
      %v2764 = vsel %vm433, %v2721, %v2723
      %v2765 = vsel %vm433, %v2723, %v2725
      %v2766 = vsel %vm433, %v2727, %v2729
      %v2767 = vsel %vm433, %v2729, %v2731
      %v2768 = vsel %vm433, %v2733, %v2735
      %v2769 = vsel %vm433, %v2735, %v2737
      %2818 = vmatprep.subr.bf16.mxu0 %v2739
      %2819 = vmatpush1.bf16.msra.mxu0 %v2738
      %2820 = vmatprep.subr.bf16.mxu0 %v2741
      %2821 = vmatpush1.bf16.msra.mxu0 %v2740
      %2822 = vmatprep.subr.bf16.mxu0 %v2743
      %2823 = vmatpush1.bf16.msra.mxu0 %v2742
      %2824 = vmatprep.subr.bf16.mxu0 %v2745
      %2825 = vmatpush1.bf16.msra.mxu0 %v2744
      %2826 = vmatprep.subr.bf16.mxu0 %v2747
      %2827 = vmatpush1.bf16.msra.mxu0 %v2746
      %2828 = vmatprep.subr.bf16.mxu0 %v2749
      %2829 = vmatpush1.bf16.msra.mxu0 %v2748
      %2830 = vmatprep.subr.bf16.mxu0 %v2751
      %2831 = vmatpush1.bf16.msra.mxu0 %v2750
      %2832 = vmatprep.subr.bf16.mxu0 %v2753
      %2833 = vmatpush1.bf16.msra.mxu0 %v2752
      %2834 = vmatprep.subr.bf16.mxu0 %v2755
      %2835 = vmatpush1.bf16.msra.mxu0 %v2754
      %2836 = vmatprep.subr.bf16.mxu0 %v2757
      %2837 = vmatpush1.bf16.msra.mxu0 %v2756
      %2838 = vmatprep.subr.bf16.mxu0 %v2759
      %2839 = vmatpush1.bf16.msra.mxu0 %v2758
      %2840 = vmatprep.subr.bf16.mxu0 %v2761
      %2841 = vmatpush1.bf16.msra.mxu0 %v2760
      %2842 = vmatprep.subr.bf16.mxu0 %v2763
      %2843 = vmatpush1.bf16.msra.mxu0 %v2762
      %2844 = vmatprep.subr.bf16.mxu0 %v2765
      %2845 = vmatpush1.bf16.msra.mxu0 %v2764
      %2846 = vmatprep.subr.bf16.mxu0 %v2767
      %2847 = vmatpush1.bf16.msra.mxu0 %v2766
      %2848 = vmatprep.subr.bf16.mxu0 %v2769
      %2849 = vmatpush1.bf16.msra.mxu0 %v2768
      %2850 = vmatprep.mubr.bf16.mxu0 %v2635
      %2851 = vmatmul.mubr.bf16.gmra.mrb[0].mxu0 %v2634
      %v2852 = vpop.f32.mrb[0].mxu0
      %v2853 = vadd.f32 0.0, %v2852
      %v2854 = vpop.f32.mrb[0].mxu0
      %v2855 = vadd.f32 0.0, %v2854
      %v2856 = vpop.f32.mrb[0].mxu0
      %v2857 = vadd.f32 0.0, %v2856
      %v2858 = vpop.f32.mrb[0].mxu0
      %v2859 = vadd.f32 0.0, %v2858
      %2860 = vmatprep.mubr.bf16.mxu0 %v2637
      %2861 = vmatmul.mubr.bf16.gmra.mrb[0].mxu0 %v2636
      %v2862 = vpop.f32.mrb[0].mxu0
      %v2863 = vadd.f32 0.0, %v2862
      %v2864 = vpop.f32.mrb[0].mxu0
      %v2865 = vadd.f32 0.0, %v2864
      %v2866 = vpop.f32.mrb[0].mxu0
      %v2867 = vadd.f32 0.0, %v2866
      %v2868 = vpop.f32.mrb[0].mxu0
      %v2869 = vadd.f32 0.0, %v2868
      %2870 = vdwg.mxu0
      %2871 = vmatprep.subr.bf16.mxu0 0
      %2872 = vmatpush1.bf16.msra.mxu0 %v2647
      %2873 = vmatprep.subr.bf16.mxu0 0
      %2874 = vmatpush1.bf16.msra.mxu0 %v2653
      %2875 = vmatprep.subr.bf16.mxu0 0
      %2876 = vmatpush1.bf16.msra.mxu0 %v2659
      %2877 = vmatprep.subr.bf16.mxu0 0
      %2878 = vmatpush1.bf16.msra.mxu0 %v2665
      %2879 = vmatprep.subr.bf16.mxu0 0
      %2880 = vmatpush1.bf16.msra.mxu0 %v2671
      %2881 = vmatprep.subr.bf16.mxu0 0
      %2882 = vmatpush1.bf16.msra.mxu0 %v2677
      %2883 = vmatprep.subr.bf16.mxu0 0
      %2884 = vmatpush1.bf16.msra.mxu0 %v2683
      %2885 = vmatprep.subr.bf16.mxu0 0
      %2886 = vmatpush1.bf16.msra.mxu0 %v2689
      %2887 = vmatprep.subr.bf16.mxu0 0
      %2888 = vmatpush1.bf16.msra.mxu0 %v2695
      %2889 = vmatprep.subr.bf16.mxu0 0
      %2890 = vmatpush1.bf16.msra.mxu0 %v2701
      %2891 = vmatprep.subr.bf16.mxu0 0
      %2892 = vmatpush1.bf16.msra.mxu0 %v2707
      %2893 = vmatprep.subr.bf16.mxu0 0
      %2894 = vmatpush1.bf16.msra.mxu0 %v2713
      %2895 = vmatprep.subr.bf16.mxu0 0
      %2896 = vmatpush1.bf16.msra.mxu0 %v2719
      %2897 = vmatprep.subr.bf16.mxu0 0
      %2898 = vmatpush1.bf16.msra.mxu0 %v2725
      %2899 = vmatprep.subr.bf16.mxu0 0
      %2900 = vmatpush1.bf16.msra.mxu0 %v2731
      %2901 = vmatprep.subr.bf16.mxu0 0
      %2902 = vmatpush1.bf16.msra.mxu0 %v2737
      %2903 = vmatprep.mubr.bf16.mxu0 %v2635
      %2904 = vmatmul.mubr.bf16.gmra.mrb[0].mxu0 %v2634
      %v2905 = vpop.f32.mrb[0].mxu0
      %v2906 = vadd.f32 0.0, %v2905
      %v2907 = vpop.f32.mrb[0].mxu0
      %v2908 = vpop.f32.mrb[0].mxu0
      %v2909 = vadd.f32 0.0, %v2908
      %v2910 = vpop.f32.mrb[0].mxu0
      %2911 = vmatprep.mubr.bf16.mxu0 %v2637
      %2912 = vmatmul.mubr.bf16.gmra.mrb[0].mxu0 %v2636
      %v2913 = vpop.f32.mrb[0].mxu0
      %v2914 = vadd.f32 0.0, %v2913
      %v2915 = vpop.f32.mrb[0].mxu0
      %v2916 = vpop.f32.mrb[0].mxu0
      %v2917 = vadd.f32 0.0, %v2916
      %v2918 = vpop.f32.mrb[0].mxu0
      %2919 = vdwg.mxu0
      %v2920 = vadd.f32 %v2605, %v2853
      %v2921 = vadd.f32 %v2606, %v2855
      %v2922 = vadd.f32 %v2607, %v2906
      %v2923 = vadd.f32 %v2608, %v2857
      %v2924 = vadd.f32 %v2609, %v2859
      %v2925 = vadd.f32 %v2610, %v2909
      %v2926 = vadd.f32 %v2611, %v2863
      %v2927 = vadd.f32 %v2612, %v2865
      %v2928 = vadd.f32 %v2613, %v2914
      %v2929 = vadd.f32 %v2614, %v2867
      %v2930 = vadd.f32 %v2615, %v2869
      %v2931 = vadd.f32 %v2616, %v2917
      %s2932 = scalar_lea.vmem %s6, 128
      %v2933 = vld [vmem:[%s2932] sm:$0xff]
      %v2934 = vld [vmem:[%s2932 + $0x8] sm:$0xff]
      %v2935 = vld [vmem:[%s2932 + $0x10] sm:$0xff]
      %v2936 = vld [vmem:[%s2932 + $0x18] sm:$0xff]
      %v2941 = vunpack.c.l.b16 %v2933
      %v2942 = vunpack.c.h.b16 %v2933
      %v2943 = vunpack.c.l.b16 %v2934
      %v2944 = vunpack.c.h.b16 %v2934
      %v2945 = vunpack.c.l.b16 %v2935
      %v2946 = vunpack.c.h.b16 %v2935
      %v2947 = vunpack.c.l.b16 %v2936
      %v2948 = vunpack.c.h.b16 %v2936
      %v2949 = vpack.c.b16 %v2943, %v2941
      %v2950 = vpack.c.b16 %v2944, %v2942
      %v2951 = vpack.c.b16 %v2947, %v2945
      %v2952 = vpack.c.b16 %v2948, %v2946
      %2957 = vrot.lane.b32.xlu0 %v1777, 109
      %v2958 = vpop.permute.xlu0 %2957
      %2959 = vrot.lane.b32.xlu0 %v1778, 109
      %v2960 = vpop.permute.xlu0 %2959
      %2961 = vrot.lane.b32.xlu0 %v1779, 109
      %v2962 = vpop.permute.xlu0 %2961
      %2963 = vrot.lane.b32.xlu0 %v1780, 109
      %v2964 = vpop.permute.xlu0 %2963
      %2965 = vrot.lane.b32.xlu0 %v1781, 109
      %v2966 = vpop.permute.xlu0 %2965
      %2967 = vrot.lane.b32.xlu0 %v1782, 109
      %v2968 = vpop.permute.xlu0 %2967
      %2969 = vrot.lane.b32.xlu0 %v1783, 109
      %v2970 = vpop.permute.xlu0 %2969
      %2971 = vrot.lane.b32.xlu0 %v1784, 109
      %v2972 = vpop.permute.xlu0 %2971
      %2973 = vrot.lane.b32.xlu0 %v1785, 109
      %v2974 = vpop.permute.xlu0 %2973
      %2975 = vrot.lane.b32.xlu0 %v1786, 109
      %v2976 = vpop.permute.xlu0 %2975
      %2977 = vrot.lane.b32.xlu0 %v1787, 109
      %v2978 = vpop.permute.xlu0 %2977
      %2979 = vrot.lane.b32.xlu0 %v1788, 109
      %v2980 = vpop.permute.xlu0 %2979
      %2981 = vrot.lane.b32.xlu0 %v1789, 109
      %v2982 = vpop.permute.xlu0 %2981
      %2983 = vrot.lane.b32.xlu0 %v1790, 109
      %v2984 = vpop.permute.xlu0 %2983
      %2985 = vrot.lane.b32.xlu0 %v1791, 109
      %v2986 = vpop.permute.xlu0 %2985
      %2987 = vrot.lane.b32.xlu0 %v1792, 109
      %v2988 = vpop.permute.xlu0 %2987
      %2989 = vrot.lane.b32.xlu0 %v1793, 109
      %v2990 = vpop.permute.xlu0 %2989
      %2991 = vrot.lane.b32.xlu0 %v1794, 109
      %v2992 = vpop.permute.xlu0 %2991
      %2993 = vrot.lane.b32.xlu0 %v1795, 109
      %v2994 = vpop.permute.xlu0 %2993
      %2995 = vrot.lane.b32.xlu0 %v1796, 109
      %v2996 = vpop.permute.xlu0 %2995
      %2997 = vrot.lane.b32.xlu0 %v1797, 109
      %v2998 = vpop.permute.xlu0 %2997
      %2999 = vrot.lane.b32.xlu0 %v1798, 109
      %v3000 = vpop.permute.xlu0 %2999
      %3001 = vrot.lane.b32.xlu0 %v1799, 109
      %v3002 = vpop.permute.xlu0 %3001
      %3003 = vrot.lane.b32.xlu0 %v1800, 109
      %v3004 = vpop.permute.xlu0 %3003
      %3005 = vrot.lane.b32.xlu0 %v1801, 109
      %v3006 = vpop.permute.xlu0 %3005
      %3007 = vrot.lane.b32.xlu0 %v1802, 109
      %v3008 = vpop.permute.xlu0 %3007
      %3009 = vrot.lane.b32.xlu0 %v1803, 109
      %v3010 = vpop.permute.xlu0 %3009
      %3011 = vrot.lane.b32.xlu0 %v1804, 109
      %v3012 = vpop.permute.xlu0 %3011
      %3013 = vrot.lane.b32.xlu0 %v1805, 109
      %v3014 = vpop.permute.xlu0 %3013
      %3015 = vrot.lane.b32.xlu0 %v1806, 109
      %v3016 = vpop.permute.xlu0 %3015
      %3017 = vrot.lane.b32.xlu0 %v1807, 109
      %v3018 = vpop.permute.xlu0 %3017
      %3019 = vrot.lane.b32.xlu0 %v1808, 109
      %v3020 = vpop.permute.xlu0 %3019
      %3021 = vrot.lane.b32.xlu0 %v1809, 109
      %v3022 = vpop.permute.xlu0 %3021
      %3023 = vrot.lane.b32.xlu0 %v1810, 109
      %v3024 = vpop.permute.xlu0 %3023
      %3025 = vrot.lane.b32.xlu0 %v1811, 109
      %v3026 = vpop.permute.xlu0 %3025
      %3027 = vrot.lane.b32.xlu0 %v1812, 109
      %v3028 = vpop.permute.xlu0 %3027
      %3029 = vrot.lane.b32.xlu0 %v1813, 109
      %v3030 = vpop.permute.xlu0 %3029
      %3031 = vrot.lane.b32.xlu0 %v1814, 109
      %v3032 = vpop.permute.xlu0 %3031
      %3033 = vrot.lane.b32.xlu0 %v1815, 109
      %v3034 = vpop.permute.xlu0 %3033
      %3035 = vrot.lane.b32.xlu0 %v1816, 109
      %v3036 = vpop.permute.xlu0 %3035
      %3037 = vrot.lane.b32.xlu0 %v1817, 109
      %v3038 = vpop.permute.xlu0 %3037
      %3039 = vrot.lane.b32.xlu0 %v1818, 109
      %v3040 = vpop.permute.xlu0 %3039
      %3041 = vrot.lane.b32.xlu0 %v1819, 109
      %v3042 = vpop.permute.xlu0 %3041
      %3043 = vrot.lane.b32.xlu0 %v1820, 109
      %v3044 = vpop.permute.xlu0 %3043
      %3045 = vrot.lane.b32.xlu0 %v1821, 109
      %v3046 = vpop.permute.xlu0 %3045
      %3047 = vrot.lane.b32.xlu0 %v1822, 109
      %v3048 = vpop.permute.xlu0 %3047
      %3049 = vrot.lane.b32.xlu0 %v1823, 109
      %v3050 = vpop.permute.xlu0 %3049
      %3051 = vrot.lane.b32.xlu0 %v1824, 109
      %v3052 = vpop.permute.xlu0 %3051
      %v3053 = vsel %vm442, %v2958, %v2960
      %v3054 = vsel %vm442, %v2960, %v2962
      %v3055 = vsel %vm442, %v2964, %v2966
      %v3056 = vsel %vm442, %v2966, %v2968
      %v3057 = vsel %vm442, %v2970, %v2972
      %v3058 = vsel %vm442, %v2972, %v2974
      %v3059 = vsel %vm442, %v2976, %v2978
      %v3060 = vsel %vm442, %v2978, %v2980
      %v3061 = vsel %vm442, %v2982, %v2984
      %v3062 = vsel %vm442, %v2984, %v2986
      %v3063 = vsel %vm442, %v2988, %v2990
      %v3064 = vsel %vm442, %v2990, %v2992
      %v3065 = vsel %vm442, %v2994, %v2996
      %v3066 = vsel %vm442, %v2996, %v2998
      %v3067 = vsel %vm442, %v3000, %v3002
      %v3068 = vsel %vm442, %v3002, %v3004
      %v3069 = vsel %vm442, %v3006, %v3008
      %v3070 = vsel %vm442, %v3008, %v3010
      %v3071 = vsel %vm442, %v3012, %v3014
      %v3072 = vsel %vm442, %v3014, %v3016
      %v3073 = vsel %vm442, %v3018, %v3020
      %v3074 = vsel %vm442, %v3020, %v3022
      %v3075 = vsel %vm442, %v3024, %v3026
      %v3076 = vsel %vm442, %v3026, %v3028
      %v3077 = vsel %vm442, %v3030, %v3032
      %v3078 = vsel %vm442, %v3032, %v3034
      %v3079 = vsel %vm442, %v3036, %v3038
      %v3080 = vsel %vm442, %v3038, %v3040
      %v3081 = vsel %vm442, %v3042, %v3044
      %v3082 = vsel %vm442, %v3044, %v3046
      %v3083 = vsel %vm442, %v3048, %v3050
      %v3084 = vsel %vm442, %v3050, %v3052
      %3133 = vmatprep.subr.bf16.mxu0 %v3054
      %3134 = vmatpush1.bf16.msra.mxu0 %v3053
      %3135 = vmatprep.subr.bf16.mxu0 %v3056
      %3136 = vmatpush1.bf16.msra.mxu0 %v3055
      %3137 = vmatprep.subr.bf16.mxu0 %v3058
      %3138 = vmatpush1.bf16.msra.mxu0 %v3057
      %3139 = vmatprep.subr.bf16.mxu0 %v3060
      %3140 = vmatpush1.bf16.msra.mxu0 %v3059
      %3141 = vmatprep.subr.bf16.mxu0 %v3062
      %3142 = vmatpush1.bf16.msra.mxu0 %v3061
      %3143 = vmatprep.subr.bf16.mxu0 %v3064
      %3144 = vmatpush1.bf16.msra.mxu0 %v3063
      %3145 = vmatprep.subr.bf16.mxu0 %v3066
      %3146 = vmatpush1.bf16.msra.mxu0 %v3065
      %3147 = vmatprep.subr.bf16.mxu0 %v3068
      %3148 = vmatpush1.bf16.msra.mxu0 %v3067
      %3149 = vmatprep.subr.bf16.mxu0 %v3070
      %3150 = vmatpush1.bf16.msra.mxu0 %v3069
      %3151 = vmatprep.subr.bf16.mxu0 %v3072
      %3152 = vmatpush1.bf16.msra.mxu0 %v3071
      %3153 = vmatprep.subr.bf16.mxu0 %v3074
      %3154 = vmatpush1.bf16.msra.mxu0 %v3073
      %3155 = vmatprep.subr.bf16.mxu0 %v3076
      %3156 = vmatpush1.bf16.msra.mxu0 %v3075
      %3157 = vmatprep.subr.bf16.mxu0 %v3078
      %3158 = vmatpush1.bf16.msra.mxu0 %v3077
      %3159 = vmatprep.subr.bf16.mxu0 %v3080
      %3160 = vmatpush1.bf16.msra.mxu0 %v3079
      %3161 = vmatprep.subr.bf16.mxu0 %v3082
      %3162 = vmatpush1.bf16.msra.mxu0 %v3081
      %3163 = vmatprep.subr.bf16.mxu0 %v3084
      %3164 = vmatpush1.bf16.msra.mxu0 %v3083
      %3165 = vmatprep.mubr.bf16.mxu0 %v2950
      %3166 = vmatmul.mubr.bf16.gmra.mrb[0].mxu0 %v2949
      %v3167 = vpop.f32.mrb[0].mxu0
      %v3168 = vadd.f32 0.0, %v3167
      %v3169 = vpop.f32.mrb[0].mxu0
      %v3170 = vadd.f32 0.0, %v3169
      %v3171 = vpop.f32.mrb[0].mxu0
      %v3172 = vadd.f32 0.0, %v3171
      %v3173 = vpop.f32.mrb[0].mxu0
      %v3174 = vadd.f32 0.0, %v3173
      %3175 = vmatprep.mubr.bf16.mxu0 %v2952
      %3176 = vmatmul.mubr.bf16.gmra.mrb[0].mxu0 %v2951
      %v3177 = vpop.f32.mrb[0].mxu0
      %v3178 = vadd.f32 0.0, %v3177
      %v3179 = vpop.f32.mrb[0].mxu0
      %v3180 = vadd.f32 0.0, %v3179
      %v3181 = vpop.f32.mrb[0].mxu0
      %v3182 = vadd.f32 0.0, %v3181
      %v3183 = vpop.f32.mrb[0].mxu0
      %v3184 = vadd.f32 0.0, %v3183
      %3185 = vdwg.mxu0
      %3186 = vmatprep.subr.bf16.mxu0 0
      %3187 = vmatpush1.bf16.msra.mxu0 %v2962
      %3188 = vmatprep.subr.bf16.mxu0 0
      %3189 = vmatpush1.bf16.msra.mxu0 %v2968
      %3190 = vmatprep.subr.bf16.mxu0 0
      %3191 = vmatpush1.bf16.msra.mxu0 %v2974
      %3192 = vmatprep.subr.bf16.mxu0 0
      %3193 = vmatpush1.bf16.msra.mxu0 %v2980
      %3194 = vmatprep.subr.bf16.mxu0 0
      %3195 = vmatpush1.bf16.msra.mxu0 %v2986
      %3196 = vmatprep.subr.bf16.mxu0 0
      %3197 = vmatpush1.bf16.msra.mxu0 %v2992
      %3198 = vmatprep.subr.bf16.mxu0 0
      %3199 = vmatpush1.bf16.msra.mxu0 %v2998
      %3200 = vmatprep.subr.bf16.mxu0 0
      %3201 = vmatpush1.bf16.msra.mxu0 %v3004
      %3202 = vmatprep.subr.bf16.mxu0 0
      %3203 = vmatpush1.bf16.msra.mxu0 %v3010
      %3204 = vmatprep.subr.bf16.mxu0 0
      %3205 = vmatpush1.bf16.msra.mxu0 %v3016
      %3206 = vmatprep.subr.bf16.mxu0 0
      %3207 = vmatpush1.bf16.msra.mxu0 %v3022
      %3208 = vmatprep.subr.bf16.mxu0 0
      %3209 = vmatpush1.bf16.msra.mxu0 %v3028
      %3210 = vmatprep.subr.bf16.mxu0 0
      %3211 = vmatpush1.bf16.msra.mxu0 %v3034
      %3212 = vmatprep.subr.bf16.mxu0 0
      %3213 = vmatpush1.bf16.msra.mxu0 %v3040
      %3214 = vmatprep.subr.bf16.mxu0 0
      %3215 = vmatpush1.bf16.msra.mxu0 %v3046
      %3216 = vmatprep.subr.bf16.mxu0 0
      %3217 = vmatpush1.bf16.msra.mxu0 %v3052
      %3218 = vmatprep.mubr.bf16.mxu0 %v2950
      %3219 = vmatmul.mubr.bf16.gmra.mrb[0].mxu0 %v2949
      %v3220 = vpop.f32.mrb[0].mxu0
      %v3221 = vadd.f32 0.0, %v3220
      %v3222 = vpop.f32.mrb[0].mxu0
      %v3223 = vpop.f32.mrb[0].mxu0
      %v3224 = vadd.f32 0.0, %v3223
      %v3225 = vpop.f32.mrb[0].mxu0
      %3226 = vmatprep.mubr.bf16.mxu0 %v2952
      %3227 = vmatmul.mubr.bf16.gmra.mrb[0].mxu0 %v2951
      %v3228 = vpop.f32.mrb[0].mxu0
      %v3229 = vadd.f32 0.0, %v3228
      %v3230 = vpop.f32.mrb[0].mxu0
      %v3231 = vpop.f32.mrb[0].mxu0
      %v3232 = vadd.f32 0.0, %v3231
      %v3233 = vpop.f32.mrb[0].mxu0
      %3234 = vdwg.mxu0
      %v3235 = vadd.f32 %v2920, %v3168
      %v3236 = vadd.f32 %v2921, %v3170
      %v3237 = vadd.f32 %v2922, %v3221
      %v3238 = vadd.f32 %v2923, %v3172
      %v3239 = vadd.f32 %v2924, %v3174
      %v3240 = vadd.f32 %v2925, %v3224
      %v3241 = vadd.f32 %v2926, %v3178
      %v3242 = vadd.f32 %v2927, %v3180
      %v3243 = vadd.f32 %v2928, %v3229
      %v3244 = vadd.f32 %v2929, %v3182
      %v3245 = vadd.f32 %v2930, %v3184
      %v3246 = vadd.f32 %v2931, %v3232
      %s3247 = scalar_lea.vmem %s6, 160
      %v3248 = vld [vmem:[%s3247] sm:$0xff]
      %v3249 = vld [vmem:[%s3247 + $0x8] sm:$0xff]
      %v3250 = vld [vmem:[%s3247 + $0x10] sm:$0xff]
      %v3251 = vld [vmem:[%s3247 + $0x18] sm:$0xff]
      %v3256 = vunpack.c.l.b16 %v3248
      %v3257 = vunpack.c.h.b16 %v3248
      %v3258 = vunpack.c.l.b16 %v3249
      %v3259 = vunpack.c.h.b16 %v3249
      %v3260 = vunpack.c.l.b16 %v3250
      %v3261 = vunpack.c.h.b16 %v3250
      %v3262 = vunpack.c.l.b16 %v3251
      %v3263 = vunpack.c.h.b16 %v3251
      %v3264 = vpack.c.b16 %v3258, %v3256
      %v3265 = vpack.c.b16 %v3259, %v3257
      %v3266 = vpack.c.b16 %v3262, %v3260
      %v3267 = vpack.c.b16 %v3263, %v3261
      %3272 = vrot.lane.b32.xlu0 %v1777, 108
      %v3273 = vpop.permute.xlu0 %3272
      %3274 = vrot.lane.b32.xlu0 %v1778, 108
      %v3275 = vpop.permute.xlu0 %3274
      %3276 = vrot.lane.b32.xlu0 %v1779, 108
      %v3277 = vpop.permute.xlu0 %3276
      %3278 = vrot.lane.b32.xlu0 %v1780, 108
      %v3279 = vpop.permute.xlu0 %3278
      %3280 = vrot.lane.b32.xlu0 %v1781, 108
      %v3281 = vpop.permute.xlu0 %3280
      %3282 = vrot.lane.b32.xlu0 %v1782, 108
      %v3283 = vpop.permute.xlu0 %3282
      %3284 = vrot.lane.b32.xlu0 %v1783, 108
      %v3285 = vpop.permute.xlu0 %3284
      %3286 = vrot.lane.b32.xlu0 %v1784, 108
      %v3287 = vpop.permute.xlu0 %3286
      %3288 = vrot.lane.b32.xlu0 %v1785, 108
      %v3289 = vpop.permute.xlu0 %3288
      %3290 = vrot.lane.b32.xlu0 %v1786, 108
      %v3291 = vpop.permute.xlu0 %3290
      %3292 = vrot.lane.b32.xlu0 %v1787, 108
      %v3293 = vpop.permute.xlu0 %3292
      %3294 = vrot.lane.b32.xlu0 %v1788, 108
      %v3295 = vpop.permute.xlu0 %3294
      %3296 = vrot.lane.b32.xlu0 %v1789, 108
      %v3297 = vpop.permute.xlu0 %3296
      %3298 = vrot.lane.b32.xlu0 %v1790, 108
      %v3299 = vpop.permute.xlu0 %3298
      %3300 = vrot.lane.b32.xlu0 %v1791, 108
      %v3301 = vpop.permute.xlu0 %3300
      %3302 = vrot.lane.b32.xlu0 %v1792, 108
      %v3303 = vpop.permute.xlu0 %3302
      %3304 = vrot.lane.b32.xlu0 %v1793, 108
      %v3305 = vpop.permute.xlu0 %3304
      %3306 = vrot.lane.b32.xlu0 %v1794, 108
      %v3307 = vpop.permute.xlu0 %3306
      %3308 = vrot.lane.b32.xlu0 %v1795, 108
      %v3309 = vpop.permute.xlu0 %3308
      %3310 = vrot.lane.b32.xlu0 %v1796, 108
      %v3311 = vpop.permute.xlu0 %3310
      %3312 = vrot.lane.b32.xlu0 %v1797, 108
      %v3313 = vpop.permute.xlu0 %3312
      %3314 = vrot.lane.b32.xlu0 %v1798, 108
      %v3315 = vpop.permute.xlu0 %3314
      %3316 = vrot.lane.b32.xlu0 %v1799, 108
      %v3317 = vpop.permute.xlu0 %3316
      %3318 = vrot.lane.b32.xlu0 %v1800, 108
      %v3319 = vpop.permute.xlu0 %3318
      %3320 = vrot.lane.b32.xlu0 %v1801, 108
      %v3321 = vpop.permute.xlu0 %3320
      %3322 = vrot.lane.b32.xlu0 %v1802, 108
      %v3323 = vpop.permute.xlu0 %3322
      %3324 = vrot.lane.b32.xlu0 %v1803, 108
      %v3325 = vpop.permute.xlu0 %3324
      %3326 = vrot.lane.b32.xlu0 %v1804, 108
      %v3327 = vpop.permute.xlu0 %3326
      %3328 = vrot.lane.b32.xlu0 %v1805, 108
      %v3329 = vpop.permute.xlu0 %3328
      %3330 = vrot.lane.b32.xlu0 %v1806, 108
      %v3331 = vpop.permute.xlu0 %3330
      %3332 = vrot.lane.b32.xlu0 %v1807, 108
      %v3333 = vpop.permute.xlu0 %3332
      %3334 = vrot.lane.b32.xlu0 %v1808, 108
      %v3335 = vpop.permute.xlu0 %3334
      %3336 = vrot.lane.b32.xlu0 %v1809, 108
      %v3337 = vpop.permute.xlu0 %3336
      %3338 = vrot.lane.b32.xlu0 %v1810, 108
      %v3339 = vpop.permute.xlu0 %3338
      %3340 = vrot.lane.b32.xlu0 %v1811, 108
      %v3341 = vpop.permute.xlu0 %3340
      %3342 = vrot.lane.b32.xlu0 %v1812, 108
      %v3343 = vpop.permute.xlu0 %3342
      %3344 = vrot.lane.b32.xlu0 %v1813, 108
      %v3345 = vpop.permute.xlu0 %3344
      %3346 = vrot.lane.b32.xlu0 %v1814, 108
      %v3347 = vpop.permute.xlu0 %3346
      %3348 = vrot.lane.b32.xlu0 %v1815, 108
      %v3349 = vpop.permute.xlu0 %3348
      %3350 = vrot.lane.b32.xlu0 %v1816, 108
      %v3351 = vpop.permute.xlu0 %3350
      %3352 = vrot.lane.b32.xlu0 %v1817, 108
      %v3353 = vpop.permute.xlu0 %3352
      %3354 = vrot.lane.b32.xlu0 %v1818, 108
      %v3355 = vpop.permute.xlu0 %3354
      %3356 = vrot.lane.b32.xlu0 %v1819, 108
      %v3357 = vpop.permute.xlu0 %3356
      %3358 = vrot.lane.b32.xlu0 %v1820, 108
      %v3359 = vpop.permute.xlu0 %3358
      %3360 = vrot.lane.b32.xlu0 %v1821, 108
      %v3361 = vpop.permute.xlu0 %3360
      %3362 = vrot.lane.b32.xlu0 %v1822, 108
      %v3363 = vpop.permute.xlu0 %3362
      %3364 = vrot.lane.b32.xlu0 %v1823, 108
      %v3365 = vpop.permute.xlu0 %3364
      %3366 = vrot.lane.b32.xlu0 %v1824, 108
      %v3367 = vpop.permute.xlu0 %3366
      %v3368 = vsel %vm451, %v3273, %v3275
      %v3369 = vsel %vm451, %v3275, %v3277
      %v3370 = vsel %vm451, %v3279, %v3281
      %v3371 = vsel %vm451, %v3281, %v3283
      %v3372 = vsel %vm451, %v3285, %v3287
      %v3373 = vsel %vm451, %v3287, %v3289
      %v3374 = vsel %vm451, %v3291, %v3293
      %v3375 = vsel %vm451, %v3293, %v3295
      %v3376 = vsel %vm451, %v3297, %v3299
      %v3377 = vsel %vm451, %v3299, %v3301
      %v3378 = vsel %vm451, %v3303, %v3305
      %v3379 = vsel %vm451, %v3305, %v3307
      %v3380 = vsel %vm451, %v3309, %v3311
      %v3381 = vsel %vm451, %v3311, %v3313
      %v3382 = vsel %vm451, %v3315, %v3317
      %v3383 = vsel %vm451, %v3317, %v3319
      %v3384 = vsel %vm451, %v3321, %v3323
      %v3385 = vsel %vm451, %v3323, %v3325
      %v3386 = vsel %vm451, %v3327, %v3329
      %v3387 = vsel %vm451, %v3329, %v3331
      %v3388 = vsel %vm451, %v3333, %v3335
      %v3389 = vsel %vm451, %v3335, %v3337
      %v3390 = vsel %vm451, %v3339, %v3341
      %v3391 = vsel %vm451, %v3341, %v3343
      %v3392 = vsel %vm451, %v3345, %v3347
      %v3393 = vsel %vm451, %v3347, %v3349
      %v3394 = vsel %vm451, %v3351, %v3353
      %v3395 = vsel %vm451, %v3353, %v3355
      %v3396 = vsel %vm451, %v3357, %v3359
      %v3397 = vsel %vm451, %v3359, %v3361
      %v3398 = vsel %vm451, %v3363, %v3365
      %v3399 = vsel %vm451, %v3365, %v3367
      %3448 = vmatprep.subr.bf16.mxu0 %v3369
      %3449 = vmatpush1.bf16.msra.mxu0 %v3368
      %3450 = vmatprep.subr.bf16.mxu0 %v3371
      %3451 = vmatpush1.bf16.msra.mxu0 %v3370
      %3452 = vmatprep.subr.bf16.mxu0 %v3373
      %3453 = vmatpush1.bf16.msra.mxu0 %v3372
      %3454 = vmatprep.subr.bf16.mxu0 %v3375
      %3455 = vmatpush1.bf16.msra.mxu0 %v3374
      %3456 = vmatprep.subr.bf16.mxu0 %v3377
      %3457 = vmatpush1.bf16.msra.mxu0 %v3376
      %3458 = vmatprep.subr.bf16.mxu0 %v3379
      %3459 = vmatpush1.bf16.msra.mxu0 %v3378
      %3460 = vmatprep.subr.bf16.mxu0 %v3381
      %3461 = vmatpush1.bf16.msra.mxu0 %v3380
      %3462 = vmatprep.subr.bf16.mxu0 %v3383
      %3463 = vmatpush1.bf16.msra.mxu0 %v3382
      %3464 = vmatprep.subr.bf16.mxu0 %v3385
      %3465 = vmatpush1.bf16.msra.mxu0 %v3384
      %3466 = vmatprep.subr.bf16.mxu0 %v3387
      %3467 = vmatpush1.bf16.msra.mxu0 %v3386
      %3468 = vmatprep.subr.bf16.mxu0 %v3389
      %3469 = vmatpush1.bf16.msra.mxu0 %v3388
      %3470 = vmatprep.subr.bf16.mxu0 %v3391
      %3471 = vmatpush1.bf16.msra.mxu0 %v3390
      %3472 = vmatprep.subr.bf16.mxu0 %v3393
      %3473 = vmatpush1.bf16.msra.mxu0 %v3392
      %3474 = vmatprep.subr.bf16.mxu0 %v3395
      %3475 = vmatpush1.bf16.msra.mxu0 %v3394
      %3476 = vmatprep.subr.bf16.mxu0 %v3397
      %3477 = vmatpush1.bf16.msra.mxu0 %v3396
      %3478 = vmatprep.subr.bf16.mxu0 %v3399
      %3479 = vmatpush1.bf16.msra.mxu0 %v3398
      %3480 = vmatprep.mubr.bf16.mxu0 %v3265
      %3481 = vmatmul.mubr.bf16.gmra.mrb[0].mxu0 %v3264
      %v3482 = vpop.f32.mrb[0].mxu0
      %v3483 = vadd.f32 0.0, %v3482
      %v3484 = vpop.f32.mrb[0].mxu0
      %v3485 = vadd.f32 0.0, %v3484
      %v3486 = vpop.f32.mrb[0].mxu0
      %v3487 = vadd.f32 0.0, %v3486
      %v3488 = vpop.f32.mrb[0].mxu0
      %v3489 = vadd.f32 0.0, %v3488
      %3490 = vmatprep.mubr.bf16.mxu0 %v3267
      %3491 = vmatmul.mubr.bf16.gmra.mrb[0].mxu0 %v3266
      %v3492 = vpop.f32.mrb[0].mxu0
      %v3493 = vadd.f32 0.0, %v3492
      %v3494 = vpop.f32.mrb[0].mxu0
      %v3495 = vadd.f32 0.0, %v3494
      %v3496 = vpop.f32.mrb[0].mxu0
      %v3497 = vadd.f32 0.0, %v3496
      %v3498 = vpop.f32.mrb[0].mxu0
      %v3499 = vadd.f32 0.0, %v3498
      %3500 = vdwg.mxu0
      %3501 = vmatprep.subr.bf16.mxu0 0
      %3502 = vmatpush1.bf16.msra.mxu0 %v3277
      %3503 = vmatprep.subr.bf16.mxu0 0
      %3504 = vmatpush1.bf16.msra.mxu0 %v3283
      %3505 = vmatprep.subr.bf16.mxu0 0
      %3506 = vmatpush1.bf16.msra.mxu0 %v3289
      %3507 = vmatprep.subr.bf16.mxu0 0
      %3508 = vmatpush1.bf16.msra.mxu0 %v3295
      %3509 = vmatprep.subr.bf16.mxu0 0
      %3510 = vmatpush1.bf16.msra.mxu0 %v3301
      %3511 = vmatprep.subr.bf16.mxu0 0
      %3512 = vmatpush1.bf16.msra.mxu0 %v3307
      %3513 = vmatprep.subr.bf16.mxu0 0
      %3514 = vmatpush1.bf16.msra.mxu0 %v3313
      %3515 = vmatprep.subr.bf16.mxu0 0
      %3516 = vmatpush1.bf16.msra.mxu0 %v3319
      %3517 = vmatprep.subr.bf16.mxu0 0
      %3518 = vmatpush1.bf16.msra.mxu0 %v3325
      %3519 = vmatprep.subr.bf16.mxu0 0
      %3520 = vmatpush1.bf16.msra.mxu0 %v3331
      %3521 = vmatprep.subr.bf16.mxu0 0
      %3522 = vmatpush1.bf16.msra.mxu0 %v3337
      %3523 = vmatprep.subr.bf16.mxu0 0
      %3524 = vmatpush1.bf16.msra.mxu0 %v3343
      %3525 = vmatprep.subr.bf16.mxu0 0
      %3526 = vmatpush1.bf16.msra.mxu0 %v3349
      %3527 = vmatprep.subr.bf16.mxu0 0
      %3528 = vmatpush1.bf16.msra.mxu0 %v3355
      %3529 = vmatprep.subr.bf16.mxu0 0
      %3530 = vmatpush1.bf16.msra.mxu0 %v3361
      %3531 = vmatprep.subr.bf16.mxu0 0
      %3532 = vmatpush1.bf16.msra.mxu0 %v3367
      %3533 = vmatprep.mubr.bf16.mxu0 %v3265
      %3534 = vmatmul.mubr.bf16.gmra.mrb[0].mxu0 %v3264
      %v3535 = vpop.f32.mrb[0].mxu0
      %v3536 = vadd.f32 0.0, %v3535
      %v3537 = vpop.f32.mrb[0].mxu0
      %v3538 = vpop.f32.mrb[0].mxu0
      %v3539 = vadd.f32 0.0, %v3538
      %v3540 = vpop.f32.mrb[0].mxu0
      %3541 = vmatprep.mubr.bf16.mxu0 %v3267
      %3542 = vmatmul.mubr.bf16.gmra.mrb[0].mxu0 %v3266
      %v3543 = vpop.f32.mrb[0].mxu0
      %v3544 = vadd.f32 0.0, %v3543
      %v3545 = vpop.f32.mrb[0].mxu0
      %v3546 = vpop.f32.mrb[0].mxu0
      %v3547 = vadd.f32 0.0, %v3546
      %v3548 = vpop.f32.mrb[0].mxu0
      %3549 = vdwg.mxu0
      %v3550 = vadd.f32 %v3235, %v3483
      %v3551 = vadd.f32 %v3236, %v3485
      %v3552 = vadd.f32 %v3237, %v3536
      %v3553 = vadd.f32 %v3238, %v3487
      %v3554 = vadd.f32 %v3239, %v3489
      %v3555 = vadd.f32 %v3240, %v3539
      %v3556 = vadd.f32 %v3241, %v3493
      %v3557 = vadd.f32 %v3242, %v3495
      %v3558 = vadd.f32 %v3243, %v3544
      %v3559 = vadd.f32 %v3244, %v3497
      %v3560 = vadd.f32 %v3245, %v3499
      %v3561 = vadd.f32 %v3246, %v3547
      %s3562 = scalar_lea.vmem %s6, 192
      %v3563 = vld [vmem:[%s3562] sm:$0xff]
      %v3564 = vld [vmem:[%s3562 + $0x8] sm:$0xff]
      %v3565 = vld [vmem:[%s3562 + $0x10] sm:$0xff]
      %v3566 = vld [vmem:[%s3562 + $0x18] sm:$0xff]
      %v3571 = vunpack.c.l.b16 %v3563
      %v3572 = vunpack.c.h.b16 %v3563
      %v3573 = vunpack.c.l.b16 %v3564
      %v3574 = vunpack.c.h.b16 %v3564
      %v3575 = vunpack.c.l.b16 %v3565
      %v3576 = vunpack.c.h.b16 %v3565
      %v3577 = vunpack.c.l.b16 %v3566
      %v3578 = vunpack.c.h.b16 %v3566
      %v3579 = vpack.c.b16 %v3573, %v3571
      %v3580 = vpack.c.b16 %v3574, %v3572
      %v3581 = vpack.c.b16 %v3577, %v3575
      %v3582 = vpack.c.b16 %v3578, %v3576
      %3587 = vrot.lane.b32.xlu0 %v1777, 92
      %v3588 = vpop.permute.xlu0 %3587
      %3589 = vrot.lane.b32.xlu0 %v1778, 92
      %v3590 = vpop.permute.xlu0 %3589
      %3591 = vrot.lane.b32.xlu0 %v1779, 92
      %v3592 = vpop.permute.xlu0 %3591
      %3593 = vrot.lane.b32.xlu0 %v1780, 92
      %v3594 = vpop.permute.xlu0 %3593
      %3595 = vrot.lane.b32.xlu0 %v1781, 92
      %v3596 = vpop.permute.xlu0 %3595
      %3597 = vrot.lane.b32.xlu0 %v1782, 92
      %v3598 = vpop.permute.xlu0 %3597
      %3599 = vrot.lane.b32.xlu0 %v1783, 92
      %v3600 = vpop.permute.xlu0 %3599
      %3601 = vrot.lane.b32.xlu0 %v1784, 92
      %v3602 = vpop.permute.xlu0 %3601
      %3603 = vrot.lane.b32.xlu0 %v1785, 92
      %v3604 = vpop.permute.xlu0 %3603
      %3605 = vrot.lane.b32.xlu0 %v1786, 92
      %v3606 = vpop.permute.xlu0 %3605
      %3607 = vrot.lane.b32.xlu0 %v1787, 92
      %v3608 = vpop.permute.xlu0 %3607
      %3609 = vrot.lane.b32.xlu0 %v1788, 92
      %v3610 = vpop.permute.xlu0 %3609
      %3611 = vrot.lane.b32.xlu0 %v1789, 92
      %v3612 = vpop.permute.xlu0 %3611
      %3613 = vrot.lane.b32.xlu0 %v1790, 92
      %v3614 = vpop.permute.xlu0 %3613
      %3615 = vrot.lane.b32.xlu0 %v1791, 92
      %v3616 = vpop.permute.xlu0 %3615
      %3617 = vrot.lane.b32.xlu0 %v1792, 92
      %v3618 = vpop.permute.xlu0 %3617
      %3619 = vrot.lane.b32.xlu0 %v1793, 92
      %v3620 = vpop.permute.xlu0 %3619
      %3621 = vrot.lane.b32.xlu0 %v1794, 92
      %v3622 = vpop.permute.xlu0 %3621
      %3623 = vrot.lane.b32.xlu0 %v1795, 92
      %v3624 = vpop.permute.xlu0 %3623
      %3625 = vrot.lane.b32.xlu0 %v1796, 92
      %v3626 = vpop.permute.xlu0 %3625
      %3627 = vrot.lane.b32.xlu0 %v1797, 92
      %v3628 = vpop.permute.xlu0 %3627
      %3629 = vrot.lane.b32.xlu0 %v1798, 92
      %v3630 = vpop.permute.xlu0 %3629
      %3631 = vrot.lane.b32.xlu0 %v1799, 92
      %v3632 = vpop.permute.xlu0 %3631
      %3633 = vrot.lane.b32.xlu0 %v1800, 92
      %v3634 = vpop.permute.xlu0 %3633
      %3635 = vrot.lane.b32.xlu0 %v1801, 92
      %v3636 = vpop.permute.xlu0 %3635
      %3637 = vrot.lane.b32.xlu0 %v1802, 92
      %v3638 = vpop.permute.xlu0 %3637
      %3639 = vrot.lane.b32.xlu0 %v1803, 92
      %v3640 = vpop.permute.xlu0 %3639
      %3641 = vrot.lane.b32.xlu0 %v1804, 92
      %v3642 = vpop.permute.xlu0 %3641
      %3643 = vrot.lane.b32.xlu0 %v1805, 92
      %v3644 = vpop.permute.xlu0 %3643
      %3645 = vrot.lane.b32.xlu0 %v1806, 92
      %v3646 = vpop.permute.xlu0 %3645
      %3647 = vrot.lane.b32.xlu0 %v1807, 92
      %v3648 = vpop.permute.xlu0 %3647
      %3649 = vrot.lane.b32.xlu0 %v1808, 92
      %v3650 = vpop.permute.xlu0 %3649
      %3651 = vrot.lane.b32.xlu0 %v1809, 92
      %v3652 = vpop.permute.xlu0 %3651
      %3653 = vrot.lane.b32.xlu0 %v1810, 92
      %v3654 = vpop.permute.xlu0 %3653
      %3655 = vrot.lane.b32.xlu0 %v1811, 92
      %v3656 = vpop.permute.xlu0 %3655
      %3657 = vrot.lane.b32.xlu0 %v1812, 92
      %v3658 = vpop.permute.xlu0 %3657
      %3659 = vrot.lane.b32.xlu0 %v1813, 92
      %v3660 = vpop.permute.xlu0 %3659
      %3661 = vrot.lane.b32.xlu0 %v1814, 92
      %v3662 = vpop.permute.xlu0 %3661
      %3663 = vrot.lane.b32.xlu0 %v1815, 92
      %v3664 = vpop.permute.xlu0 %3663
      %3665 = vrot.lane.b32.xlu0 %v1816, 92
      %v3666 = vpop.permute.xlu0 %3665
      %3667 = vrot.lane.b32.xlu0 %v1817, 92
      %v3668 = vpop.permute.xlu0 %3667
      %3669 = vrot.lane.b32.xlu0 %v1818, 92
      %v3670 = vpop.permute.xlu0 %3669
      %3671 = vrot.lane.b32.xlu0 %v1819, 92
      %v3672 = vpop.permute.xlu0 %3671
      %3673 = vrot.lane.b32.xlu0 %v1820, 92
      %v3674 = vpop.permute.xlu0 %3673
      %3675 = vrot.lane.b32.xlu0 %v1821, 92
      %v3676 = vpop.permute.xlu0 %3675
      %3677 = vrot.lane.b32.xlu0 %v1822, 92
      %v3678 = vpop.permute.xlu0 %3677
      %3679 = vrot.lane.b32.xlu0 %v1823, 92
      %v3680 = vpop.permute.xlu0 %3679
      %3681 = vrot.lane.b32.xlu0 %v1824, 92
      %v3682 = vpop.permute.xlu0 %3681
      %v3683 = vsel %vm460, %v3588, %v3590
      %v3684 = vsel %vm460, %v3590, %v3592
      %v3685 = vsel %vm460, %v3594, %v3596
      %v3686 = vsel %vm460, %v3596, %v3598
      %v3687 = vsel %vm460, %v3600, %v3602
      %v3688 = vsel %vm460, %v3602, %v3604
      %v3689 = vsel %vm460, %v3606, %v3608
      %v3690 = vsel %vm460, %v3608, %v3610
      %v3691 = vsel %vm460, %v3612, %v3614
      %v3692 = vsel %vm460, %v3614, %v3616
      %v3693 = vsel %vm460, %v3618, %v3620
      %v3694 = vsel %vm460, %v3620, %v3622
      %v3695 = vsel %vm460, %v3624, %v3626
      %v3696 = vsel %vm460, %v3626, %v3628
      %v3697 = vsel %vm460, %v3630, %v3632
      %v3698 = vsel %vm460, %v3632, %v3634
      %v3699 = vsel %vm460, %v3636, %v3638
      %v3700 = vsel %vm460, %v3638, %v3640
      %v3701 = vsel %vm460, %v3642, %v3644
      %v3702 = vsel %vm460, %v3644, %v3646
      %v3703 = vsel %vm460, %v3648, %v3650
      %v3704 = vsel %vm460, %v3650, %v3652
      %v3705 = vsel %vm460, %v3654, %v3656
      %v3706 = vsel %vm460, %v3656, %v3658
      %v3707 = vsel %vm460, %v3660, %v3662
      %v3708 = vsel %vm460, %v3662, %v3664
      %v3709 = vsel %vm460, %v3666, %v3668
      %v3710 = vsel %vm460, %v3668, %v3670
      %v3711 = vsel %vm460, %v3672, %v3674
      %v3712 = vsel %vm460, %v3674, %v3676
      %v3713 = vsel %vm460, %v3678, %v3680
      %v3714 = vsel %vm460, %v3680, %v3682
      %3763 = vmatprep.subr.bf16.mxu0 %v3684
      %3764 = vmatpush1.bf16.msra.mxu0 %v3683
      %3765 = vmatprep.subr.bf16.mxu0 %v3686
      %3766 = vmatpush1.bf16.msra.mxu0 %v3685
      %3767 = vmatprep.subr.bf16.mxu0 %v3688
      %3768 = vmatpush1.bf16.msra.mxu0 %v3687
      %3769 = vmatprep.subr.bf16.mxu0 %v3690
      %3770 = vmatpush1.bf16.msra.mxu0 %v3689
      %3771 = vmatprep.subr.bf16.mxu0 %v3692
      %3772 = vmatpush1.bf16.msra.mxu0 %v3691
      %3773 = vmatprep.subr.bf16.mxu0 %v3694
      %3774 = vmatpush1.bf16.msra.mxu0 %v3693
      %3775 = vmatprep.subr.bf16.mxu0 %v3696
      %3776 = vmatpush1.bf16.msra.mxu0 %v3695
      %3777 = vmatprep.subr.bf16.mxu0 %v3698
      %3778 = vmatpush1.bf16.msra.mxu0 %v3697
      %3779 = vmatprep.subr.bf16.mxu0 %v3700
      %3780 = vmatpush1.bf16.msra.mxu0 %v3699
      %3781 = vmatprep.subr.bf16.mxu0 %v3702
      %3782 = vmatpush1.bf16.msra.mxu0 %v3701
      %3783 = vmatprep.subr.bf16.mxu0 %v3704
      %3784 = vmatpush1.bf16.msra.mxu0 %v3703
      %3785 = vmatprep.subr.bf16.mxu0 %v3706
      %3786 = vmatpush1.bf16.msra.mxu0 %v3705
      %3787 = vmatprep.subr.bf16.mxu0 %v3708
      %3788 = vmatpush1.bf16.msra.mxu0 %v3707
      %3789 = vmatprep.subr.bf16.mxu0 %v3710
      %3790 = vmatpush1.bf16.msra.mxu0 %v3709
      %3791 = vmatprep.subr.bf16.mxu0 %v3712
      %3792 = vmatpush1.bf16.msra.mxu0 %v3711
      %3793 = vmatprep.subr.bf16.mxu0 %v3714
      %3794 = vmatpush1.bf16.msra.mxu0 %v3713
      %3795 = vmatprep.mubr.bf16.mxu0 %v3580
      %3796 = vmatmul.mubr.bf16.gmra.mrb[0].mxu0 %v3579
      %v3797 = vpop.f32.mrb[0].mxu0
      %v3798 = vadd.f32 0.0, %v3797
      %v3799 = vpop.f32.mrb[0].mxu0
      %v3800 = vadd.f32 0.0, %v3799
      %v3801 = vpop.f32.mrb[0].mxu0
      %v3802 = vadd.f32 0.0, %v3801
      %v3803 = vpop.f32.mrb[0].mxu0
      %v3804 = vadd.f32 0.0, %v3803
      %3805 = vmatprep.mubr.bf16.mxu0 %v3582
      %3806 = vmatmul.mubr.bf16.gmra.mrb[0].mxu0 %v3581
      %v3807 = vpop.f32.mrb[0].mxu0
      %v3808 = vadd.f32 0.0, %v3807
      %v3809 = vpop.f32.mrb[0].mxu0
      %v3810 = vadd.f32 0.0, %v3809
      %v3811 = vpop.f32.mrb[0].mxu0
      %v3812 = vadd.f32 0.0, %v3811
      %v3813 = vpop.f32.mrb[0].mxu0
      %v3814 = vadd.f32 0.0, %v3813
      %3815 = vdwg.mxu0
      %3816 = vmatprep.subr.bf16.mxu0 0
      %3817 = vmatpush1.bf16.msra.mxu0 %v3592
      %3818 = vmatprep.subr.bf16.mxu0 0
      %3819 = vmatpush1.bf16.msra.mxu0 %v3598
      %3820 = vmatprep.subr.bf16.mxu0 0
      %3821 = vmatpush1.bf16.msra.mxu0 %v3604
      %3822 = vmatprep.subr.bf16.mxu0 0
      %3823 = vmatpush1.bf16.msra.mxu0 %v3610
      %3824 = vmatprep.subr.bf16.mxu0 0
      %3825 = vmatpush1.bf16.msra.mxu0 %v3616
      %3826 = vmatprep.subr.bf16.mxu0 0
      %3827 = vmatpush1.bf16.msra.mxu0 %v3622
      %3828 = vmatprep.subr.bf16.mxu0 0
      %3829 = vmatpush1.bf16.msra.mxu0 %v3628
      %3830 = vmatprep.subr.bf16.mxu0 0
      %3831 = vmatpush1.bf16.msra.mxu0 %v3634
      %3832 = vmatprep.subr.bf16.mxu0 0
      %3833 = vmatpush1.bf16.msra.mxu0 %v3640
      %3834 = vmatprep.subr.bf16.mxu0 0
      %3835 = vmatpush1.bf16.msra.mxu0 %v3646
      %3836 = vmatprep.subr.bf16.mxu0 0
      %3837 = vmatpush1.bf16.msra.mxu0 %v3652
      %3838 = vmatprep.subr.bf16.mxu0 0
      %3839 = vmatpush1.bf16.msra.mxu0 %v3658
      %3840 = vmatprep.subr.bf16.mxu0 0
      %3841 = vmatpush1.bf16.msra.mxu0 %v3664
      %3842 = vmatprep.subr.bf16.mxu0 0
      %3843 = vmatpush1.bf16.msra.mxu0 %v3670
      %3844 = vmatprep.subr.bf16.mxu0 0
      %3845 = vmatpush1.bf16.msra.mxu0 %v3676
      %3846 = vmatprep.subr.bf16.mxu0 0
      %3847 = vmatpush1.bf16.msra.mxu0 %v3682
      %3848 = vmatprep.mubr.bf16.mxu0 %v3580
      %3849 = vmatmul.mubr.bf16.gmra.mrb[0].mxu0 %v3579
      %v3850 = vpop.f32.mrb[0].mxu0
      %v3851 = vadd.f32 0.0, %v3850
      %v3852 = vpop.f32.mrb[0].mxu0
      %v3853 = vpop.f32.mrb[0].mxu0
      %v3854 = vadd.f32 0.0, %v3853
      %v3855 = vpop.f32.mrb[0].mxu0
      %3856 = vmatprep.mubr.bf16.mxu0 %v3582
      %3857 = vmatmul.mubr.bf16.gmra.mrb[0].mxu0 %v3581
      %v3858 = vpop.f32.mrb[0].mxu0
      %v3859 = vadd.f32 0.0, %v3858
      %v3860 = vpop.f32.mrb[0].mxu0
      %v3861 = vpop.f32.mrb[0].mxu0
      %v3862 = vadd.f32 0.0, %v3861
      %v3863 = vpop.f32.mrb[0].mxu0
      %3864 = vdwg.mxu0
      %v3865 = vadd.f32 %v3550, %v3798
      %v3866 = vadd.f32 %v3551, %v3800
      %v3867 = vadd.f32 %v3552, %v3851
      %v3868 = vadd.f32 %v3553, %v3802
      %v3869 = vadd.f32 %v3554, %v3804
      %v3870 = vadd.f32 %v3555, %v3854
      %v3871 = vadd.f32 %v3556, %v3808
      %v3872 = vadd.f32 %v3557, %v3810
      %v3873 = vadd.f32 %v3558, %v3859
      %v3874 = vadd.f32 %v3559, %v3812
      %v3875 = vadd.f32 %v3560, %v3814
      %v3876 = vadd.f32 %v3561, %v3862
      %s3877 = scalar_lea.vmem %s6, 224
      %v3878 = vld [vmem:[%s3877] sm:$0xff]
      %v3879 = vld [vmem:[%s3877 + $0x8] sm:$0xff]
      %v3880 = vld [vmem:[%s3877 + $0x10] sm:$0xff]
      %v3881 = vld [vmem:[%s3877 + $0x18] sm:$0xff]
      %v3886 = vunpack.c.l.b16 %v3878
      %v3887 = vunpack.c.h.b16 %v3878
      %v3888 = vunpack.c.l.b16 %v3879
      %v3889 = vunpack.c.h.b16 %v3879
      %v3890 = vunpack.c.l.b16 %v3880
      %v3891 = vunpack.c.h.b16 %v3880
      %v3892 = vunpack.c.l.b16 %v3881
      %v3893 = vunpack.c.h.b16 %v3881
      %v3894 = vpack.c.b16 %v3888, %v3886
      %v3895 = vpack.c.b16 %v3889, %v3887
      %v3896 = vpack.c.b16 %v3892, %v3890
      %v3897 = vpack.c.b16 %v3893, %v3891
      %3902 = vrot.lane.b32.xlu0 %v1777, 91
      %v3903 = vpop.permute.xlu0 %3902
      %3904 = vrot.lane.b32.xlu0 %v1778, 91
      %v3905 = vpop.permute.xlu0 %3904
      %3906 = vrot.lane.b32.xlu0 %v1779, 91
      %v3907 = vpop.permute.xlu0 %3906
      %3908 = vrot.lane.b32.xlu0 %v1780, 91
      %v3909 = vpop.permute.xlu0 %3908
      %3910 = vrot.lane.b32.xlu0 %v1781, 91
      %v3911 = vpop.permute.xlu0 %3910
      %3912 = vrot.lane.b32.xlu0 %v1782, 91
      %v3913 = vpop.permute.xlu0 %3912
      %3914 = vrot.lane.b32.xlu0 %v1783, 91
      %v3915 = vpop.permute.xlu0 %3914
      %3916 = vrot.lane.b32.xlu0 %v1784, 91
      %v3917 = vpop.permute.xlu0 %3916
      %3918 = vrot.lane.b32.xlu0 %v1785, 91
      %v3919 = vpop.permute.xlu0 %3918
      %3920 = vrot.lane.b32.xlu0 %v1786, 91
      %v3921 = vpop.permute.xlu0 %3920
      %3922 = vrot.lane.b32.xlu0 %v1787, 91
      %v3923 = vpop.permute.xlu0 %3922
      %3924 = vrot.lane.b32.xlu0 %v1788, 91
      %v3925 = vpop.permute.xlu0 %3924
      %3926 = vrot.lane.b32.xlu0 %v1789, 91
      %v3927 = vpop.permute.xlu0 %3926
      %3928 = vrot.lane.b32.xlu0 %v1790, 91
      %v3929 = vpop.permute.xlu0 %3928
      %3930 = vrot.lane.b32.xlu0 %v1791, 91
      %v3931 = vpop.permute.xlu0 %3930
      %3932 = vrot.lane.b32.xlu0 %v1792, 91
      %v3933 = vpop.permute.xlu0 %3932
      %3934 = vrot.lane.b32.xlu0 %v1793, 91
      %v3935 = vpop.permute.xlu0 %3934
      %3936 = vrot.lane.b32.xlu0 %v1794, 91
      %v3937 = vpop.permute.xlu0 %3936
      %3938 = vrot.lane.b32.xlu0 %v1795, 91
      %v3939 = vpop.permute.xlu0 %3938
      %3940 = vrot.lane.b32.xlu0 %v1796, 91
      %v3941 = vpop.permute.xlu0 %3940
      %3942 = vrot.lane.b32.xlu0 %v1797, 91
      %v3943 = vpop.permute.xlu0 %3942
      %3944 = vrot.lane.b32.xlu0 %v1798, 91
      %v3945 = vpop.permute.xlu0 %3944
      %3946 = vrot.lane.b32.xlu0 %v1799, 91
      %v3947 = vpop.permute.xlu0 %3946
      %3948 = vrot.lane.b32.xlu0 %v1800, 91
      %v3949 = vpop.permute.xlu0 %3948
      %3950 = vrot.lane.b32.xlu0 %v1801, 91
      %v3951 = vpop.permute.xlu0 %3950
      %3952 = vrot.lane.b32.xlu0 %v1802, 91
      %v3953 = vpop.permute.xlu0 %3952
      %3954 = vrot.lane.b32.xlu0 %v1803, 91
      %v3955 = vpop.permute.xlu0 %3954
      %3956 = vrot.lane.b32.xlu0 %v1804, 91
      %v3957 = vpop.permute.xlu0 %3956
      %3958 = vrot.lane.b32.xlu0 %v1805, 91
      %v3959 = vpop.permute.xlu0 %3958
      %3960 = vrot.lane.b32.xlu0 %v1806, 91
      %v3961 = vpop.permute.xlu0 %3960
      %3962 = vrot.lane.b32.xlu0 %v1807, 91
      %v3963 = vpop.permute.xlu0 %3962
      %3964 = vrot.lane.b32.xlu0 %v1808, 91
      %v3965 = vpop.permute.xlu0 %3964
      %3966 = vrot.lane.b32.xlu0 %v1809, 91
      %v3967 = vpop.permute.xlu0 %3966
      %3968 = vrot.lane.b32.xlu0 %v1810, 91
      %v3969 = vpop.permute.xlu0 %3968
      %3970 = vrot.lane.b32.xlu0 %v1811, 91
      %v3971 = vpop.permute.xlu0 %3970
      %3972 = vrot.lane.b32.xlu0 %v1812, 91
      %v3973 = vpop.permute.xlu0 %3972
      %3974 = vrot.lane.b32.xlu0 %v1813, 91
      %v3975 = vpop.permute.xlu0 %3974
      %3976 = vrot.lane.b32.xlu0 %v1814, 91
      %v3977 = vpop.permute.xlu0 %3976
      %3978 = vrot.lane.b32.xlu0 %v1815, 91
      %v3979 = vpop.permute.xlu0 %3978
      %3980 = vrot.lane.b32.xlu0 %v1816, 91
      %v3981 = vpop.permute.xlu0 %3980
      %3982 = vrot.lane.b32.xlu0 %v1817, 91
      %v3983 = vpop.permute.xlu0 %3982
      %3984 = vrot.lane.b32.xlu0 %v1818, 91
      %v3985 = vpop.permute.xlu0 %3984
      %3986 = vrot.lane.b32.xlu0 %v1819, 91
      %v3987 = vpop.permute.xlu0 %3986
      %3988 = vrot.lane.b32.xlu0 %v1820, 91
      %v3989 = vpop.permute.xlu0 %3988
      %3990 = vrot.lane.b32.xlu0 %v1821, 91
      %v3991 = vpop.permute.xlu0 %3990
      %3992 = vrot.lane.b32.xlu0 %v1822, 91
      %v3993 = vpop.permute.xlu0 %3992
      %3994 = vrot.lane.b32.xlu0 %v1823, 91
      %v3995 = vpop.permute.xlu0 %3994
      %3996 = vrot.lane.b32.xlu0 %v1824, 91
      %v3997 = vpop.permute.xlu0 %3996
      %v3998 = vsel %vm469, %v3903, %v3905
      %v3999 = vsel %vm469, %v3905, %v3907
      %v4000 = vsel %vm469, %v3909, %v3911
      %v4001 = vsel %vm469, %v3911, %v3913
      %v4002 = vsel %vm469, %v3915, %v3917
      %v4003 = vsel %vm469, %v3917, %v3919
      %v4004 = vsel %vm469, %v3921, %v3923
      %v4005 = vsel %vm469, %v3923, %v3925
      %v4006 = vsel %vm469, %v3927, %v3929
      %v4007 = vsel %vm469, %v3929, %v3931
      %v4008 = vsel %vm469, %v3933, %v3935
      %v4009 = vsel %vm469, %v3935, %v3937
      %v4010 = vsel %vm469, %v3939, %v3941
      %v4011 = vsel %vm469, %v3941, %v3943
      %v4012 = vsel %vm469, %v3945, %v3947
      %v4013 = vsel %vm469, %v3947, %v3949
      %v4014 = vsel %vm469, %v3951, %v3953
      %v4015 = vsel %vm469, %v3953, %v3955
      %v4016 = vsel %vm469, %v3957, %v3959
      %v4017 = vsel %vm469, %v3959, %v3961
      %v4018 = vsel %vm469, %v3963, %v3965
      %v4019 = vsel %vm469, %v3965, %v3967
      %v4020 = vsel %vm469, %v3969, %v3971
      %v4021 = vsel %vm469, %v3971, %v3973
      %v4022 = vsel %vm469, %v3975, %v3977
      %v4023 = vsel %vm469, %v3977, %v3979
      %v4024 = vsel %vm469, %v3981, %v3983
      %v4025 = vsel %vm469, %v3983, %v3985
      %v4026 = vsel %vm469, %v3987, %v3989
      %v4027 = vsel %vm469, %v3989, %v3991
      %v4028 = vsel %vm469, %v3993, %v3995
      %v4029 = vsel %vm469, %v3995, %v3997
      %4078 = vmatprep.subr.bf16.mxu0 %v3999
      %4079 = vmatpush1.bf16.msra.mxu0 %v3998
      %4080 = vmatprep.subr.bf16.mxu0 %v4001
      %4081 = vmatpush1.bf16.msra.mxu0 %v4000
      %4082 = vmatprep.subr.bf16.mxu0 %v4003
      %4083 = vmatpush1.bf16.msra.mxu0 %v4002
      %4084 = vmatprep.subr.bf16.mxu0 %v4005
      %4085 = vmatpush1.bf16.msra.mxu0 %v4004
      %4086 = vmatprep.subr.bf16.mxu0 %v4007
      %4087 = vmatpush1.bf16.msra.mxu0 %v4006
      %4088 = vmatprep.subr.bf16.mxu0 %v4009
      %4089 = vmatpush1.bf16.msra.mxu0 %v4008
      %4090 = vmatprep.subr.bf16.mxu0 %v4011
      %4091 = vmatpush1.bf16.msra.mxu0 %v4010
      %4092 = vmatprep.subr.bf16.mxu0 %v4013
      %4093 = vmatpush1.bf16.msra.mxu0 %v4012
      %4094 = vmatprep.subr.bf16.mxu0 %v4015
      %4095 = vmatpush1.bf16.msra.mxu0 %v4014
      %4096 = vmatprep.subr.bf16.mxu0 %v4017
      %4097 = vmatpush1.bf16.msra.mxu0 %v4016
      %4098 = vmatprep.subr.bf16.mxu0 %v4019
      %4099 = vmatpush1.bf16.msra.mxu0 %v4018
      %4100 = vmatprep.subr.bf16.mxu0 %v4021
      %4101 = vmatpush1.bf16.msra.mxu0 %v4020
      %4102 = vmatprep.subr.bf16.mxu0 %v4023
      %4103 = vmatpush1.bf16.msra.mxu0 %v4022
      %4104 = vmatprep.subr.bf16.mxu0 %v4025
      %4105 = vmatpush1.bf16.msra.mxu0 %v4024
      %4106 = vmatprep.subr.bf16.mxu0 %v4027
      %4107 = vmatpush1.bf16.msra.mxu0 %v4026
      %4108 = vmatprep.subr.bf16.mxu0 %v4029
      %4109 = vmatpush1.bf16.msra.mxu0 %v4028
      %4110 = vmatprep.mubr.bf16.mxu0 %v3895
      %4111 = vmatmul.mubr.bf16.gmra.mrb[0].mxu0 %v3894
      %v4112 = vpop.f32.mrb[0].mxu0
      %v4113 = vadd.f32 0.0, %v4112
      %v4114 = vpop.f32.mrb[0].mxu0
      %v4115 = vadd.f32 0.0, %v4114
      %v4116 = vpop.f32.mrb[0].mxu0
      %v4117 = vadd.f32 0.0, %v4116
      %v4118 = vpop.f32.mrb[0].mxu0
      %v4119 = vadd.f32 0.0, %v4118
      %4120 = vmatprep.mubr.bf16.mxu0 %v3897
      %4121 = vmatmul.mubr.bf16.gmra.mrb[0].mxu0 %v3896
      %v4122 = vpop.f32.mrb[0].mxu0
      %v4123 = vadd.f32 0.0, %v4122
      %v4124 = vpop.f32.mrb[0].mxu0
      %v4125 = vadd.f32 0.0, %v4124
      %v4126 = vpop.f32.mrb[0].mxu0
      %v4127 = vadd.f32 0.0, %v4126
      %v4128 = vpop.f32.mrb[0].mxu0
      %v4129 = vadd.f32 0.0, %v4128
      %4130 = vdwg.mxu0
      %4131 = vmatprep.subr.bf16.mxu0 0
      %4132 = vmatpush1.bf16.msra.mxu0 %v3907
      %4133 = vmatprep.subr.bf16.mxu0 0
      %4134 = vmatpush1.bf16.msra.mxu0 %v3913
      %4135 = vmatprep.subr.bf16.mxu0 0
      %4136 = vmatpush1.bf16.msra.mxu0 %v3919
      %4137 = vmatprep.subr.bf16.mxu0 0
      %4138 = vmatpush1.bf16.msra.mxu0 %v3925
      %4139 = vmatprep.subr.bf16.mxu0 0
      %4140 = vmatpush1.bf16.msra.mxu0 %v3931
      %4141 = vmatprep.subr.bf16.mxu0 0
      %4142 = vmatpush1.bf16.msra.mxu0 %v3937
      %4143 = vmatprep.subr.bf16.mxu0 0
      %4144 = vmatpush1.bf16.msra.mxu0 %v3943
      %4145 = vmatprep.subr.bf16.mxu0 0
      %4146 = vmatpush1.bf16.msra.mxu0 %v3949
      %4147 = vmatprep.subr.bf16.mxu0 0
      %4148 = vmatpush1.bf16.msra.mxu0 %v3955
      %4149 = vmatprep.subr.bf16.mxu0 0
      %4150 = vmatpush1.bf16.msra.mxu0 %v3961
      %4151 = vmatprep.subr.bf16.mxu0 0
      %4152 = vmatpush1.bf16.msra.mxu0 %v3967
      %4153 = vmatprep.subr.bf16.mxu0 0
      %4154 = vmatpush1.bf16.msra.mxu0 %v3973
      %4155 = vmatprep.subr.bf16.mxu0 0
      %4156 = vmatpush1.bf16.msra.mxu0 %v3979
      %4157 = vmatprep.subr.bf16.mxu0 0
      %4158 = vmatpush1.bf16.msra.mxu0 %v3985
      %4159 = vmatprep.subr.bf16.mxu0 0
      %4160 = vmatpush1.bf16.msra.mxu0 %v3991
      %4161 = vmatprep.subr.bf16.mxu0 0
      %4162 = vmatpush1.bf16.msra.mxu0 %v3997
      %4163 = vmatprep.mubr.bf16.mxu0 %v3895
      %4164 = vmatmul.mubr.bf16.gmra.mrb[0].mxu0 %v3894
      %v4165 = vpop.f32.mrb[0].mxu0
      %v4166 = vadd.f32 0.0, %v4165
      %v4167 = vpop.f32.mrb[0].mxu0
      %v4168 = vpop.f32.mrb[0].mxu0
      %v4169 = vadd.f32 0.0, %v4168
      %v4170 = vpop.f32.mrb[0].mxu0
      %4171 = vmatprep.mubr.bf16.mxu0 %v3897
      %4172 = vmatmul.mubr.bf16.gmra.mrb[0].mxu0 %v3896
      %v4173 = vpop.f32.mrb[0].mxu0
      %v4174 = vadd.f32 0.0, %v4173
      %v4175 = vpop.f32.mrb[0].mxu0
      %v4176 = vpop.f32.mrb[0].mxu0
      %v4177 = vadd.f32 0.0, %v4176
      %v4178 = vpop.f32.mrb[0].mxu0
      %4179 = vdwg.mxu0
      %v4180 = vadd.f32 %v3865, %v4113
      %v4181 = vadd.f32 %v3866, %v4115
      %v4182 = vadd.f32 %v3867, %v4166
      %v4183 = vadd.f32 %v3868, %v4117
      %v4184 = vadd.f32 %v3869, %v4119
      %v4185 = vadd.f32 %v3870, %v4169
      %v4186 = vadd.f32 %v3871, %v4123
      %v4187 = vadd.f32 %v3872, %v4125
      %v4188 = vadd.f32 %v3873, %v4174
      %v4189 = vadd.f32 %v3874, %v4127
      %v4190 = vadd.f32 %v3875, %v4129
      %v4191 = vadd.f32 %v3876, %v4177
      %s4192 = scalar_lea.vmem %s6, 256
      %v4193 = vld [vmem:[%s4192] sm:$0xff]
      %v4194 = vld [vmem:[%s4192 + $0x8] sm:$0xff]
      %v4195 = vld [vmem:[%s4192 + $0x10] sm:$0xff]
      %v4196 = vld [vmem:[%s4192 + $0x18] sm:$0xff]
      %v4201 = vunpack.c.l.b16 %v4193
      %v4202 = vunpack.c.h.b16 %v4193
      %v4203 = vunpack.c.l.b16 %v4194
      %v4204 = vunpack.c.h.b16 %v4194
      %v4205 = vunpack.c.l.b16 %v4195
      %v4206 = vunpack.c.h.b16 %v4195
      %v4207 = vunpack.c.l.b16 %v4196
      %v4208 = vunpack.c.h.b16 %v4196
      %v4209 = vpack.c.b16 %v4203, %v4201
      %v4210 = vpack.c.b16 %v4204, %v4202
      %v4211 = vpack.c.b16 %v4207, %v4205
      %v4212 = vpack.c.b16 %v4208, %v4206
      %4217 = vrot.lane.b32.xlu0 %v1777, 90
      %v4218 = vpop.permute.xlu0 %4217
      %4219 = vrot.lane.b32.xlu0 %v1778, 90
      %v4220 = vpop.permute.xlu0 %4219
      %4221 = vrot.lane.b32.xlu0 %v1779, 90
      %v4222 = vpop.permute.xlu0 %4221
      %4223 = vrot.lane.b32.xlu0 %v1780, 90
      %v4224 = vpop.permute.xlu0 %4223
      %4225 = vrot.lane.b32.xlu0 %v1781, 90
      %v4226 = vpop.permute.xlu0 %4225
      %4227 = vrot.lane.b32.xlu0 %v1782, 90
      %v4228 = vpop.permute.xlu0 %4227
      %4229 = vrot.lane.b32.xlu0 %v1783, 90
      %v4230 = vpop.permute.xlu0 %4229
      %4231 = vrot.lane.b32.xlu0 %v1784, 90
      %v4232 = vpop.permute.xlu0 %4231
      %4233 = vrot.lane.b32.xlu0 %v1785, 90
      %v4234 = vpop.permute.xlu0 %4233
      %4235 = vrot.lane.b32.xlu0 %v1786, 90
      %v4236 = vpop.permute.xlu0 %4235
      %4237 = vrot.lane.b32.xlu0 %v1787, 90
      %v4238 = vpop.permute.xlu0 %4237
      %4239 = vrot.lane.b32.xlu0 %v1788, 90
      %v4240 = vpop.permute.xlu0 %4239
      %4241 = vrot.lane.b32.xlu0 %v1789, 90
      %v4242 = vpop.permute.xlu0 %4241
      %4243 = vrot.lane.b32.xlu0 %v1790, 90
      %v4244 = vpop.permute.xlu0 %4243
      %4245 = vrot.lane.b32.xlu0 %v1791, 90
      %v4246 = vpop.permute.xlu0 %4245
      %4247 = vrot.lane.b32.xlu0 %v1792, 90
      %v4248 = vpop.permute.xlu0 %4247
      %4249 = vrot.lane.b32.xlu0 %v1793, 90
      %v4250 = vpop.permute.xlu0 %4249
      %4251 = vrot.lane.b32.xlu0 %v1794, 90
      %v4252 = vpop.permute.xlu0 %4251
      %4253 = vrot.lane.b32.xlu0 %v1795, 90
      %v4254 = vpop.permute.xlu0 %4253
      %4255 = vrot.lane.b32.xlu0 %v1796, 90
      %v4256 = vpop.permute.xlu0 %4255
      %4257 = vrot.lane.b32.xlu0 %v1797, 90
      %v4258 = vpop.permute.xlu0 %4257
      %4259 = vrot.lane.b32.xlu0 %v1798, 90
      %v4260 = vpop.permute.xlu0 %4259
      %4261 = vrot.lane.b32.xlu0 %v1799, 90
      %v4262 = vpop.permute.xlu0 %4261
      %4263 = vrot.lane.b32.xlu0 %v1800, 90
      %v4264 = vpop.permute.xlu0 %4263
      %4265 = vrot.lane.b32.xlu0 %v1801, 90
      %v4266 = vpop.permute.xlu0 %4265
      %4267 = vrot.lane.b32.xlu0 %v1802, 90
      %v4268 = vpop.permute.xlu0 %4267
      %4269 = vrot.lane.b32.xlu0 %v1803, 90
      %v4270 = vpop.permute.xlu0 %4269
      %4271 = vrot.lane.b32.xlu0 %v1804, 90
      %v4272 = vpop.permute.xlu0 %4271
      %4273 = vrot.lane.b32.xlu0 %v1805, 90
      %v4274 = vpop.permute.xlu0 %4273
      %4275 = vrot.lane.b32.xlu0 %v1806, 90
      %v4276 = vpop.permute.xlu0 %4275
      %4277 = vrot.lane.b32.xlu0 %v1807, 90
      %v4278 = vpop.permute.xlu0 %4277
      %4279 = vrot.lane.b32.xlu0 %v1808, 90
      %v4280 = vpop.permute.xlu0 %4279
      %4281 = vrot.lane.b32.xlu0 %v1809, 90
      %v4282 = vpop.permute.xlu0 %4281
      %4283 = vrot.lane.b32.xlu0 %v1810, 90
      %v4284 = vpop.permute.xlu0 %4283
      %4285 = vrot.lane.b32.xlu0 %v1811, 90
      %v4286 = vpop.permute.xlu0 %4285
      %4287 = vrot.lane.b32.xlu0 %v1812, 90
      %v4288 = vpop.permute.xlu0 %4287
      %4289 = vrot.lane.b32.xlu0 %v1813, 90
      %v4290 = vpop.permute.xlu0 %4289
      %4291 = vrot.lane.b32.xlu0 %v1814, 90
      %v4292 = vpop.permute.xlu0 %4291
      %4293 = vrot.lane.b32.xlu0 %v1815, 90
      %v4294 = vpop.permute.xlu0 %4293
      %4295 = vrot.lane.b32.xlu0 %v1816, 90
      %v4296 = vpop.permute.xlu0 %4295
      %4297 = vrot.lane.b32.xlu0 %v1817, 90
      %v4298 = vpop.permute.xlu0 %4297
      %4299 = vrot.lane.b32.xlu0 %v1818, 90
      %v4300 = vpop.permute.xlu0 %4299
      %4301 = vrot.lane.b32.xlu0 %v1819, 90
      %v4302 = vpop.permute.xlu0 %4301
      %4303 = vrot.lane.b32.xlu0 %v1820, 90
      %v4304 = vpop.permute.xlu0 %4303
      %4305 = vrot.lane.b32.xlu0 %v1821, 90
      %v4306 = vpop.permute.xlu0 %4305
      %4307 = vrot.lane.b32.xlu0 %v1822, 90
      %v4308 = vpop.permute.xlu0 %4307
      %4309 = vrot.lane.b32.xlu0 %v1823, 90
      %v4310 = vpop.permute.xlu0 %4309
      %4311 = vrot.lane.b32.xlu0 %v1824, 90
      %v4312 = vpop.permute.xlu0 %4311
      %v4313 = vsel %vm478, %v4218, %v4220
      %v4314 = vsel %vm478, %v4220, %v4222
      %v4315 = vsel %vm478, %v4224, %v4226
      %v4316 = vsel %vm478, %v4226, %v4228
      %v4317 = vsel %vm478, %v4230, %v4232
      %v4318 = vsel %vm478, %v4232, %v4234
      %v4319 = vsel %vm478, %v4236, %v4238
      %v4320 = vsel %vm478, %v4238, %v4240
      %v4321 = vsel %vm478, %v4242, %v4244
      %v4322 = vsel %vm478, %v4244, %v4246
      %v4323 = vsel %vm478, %v4248, %v4250
      %v4324 = vsel %vm478, %v4250, %v4252
      %v4325 = vsel %vm478, %v4254, %v4256
      %v4326 = vsel %vm478, %v4256, %v4258
      %v4327 = vsel %vm478, %v4260, %v4262
      %v4328 = vsel %vm478, %v4262, %v4264
      %v4329 = vsel %vm478, %v4266, %v4268
      %v4330 = vsel %vm478, %v4268, %v4270
      %v4331 = vsel %vm478, %v4272, %v4274
      %v4332 = vsel %vm478, %v4274, %v4276
      %v4333 = vsel %vm478, %v4278, %v4280
      %v4334 = vsel %vm478, %v4280, %v4282
      %v4335 = vsel %vm478, %v4284, %v4286
      %v4336 = vsel %vm478, %v4286, %v4288
      %v4337 = vsel %vm478, %v4290, %v4292
      %v4338 = vsel %vm478, %v4292, %v4294
      %v4339 = vsel %vm478, %v4296, %v4298
      %v4340 = vsel %vm478, %v4298, %v4300
      %v4341 = vsel %vm478, %v4302, %v4304
      %v4342 = vsel %vm478, %v4304, %v4306
      %v4343 = vsel %vm478, %v4308, %v4310
      %v4344 = vsel %vm478, %v4310, %v4312
      %4393 = vmatprep.subr.bf16.mxu0 %v4314
      %4394 = vmatpush1.bf16.msra.mxu0 %v4313
      %4395 = vmatprep.subr.bf16.mxu0 %v4316
      %4396 = vmatpush1.bf16.msra.mxu0 %v4315
      %4397 = vmatprep.subr.bf16.mxu0 %v4318
      %4398 = vmatpush1.bf16.msra.mxu0 %v4317
      %4399 = vmatprep.subr.bf16.mxu0 %v4320
      %4400 = vmatpush1.bf16.msra.mxu0 %v4319
      %4401 = vmatprep.subr.bf16.mxu0 %v4322
      %4402 = vmatpush1.bf16.msra.mxu0 %v4321
      %4403 = vmatprep.subr.bf16.mxu0 %v4324
      %4404 = vmatpush1.bf16.msra.mxu0 %v4323
      %4405 = vmatprep.subr.bf16.mxu0 %v4326
      %4406 = vmatpush1.bf16.msra.mxu0 %v4325
      %4407 = vmatprep.subr.bf16.mxu0 %v4328
      %4408 = vmatpush1.bf16.msra.mxu0 %v4327
      %4409 = vmatprep.subr.bf16.mxu0 %v4330
      %4410 = vmatpush1.bf16.msra.mxu0 %v4329
      %4411 = vmatprep.subr.bf16.mxu0 %v4332
      %4412 = vmatpush1.bf16.msra.mxu0 %v4331
      %4413 = vmatprep.subr.bf16.mxu0 %v4334
      %4414 = vmatpush1.bf16.msra.mxu0 %v4333
      %4415 = vmatprep.subr.bf16.mxu0 %v4336
      %4416 = vmatpush1.bf16.msra.mxu0 %v4335
      %4417 = vmatprep.subr.bf16.mxu0 %v4338
      %4418 = vmatpush1.bf16.msra.mxu0 %v4337
      %4419 = vmatprep.subr.bf16.mxu0 %v4340
      %4420 = vmatpush1.bf16.msra.mxu0 %v4339
      %4421 = vmatprep.subr.bf16.mxu0 %v4342
      %4422 = vmatpush1.bf16.msra.mxu0 %v4341
      %4423 = vmatprep.subr.bf16.mxu0 %v4344
      %4424 = vmatpush1.bf16.msra.mxu0 %v4343
      %4425 = vmatprep.mubr.bf16.mxu0 %v4210
      %4426 = vmatmul.mubr.bf16.gmra.mrb[0].mxu0 %v4209
      %v4427 = vpop.f32.mrb[0].mxu0
      %v4428 = vadd.f32 0.0, %v4427
      %v4429 = vpop.f32.mrb[0].mxu0
      %v4430 = vadd.f32 0.0, %v4429
      %v4431 = vpop.f32.mrb[0].mxu0
      %v4432 = vadd.f32 0.0, %v4431
      %v4433 = vpop.f32.mrb[0].mxu0
      %v4434 = vadd.f32 0.0, %v4433
      %4435 = vmatprep.mubr.bf16.mxu0 %v4212
      %4436 = vmatmul.mubr.bf16.gmra.mrb[0].mxu0 %v4211
      %v4437 = vpop.f32.mrb[0].mxu0
      %v4438 = vadd.f32 0.0, %v4437
      %v4439 = vpop.f32.mrb[0].mxu0
      %v4440 = vadd.f32 0.0, %v4439
      %v4441 = vpop.f32.mrb[0].mxu0
      %v4442 = vadd.f32 0.0, %v4441
      %v4443 = vpop.f32.mrb[0].mxu0
      %v4444 = vadd.f32 0.0, %v4443
      %4445 = vdwg.mxu0
      %4446 = vmatprep.subr.bf16.mxu0 0
      %4447 = vmatpush1.bf16.msra.mxu0 %v4222
      %4448 = vmatprep.subr.bf16.mxu0 0
      %4449 = vmatpush1.bf16.msra.mxu0 %v4228
      %4450 = vmatprep.subr.bf16.mxu0 0
      %4451 = vmatpush1.bf16.msra.mxu0 %v4234
      %4452 = vmatprep.subr.bf16.mxu0 0
      %4453 = vmatpush1.bf16.msra.mxu0 %v4240
      %4454 = vmatprep.subr.bf16.mxu0 0
      %4455 = vmatpush1.bf16.msra.mxu0 %v4246
      %4456 = vmatprep.subr.bf16.mxu0 0
      %4457 = vmatpush1.bf16.msra.mxu0 %v4252
      %4458 = vmatprep.subr.bf16.mxu0 0
      %4459 = vmatpush1.bf16.msra.mxu0 %v4258
      %4460 = vmatprep.subr.bf16.mxu0 0
      %4461 = vmatpush1.bf16.msra.mxu0 %v4264
      %4462 = vmatprep.subr.bf16.mxu0 0
      %4463 = vmatpush1.bf16.msra.mxu0 %v4270
      %4464 = vmatprep.subr.bf16.mxu0 0
      %4465 = vmatpush1.bf16.msra.mxu0 %v4276
      %4466 = vmatprep.subr.bf16.mxu0 0
      %4467 = vmatpush1.bf16.msra.mxu0 %v4282
      %4468 = vmatprep.subr.bf16.mxu0 0
      %4469 = vmatpush1.bf16.msra.mxu0 %v4288
      %4470 = vmatprep.subr.bf16.mxu0 0
      %4471 = vmatpush1.bf16.msra.mxu0 %v4294
      %4472 = vmatprep.subr.bf16.mxu0 0
      %4473 = vmatpush1.bf16.msra.mxu0 %v4300
      %4474 = vmatprep.subr.bf16.mxu0 0
      %4475 = vmatpush1.bf16.msra.mxu0 %v4306
      %4476 = vmatprep.subr.bf16.mxu0 0
      %4477 = vmatpush1.bf16.msra.mxu0 %v4312
      %4478 = vmatprep.mubr.bf16.mxu0 %v4210
      %4479 = vmatmul.mubr.bf16.gmra.mrb[0].mxu0 %v4209
      %v4480 = vpop.f32.mrb[0].mxu0
      %v4481 = vadd.f32 0.0, %v4480
      %v4482 = vpop.f32.mrb[0].mxu0
      %v4483 = vpop.f32.mrb[0].mxu0
      %v4484 = vadd.f32 0.0, %v4483
      %v4485 = vpop.f32.mrb[0].mxu0
      %4486 = vmatprep.mubr.bf16.mxu0 %v4212
      %4487 = vmatmul.mubr.bf16.gmra.mrb[0].mxu0 %v4211
      %v4488 = vpop.f32.mrb[0].mxu0
      %v4489 = vadd.f32 0.0, %v4488
      %v4490 = vpop.f32.mrb[0].mxu0
      %v4491 = vpop.f32.mrb[0].mxu0
      %v4492 = vadd.f32 0.0, %v4491
      %v4493 = vpop.f32.mrb[0].mxu0
      %4494 = vdwg.mxu0
      %v4495 = vadd.f32 %v4180, %v4428
      %v4496 = vadd.f32 %v4181, %v4430
      %v4497 = vadd.f32 %v4182, %v4481
      %v4498 = vadd.f32 %v4183, %v4432
      %v4499 = vadd.f32 %v4184, %v4434
      %v4500 = vadd.f32 %v4185, %v4484
      %v4501 = vadd.f32 %v4186, %v4438
      %v4502 = vadd.f32 %v4187, %v4440
      %v4503 = vadd.f32 %v4188, %v4489
      %v4504 = vadd.f32 %v4189, %v4442
      %v4505 = vadd.f32 %v4190, %v4444
      %v4506 = vadd.f32 %v4191, %v4492
      %v4507 = vld [vmem:[%s7] sm:$0xff]
      %v4508 = vld [vmem:[%s7 + $0x8] sm:$0xff]
      %v4509 = vld [vmem:[%s7 + $0x10] sm:$0xff]
      %v4510 = vld [vmem:[%s7 + $0x18] sm:$0xff]
      %4512 = vset.pattern.permute.xlu0 0
      %4513 = vperm.xlu0 %4512, %v4507
      %v4514 = vpop.permute.xlu0 %4513
      %4517 = vset.pattern.permute.xlu0 0
      %4518 = vperm.xlu0 %4517, %v4508
      %v4519 = vpop.permute.xlu0 %4518
      %4522 = vset.pattern.permute.xlu0 0
      %4523 = vperm.xlu0 %4522, %v4509
      %v4524 = vpop.permute.xlu0 %4523
      %4527 = vset.pattern.permute.xlu0 0
      %4528 = vperm.xlu0 %4527, %v4510
      %v4529 = vpop.permute.xlu0 %4528
      %v4531 = vadd.f32 %v4495, %v4514
      %v4532 = vadd.f32 %v4496, %v4514
      %v4533 = vadd.f32 %v4497, %v4514
      %v4534 = vadd.f32 %v4498, %v4519
      %v4535 = vadd.f32 %v4499, %v4519
      %v4536 = vadd.f32 %v4500, %v4519
      %v4537 = vadd.f32 %v4501, %v4524
      %v4538 = vadd.f32 %v4502, %v4524
      %v4539 = vadd.f32 %v4503, %v4524
      %v4540 = vadd.f32 %v4504, %v4529
      %v4541 = vadd.f32 %v4505, %v4529
      %v4542 = vadd.f32 %v4506, %v4529
      %v4543 = vadd.f32 %v356, %v357
      %vm4544 = vcmask 244736
      %v4545 = vsel %vm4544, %v358, 0.0
      %v4546 = vadd.f32 %v4543, %v4545
      %4547 = vadd.xlane.f32.xlu0 %v4546
      %v4548 = vpop.xlane.xlu0 %4547
      %v4549 = vmul.f32 %v4548, 0.00390625
      %v4550 = vmul.f32 %v356, %v356
      %v4551 = vmul.f32 %v357, %v357
      %v4552 = vmul.f32 %v358, %v358
      %v4553 = vadd.f32 %v4550, %v4551
      %v4554 = vsel %vm4544, %v4552, 0.0
      %v4555 = vadd.f32 %v4553, %v4554
      %4556 = vadd.xlane.f32.xlu0 %v4555
      %v4557 = vpop.xlane.xlu0 %4556
      %v4558 = vmul.f32 %v4557, 0.00390625
      %v4559 = vmul.f32 %v4549, %v4549
      %v4560 = vsub.f32 %v4558, %v4559
      %v4561 = vsub.f32 %v356, %v4549
      %v4562 = vsub.f32 %v357, %v4549
      %v4563 = vsub.f32 %v358, %v4549
      %v4564 = vadd.f32 %v4560, 1e-05
      %v4565 = vrsqrt.pop %v4564
      %v4566 = vmul.f32 %v4561, %v4565
      %v4567 = vmul.f32 %v4562, %v4565
      %v4568 = vmul.f32 %v4563, %v4565
      %v4569 = vadd.f32 %v4531, 1.0
      %v4570 = vadd.f32 %v4532, 1.0
      %v4571 = vadd.f32 %v4533, 1.0
      %v4572 = vmul.f32 %v4566, %v4569
      %v4573 = vmul.f32 %v4567, %v4570
      %v4574 = vmul.f32 %v4568, %v4571
      %v4575 = vadd.f32 %v4572, %v4534
      %v4576 = vadd.f32 %v4573, %v4535
      %v4577 = vadd.f32 %v4574, %v4536
      %vm4578 = vcmp.gt.f32.partialorder %v4575, 0.0
      %vm4579 = vcmp.gt.f32.partialorder %v4576, 0.0
      %vm4580 = vcmp.gt.f32.partialorder %v4577, 0.0
      %v4581 = vmul.f32 %v4575, 0.2
      %v4582 = vmul.f32 %v4576, 0.2
      %v4583 = vmul.f32 %v4577, 0.2
      %v4584 = vsel %vm4578, %v4575, %v4581
      %v4585 = vsel %vm4579, %v4576, %v4582
      %v4586 = vsel %vm4580, %v4577, %v4583
      %v4587 = vmul.f32 %v4584, %v1346
      %v4588 = vmul.f32 %v4585, %v1350
      %v4589 = vmul.f32 %v4586, %v1354
      %v4590 = vadd.f32 %v4587, %v4588
      %v4591 = vsel %vm4544, %v4589, 0.0
      %v4592 = vadd.f32 %v4590, %v4591
      %4593 = vadd.xlane.f32.xlu0 %v4592
      %v4594 = vpop.xlane.xlu0 %4593
      %v4595 = vmul.f32 %v4594, 0.00390625
      %v4596 = vmul.f32 %v4587, %v4587
      %v4597 = vmul.f32 %v4588, %v4588
      %v4598 = vmul.f32 %v4589, %v4589
      %v4599 = vadd.f32 %v4596, %v4597
      %v4600 = vsel %vm4544, %v4598, 0.0
      %v4601 = vadd.f32 %v4599, %v4600
      %4602 = vadd.xlane.f32.xlu0 %v4601
      %v4603 = vpop.xlane.xlu0 %4602
      %v4604 = vmul.f32 %v4603, 0.00390625
      %v4605 = vmul.f32 %v4595, %v4595
      %v4606 = vsub.f32 %v4604, %v4605
      %v4607 = vsub.f32 %v4587, %v4595
      %v4608 = vsub.f32 %v4588, %v4595
      %v4609 = vsub.f32 %v4589, %v4595
      %v4610 = vadd.f32 %v4606, 1e-05
      %v4611 = vrsqrt.pop %v4610
      %v4612 = vmul.f32 %v4607, %v4611
      %v4613 = vmul.f32 %v4608, %v4611
      %v4614 = vmul.f32 %v4609, %v4611
      %v4615 = vadd.f32 %v4537, 1.0
      %v4616 = vadd.f32 %v4538, 1.0
      %v4617 = vadd.f32 %v4539, 1.0
      %v4618 = vmul.f32 %v4612, %v4615
      %v4619 = vmul.f32 %v4613, %v4616
      %v4620 = vmul.f32 %v4614, %v4617
      %v4621 = vadd.f32 %v4618, %v4540
      %v4622 = vadd.f32 %v4619, %v4541
      %v4623 = vadd.f32 %v4620, %v4542
      %vm4624 = vcmp.gt.f32.partialorder %v4621, 0.0
      %vm4625 = vcmp.gt.f32.partialorder %v4622, 0.0
      %vm4626 = vcmp.gt.f32.partialorder %v4623, 0.0
      %v4627 = vmul.f32 %v4621, 0.2
      %v4628 = vmul.f32 %v4622, 0.2
      %v4629 = vmul.f32 %v4623, 0.2
      %v4630 = vsel %vm4624, %v4621, %v4627
      %v4631 = vsel %vm4625, %v4622, %v4628
      %v4632 = vsel %vm4626, %v4623, %v4629
      %v4633 = vpack.c.bf16 %v4630, %v4630
      %v4634 = vpack.c.bf16 %v4631, %v4631
      %v4635 = vpack.c.bf16 %v4632, %v4632
      %v4639 = vunpack.c.l.b16 %v4633
      %v4640 = vunpack.c.l.b16 %v4634
      %v4641 = vunpack.c.l.b16 %v4635
      %v4642 = vpack.c.b16 %v4640, %v4639
      %v4643 = vpack.c.b16 %v4641, %v4641
      %4644 = vrot.lane.b32.xlu0 %v4642, 19
      %v4645 = vpop.permute.xlu0 %4644
      %4646 = vrot.lane.b32.xlu0 %v4643, 19
      %v4647 = vpop.permute.xlu0 %4646
      %v4648 = vrot.slane %v4645, 4
      %v4649 = vsel %vm1646, %v4648, %v4645
      %v4650 = vsel %vm1646, %v4648, %v4647
      %vm4653 = vcmask 1043608
      %vm4654 = vcmask 1047556
      %vm4655 = vmor %vm4654, %vm4653
      %4656 = vst.msk [vmem:[#allocation3] sm:$0xff] %vm4655, %v4649
      %vm4657 = vcmask 396288
      %4658 = vst.msk [vmem:[#allocation3 + $0x8] sm:$0xf] %vm4657, %v4650
      %v4659 = vld [vmem:[#allocation3] sm:$0xff]
      %v4660 = vld [vmem:[#allocation3 + $0x8] sm:$0xf]
      %v4661 = vsel %vm361, 1, 0
      %v4662 = vlaneseq
      %v4663 = vshrl.u32 %v4662, 7
      %v4664 = vsub.s32 0, %v4663
      %v4665 = vrot.slane %v4661, %v4664
      %v4666 = vlaneseq
      %v4667 = vshrl.u32 %v4666, 7
      %v4668 = vsub.s32 1, %v4667
      %v4669 = vrot.slane %v4661, %v4668
      %v4670 = vlaneseq
      %v4671 = vshrl.u32 %v4670, 7
      %v4672 = vsub.s32 2, %v4671
      %v4673 = vrot.slane %v4661, %v4672
      %vm4674 = vcmp.eq.s32.totalorder %v4665, 1
      %vm4675 = vcmp.eq.s32.totalorder %v4669, 1
      %vm4676 = vcmp.eq.s32.totalorder %v4673, 1
      %vm4677 = vmpackc.low %vm4675, %vm4674
      %vm4678 = vmpackc.low %vm4676, %vm4676
      %v4679 = vsel %vm4677, 65537, 0
      %v4680 = vsel %vm4678, 65537, 0
      %4681 = vrot.lane.b32.xlu0 %v4679, 20
      %v4682 = vpop.permute.xlu0 %4681
      %4683 = vrot.lane.b32.xlu0 %v4680, 20
      %v4684 = vpop.permute.xlu0 %4683
      %v4685 = vrot.slane %v4682, 4
      %vm4686 = vcmask 162816
      %v4687 = vsel %vm4686, %v4685, %v4682
      %v4688 = vsel %vm4686, %v4685, %v4684
      %vm4689 = vcmp.ne.s16.totalorder %v4687, 0
      %vm4690 = vcmp.ne.s16.totalorder %v4688, 0
      %4693 = vrot.lane.b32.xlu0 %v4659, 2
      %v4694 = vpop.permute.xlu0 %4693
      %4695 = vrot.lane.b32.xlu0 %v4660, 2
      %v4696 = vpop.permute.xlu0 %4695
      %v4697 = vrot.slane %v4694, 4
      %vm4698 = vcmask 15360
      %v4699 = vsel %vm4698, %v4697, %v4694
      %v4700 = vsel %vm4698, %v4697, %v4696
      %v4703 = vsel %vm4689, %v4659, %v4699
      %v4704 = vsel %vm4690, %v4660, %v4700
      %v4705 = vsel %vm364, 1, 0
      %v4706 = vlaneseq
      %v4707 = vshrl.u32 %v4706, 7
      %v4708 = vsub.s32 0, %v4707
      %v4709 = vrot.slane %v4705, %v4708
      %v4710 = vlaneseq
      %v4711 = vshrl.u32 %v4710, 7
      %v4712 = vsub.s32 1, %v4711
      %v4713 = vrot.slane %v4705, %v4712
      %v4714 = vlaneseq
      %v4715 = vshrl.u32 %v4714, 7
      %v4716 = vsub.s32 2, %v4715
      %v4717 = vrot.slane %v4705, %v4716
      %vm4718 = vcmp.eq.s32.totalorder %v4709, 1
      %vm4719 = vcmp.eq.s32.totalorder %v4713, 1
      %vm4720 = vcmp.eq.s32.totalorder %v4717, 1
      %vm4721 = vmpackc.low %vm4719, %vm4718
      %vm4722 = vmpackc.low %vm4720, %vm4720
      %v4723 = vsel %vm4721, 65537, 0
      %v4724 = vsel %vm4722, 65537, 0
      %4725 = vrot.lane.b32.xlu0 %v4723, 16
      %v4726 = vpop.permute.xlu0 %4725
      %4727 = vrot.lane.b32.xlu0 %v4724, 16
      %v4728 = vpop.permute.xlu0 %4727
      %v4729 = vrot.slane %v4726, 4
      %vm4730 = vcmask 130048
      %v4731 = vsel %vm4730, %v4729, %v4726
      %v4732 = vsel %vm4730, %v4729, %v4728
      %vm4733 = vcmp.ne.s16.totalorder %v4731, 0
      %vm4734 = vcmp.ne.s16.totalorder %v4732, 0
      %4737 = vrot.lane.b32.xlu0 %v4703, 124
      %v4738 = vpop.permute.xlu0 %4737
      %4739 = vrot.lane.b32.xlu0 %v4704, 124
      %v4740 = vpop.permute.xlu0 %4739
      %v4741 = vrot.slane %v4738, 4
      %v4742 = vrot.slane %v4740, 4
      %vm4743 = vcmask 1043456
      %v4744 = vsel %vm4743, %v4741, %v4742
      %vm4745 = vcmask 1014784
      %v4746 = vsel %vm4745, %v4738, %v4744
      %v4749 = vsel %vm4733, %v4659, %v4746
      %v4750 = vsel %vm4734, %v4660, %v4740
      %4753 = vrot.lane.b32.xlu0 %v4749, 2
      %v4754 = vpop.permute.xlu0 %4753
      %4755 = vrot.lane.b32.xlu0 %v4750, 2
      %v4756 = vpop.permute.xlu0 %4755
      %v4757 = vrot.slane %v4754, 4
      %v4758 = vsel %vm4698, %v4757, %v4754
      %v4759 = vsel %vm4698, %v4757, %v4756
      %vm4762 = vcmask 1043600
      %vm4763 = vmor %vm4654, %vm4762
      %4764 = vst.msk [vmem:[#allocation3] sm:$0xff] %vm4763, %v4758
      %vm4765 = vcmask 404480
      %4766 = vst.msk [vmem:[#allocation3 + $0x8] sm:$0xf] %vm4765, %v4759
      %v4767 = vld [vmem:[#allocation3] sm:$0xf]
      %4769 = vrot.lane.b32.xlu0 %v4767, 92
      %v4770 = vpop.permute.xlu0 %4769
      %vm4772 = vcmask 142336
      %4773 = vst.msk [vmem:[#allocation3] sm:$0xf] %vm4772, %v4770
      %v4774 = vld [vmem:[#allocation3 + $0x8] sm:$0xf]
      %4776 = vrot.lane.b32.xlu0 %v4774, 36
      %v4777 = vpop.permute.xlu0 %4776
      %vm4779 = vcmask 552336
      %4780 = vst.msk [vmem:[#allocation3 + $0x8] sm:$0xf] %vm4779, %v4777
      %v4781 = vld [vmem:[#allocation3] sm:$0xff]
      %v4782 = vld [vmem:[#allocation3 + $0x8] sm:$0xf]
      %v4785 = vunpack.c.l.b16 %v4781
      %v4786 = vunpack.c.h.b16 %v4781
      %v4787 = vunpack.c.l.b16 %v4782
      %v4788 = vpack.c.b16 %v4785, %v4785
      %v4789 = vpack.c.b16 %v4786, %v4786
      %v4790 = vpack.c.b16 %v4787, %v4787
      %4791 = vrot.lane.b32.xlu0 %v4788, 127
      %v4792 = vpop.permute.xlu0 %4791
      %4793 = vrot.lane.b32.xlu0 %v4789, 127
      %v4794 = vpop.permute.xlu0 %4793
      %4795 = vrot.lane.b32.xlu0 %v4790, 127
      %v4796 = vpop.permute.xlu0 %4795
      %v4797 = vsel %vm415, %v4792, %v4794
      %v4798 = vsel %vm415, %v4794, %v4796
      %4799 = vrot.lane.b32.xlu0 %v4788, 126
      %v4800 = vpop.permute.xlu0 %4799
      %4801 = vrot.lane.b32.xlu0 %v4789, 126
      %v4802 = vpop.permute.xlu0 %4801
      %4803 = vrot.lane.b32.xlu0 %v4790, 126
      %v4804 = vpop.permute.xlu0 %4803
      %v4805 = vsel %vm424, %v4800, %v4802
      %v4806 = vsel %vm424, %v4802, %v4804
      %4807 = vrot.lane.b32.xlu0 %v4788, 110
      %v4808 = vpop.permute.xlu0 %4807
      %4809 = vrot.lane.b32.xlu0 %v4789, 110
      %v4810 = vpop.permute.xlu0 %4809
      %4811 = vrot.lane.b32.xlu0 %v4790, 110
      %v4812 = vpop.permute.xlu0 %4811
      %v4813 = vsel %vm433, %v4808, %v4810
      %v4814 = vsel %vm433, %v4810, %v4812
      %4815 = vrot.lane.b32.xlu0 %v4788, 109
      %v4816 = vpop.permute.xlu0 %4815
      %4817 = vrot.lane.b32.xlu0 %v4789, 109
      %v4818 = vpop.permute.xlu0 %4817
      %4819 = vrot.lane.b32.xlu0 %v4790, 109
      %v4820 = vpop.permute.xlu0 %4819
      %v4821 = vsel %vm442, %v4816, %v4818
      %v4822 = vsel %vm442, %v4818, %v4820
      %4823 = vrot.lane.b32.xlu0 %v4788, 108
      %v4824 = vpop.permute.xlu0 %4823
      %4825 = vrot.lane.b32.xlu0 %v4789, 108
      %v4826 = vpop.permute.xlu0 %4825
      %4827 = vrot.lane.b32.xlu0 %v4790, 108
      %v4828 = vpop.permute.xlu0 %4827
      %v4829 = vsel %vm451, %v4824, %v4826
      %v4830 = vsel %vm451, %v4826, %v4828
      %4831 = vrot.lane.b32.xlu0 %v4788, 92
      %v4832 = vpop.permute.xlu0 %4831
      %4833 = vrot.lane.b32.xlu0 %v4789, 92
      %v4834 = vpop.permute.xlu0 %4833
      %4835 = vrot.lane.b32.xlu0 %v4790, 92
      %v4836 = vpop.permute.xlu0 %4835
      %v4837 = vsel %vm460, %v4832, %v4834
      %v4838 = vsel %vm460, %v4834, %v4836
      %4839 = vrot.lane.b32.xlu0 %v4788, 91
      %v4840 = vpop.permute.xlu0 %4839
      %4841 = vrot.lane.b32.xlu0 %v4789, 91
      %v4842 = vpop.permute.xlu0 %4841
      %4843 = vrot.lane.b32.xlu0 %v4790, 91
      %v4844 = vpop.permute.xlu0 %4843
      %v4845 = vsel %vm469, %v4840, %v4842
      %v4846 = vsel %vm469, %v4842, %v4844
      %4847 = vrot.lane.b32.xlu0 %v4788, 90
      %v4848 = vpop.permute.xlu0 %4847
      %4849 = vrot.lane.b32.xlu0 %v4789, 90
      %v4850 = vpop.permute.xlu0 %4849
      %4851 = vrot.lane.b32.xlu0 %v4790, 90
      %v4852 = vpop.permute.xlu0 %4851
      %v4853 = vsel %vm478, %v4848, %v4850
      %v4854 = vsel %vm478, %v4850, %v4852
      %v4857 = vsel %vm481, %v4788, %v4797
      %v4861 = vsel %vm481, %v4789, %v4798
      %v4865 = vsel %vm481, %v4790, %v4796
      %v4869 = vsel %vm481, %v4805, %v4813
      %v4873 = vsel %vm481, %v4806, %v4814
      %v4877 = vsel %vm481, %v4804, %v4812
      %v4881 = vsel %vm481, %v4821, %v4829
      %v4885 = vsel %vm481, %v4822, %v4830
      %v4889 = vsel %vm481, %v4820, %v4828
      %v4893 = vsel %vm481, %v4837, %v4845
      %v4897 = vsel %vm481, %v4838, %v4846
      %v4901 = vsel %vm481, %v4836, %v4844
      %v4903 = vld [vmem:[%s8] sm:$0xf]
      %v4905 = vsel %vm834, %v4903, 0
      %v4908 = vsel %vm481, %v4853, 0
      %v4911 = vsel %vm481, %v4854, 0
      %v4914 = vsel %vm481, %v4852, 0
      %4916 = vmatprep.subr.bf16.mxu0 %v4861
      %4917 = vmatpush1.bf16.msra.mxu0 %v4857
      %4918 = vmatprep.subr.bf16.mxu0 %v4873
      %4919 = vmatpush1.bf16.msra.mxu0 %v4869
      %4920 = vmatprep.subr.bf16.mxu0 %v4885
      %4921 = vmatpush1.bf16.msra.mxu0 %v4881
      %4922 = vmatprep.subr.bf16.mxu0 %v4897
      %4923 = vmatpush1.bf16.msra.mxu0 %v4893
      %4924 = vmatprep.subr.bf16.mxu0 %v4911
      %4925 = vmatpush1.bf16.msra.mxu0 %v4908
      %4926 = vmatprep.subr.bf16.mxu0 0
      %4927 = vmatpush1.bf16.msra.mxu0 0
      %4928 = vmatprep.subr.bf16.mxu0 0
      %4929 = vmatpush1.bf16.msra.mxu0 0
      %4930 = vmatprep.subr.bf16.mxu0 0
      %4931 = vmatpush1.bf16.msra.mxu0 0
      %4932 = vmatprep.subr.bf16.mxu0 0
      %4933 = vmatpush1.bf16.msra.mxu0 0
      %4934 = vmatprep.subr.bf16.mxu0 0
      %4935 = vmatpush1.bf16.msra.mxu0 0
      %4936 = vmatprep.subr.bf16.mxu0 0
      %4937 = vmatpush1.bf16.msra.mxu0 0
      %4938 = vmatprep.subr.bf16.mxu0 0
      %4939 = vmatpush1.bf16.msra.mxu0 0
      %4940 = vmatprep.subr.bf16.mxu0 0
      %4941 = vmatpush1.bf16.msra.mxu0 0
      %4942 = vmatprep.subr.bf16.mxu0 0
      %4943 = vmatpush1.bf16.msra.mxu0 0
      %4944 = vmatprep.subr.bf16.mxu0 0
      %4945 = vmatpush1.bf16.msra.mxu0 0
      %4946 = vmatprep.subr.bf16.mxu0 0
      %4947 = vmatpush1.bf16.msra.mxu0 0
      %4948 = vmatprep.mubr.bf16.mxu0 0
      %4949 = vmatmul.mubr.bf16.gmra.mrb[0].mxu0 %v4905
      %v4950 = vpop.f32.mrb[0].mxu0
      %v4951 = vadd.f32 0.0, %v4950
      %v4952 = vpop.f32.mrb[0].mxu0
      %v4953 = vadd.f32 0.0, %v4952
      %v4954 = vpop.f32.mrb[0].mxu0
      %v4955 = vpop.f32.mrb[0].mxu0
      %4956 = vdwg.mxu0
      %4957 = vmatprep.subr.bf16.mxu0 0
      %4958 = vmatpush1.bf16.msra.mxu0 %v4865
      %4959 = vmatprep.subr.bf16.mxu0 0
      %4960 = vmatpush1.bf16.msra.mxu0 %v4877
      %4961 = vmatprep.subr.bf16.mxu0 0
      %4962 = vmatpush1.bf16.msra.mxu0 %v4889
      %4963 = vmatprep.subr.bf16.mxu0 0
      %4964 = vmatpush1.bf16.msra.mxu0 %v4901
      %4965 = vmatprep.subr.bf16.mxu0 0
      %4966 = vmatpush1.bf16.msra.mxu0 %v4914
      %4967 = vmatprep.subr.bf16.mxu0 0
      %4968 = vmatpush1.bf16.msra.mxu0 0
      %4969 = vmatprep.subr.bf16.mxu0 0
      %4970 = vmatpush1.bf16.msra.mxu0 0
      %4971 = vmatprep.subr.bf16.mxu0 0
      %4972 = vmatpush1.bf16.msra.mxu0 0
      %4973 = vmatprep.subr.bf16.mxu0 0
      %4974 = vmatpush1.bf16.msra.mxu0 0
      %4975 = vmatprep.subr.bf16.mxu0 0
      %4976 = vmatpush1.bf16.msra.mxu0 0
      %4977 = vmatprep.subr.bf16.mxu0 0
      %4978 = vmatpush1.bf16.msra.mxu0 0
      %4979 = vmatprep.subr.bf16.mxu0 0
      %4980 = vmatpush1.bf16.msra.mxu0 0
      %4981 = vmatprep.subr.bf16.mxu0 0
      %4982 = vmatpush1.bf16.msra.mxu0 0
      %4983 = vmatprep.subr.bf16.mxu0 0
      %4984 = vmatpush1.bf16.msra.mxu0 0
      %4985 = vmatprep.subr.bf16.mxu0 0
      %4986 = vmatpush1.bf16.msra.mxu0 0
      %4987 = vmatprep.subr.bf16.mxu0 0
      %4988 = vmatpush1.bf16.msra.mxu0 0
      %4989 = vmatprep.mubr.bf16.mxu0 0
      %4990 = vmatmul.mubr.bf16.gmra.mrb[0].mxu0 %v4905
      %v4991 = vpop.f32.mrb[0].mxu0
      %v4992 = vadd.f32 0.0, %v4991
      %v4993 = vpop.f32.mrb[0].mxu0
      %v4994 = vpop.f32.mrb[0].mxu0
      %v4995 = vpop.f32.mrb[0].mxu0
      %4996 = vdwg.mxu0
      %v4997 = vadd.f32 %v356, %v4951
      %v4998 = vadd.f32 %v357, %v4953
      %v4999 = vadd.f32 %v358, %v4992
      %5000 = vst [vmem:[%s352] sm:$0xff] %v4997
      %5001 = vst [vmem:[%s352 + $0x8] sm:$0xff] %v4998
      %5002 = vst.msk [vmem:[%s352 + $0x10] sm:$0xff] %vm4544, %v4999
      %p5003 = scmp.lt.s32.totalorder %s20, 1
      %s5004 = scalar_select %p5003, %s20, 1
      %s5005 = smul.addr %s5004, 3
      %s5006 = smul.addr %s5005, 8
      %s5007 = scalar_lea.vmem %s9, %s5006
      // Predicated region
      $region57: #{spade_resnet_block_pallas.1} parent=55 // pred_check
        %p5008 = pneg %p237
      $region58: #{spade_resnet_block_pallas.1} parent=55 // pred_check_branch
        %5010 = sbr.rel (%p5008) target = $region60
      $region59: #{spade_resnet_block_pallas.1} parent=55 // pred_region
        _
      $region60: #{spade_resnet_block_pallas.1} parent=55 // pred_fallthru
        _
    $region56: #{spade_resnet_block_pallas.1} parent=5 // pred_fallthru
      _
    %p5011 = scmp.le.s32.totalorder 2, %s15
    // Predicated region
    $region61: #{spade_resnet_block_pallas.1} parent=5 // pred_check
      %p5012 = pneg %p5011
    $region62: #{spade_resnet_block_pallas.1} parent=5 // pred_check_branch
      %5014 = sbr.rel (%p5012) target = $region64
    $region63: #{spade_resnet_block_pallas.1} parent=5 // pred_region
      %s5015 = ssub.s32 %s15, 2
      // Predicated region
      $region65: #{spade_resnet_block_pallas.1} parent=63 // pred_check
        %p5016 = pneg %p243
      $region66: #{spade_resnet_block_pallas.1} parent=63 // pred_check_branch
        %5018 = sbr.rel (%p5016) target = $region68
      $region67: #{spade_resnet_block_pallas.1} parent=63 // pred_region
        %p5019 = scmp.lt.s32.totalorder %s21, 1
        %s5020 = scalar_select %p5019, %s21, 1
        %s5021 = smul.addr %s5020, 3
        %s5022 = smul.addr %s5021, 8
        %s5023 = scalar_lea.vmem %s9, %s5022
      $region68: #{spade_resnet_block_pallas.1} parent=63 // pred_fallthru
        _
    $region64: #{spade_resnet_block_pallas.1} parent=5 // pred_fallthru
      _
  $region6: #{spade_resnet_block_pallas.1} parent=0 // loop_footer
    %s19 = sadd.s32 1, %s15
  $region7: #{spade_resnet_block_pallas.1} parent=0 // loop_footer_branch
    %14 = sbr.rel target = $region3
  $region8: #{spade_resnet_block_pallas.1} parent=0 // loop_exit
    _

</llo_original>
